<compile_context>
chip_gen: v7x
topology: tpu7x:2x2x1
jax: 0.10.0
libtpu: 0.0.40
codegen_flags: <defaults>
</compile_context>

<pallas_src>
import functools

import jax
import jax.numpy as jnp
from jax.experimental import pallas as pl
from jax.experimental.pallas import tpu as pltpu

Z_DIM = 100
H1 = 512
H2 = 1024
NUM_POINTS = 1024
OUT_DIM = NUM_POINTS * 3   # 3072
TN = 768                   # fc3 output-column tile -> 4 grid steps (even, v7x-friendly)
K_PAD = 128                # z_dim padded to one lane tile


# ----------------------------------------------------------------------------
# Kernel A: h2 = relu(relu(z @ W1 + b1) @ W2 + b2), computed once (single shot).
# ----------------------------------------------------------------------------
def _h2_kernel(z_ref, w1_ref, b1_ref, w2_ref, b2_ref, h2_ref):
    z = z_ref[...].astype(jnp.bfloat16)                               # (B, 128)
    h1 = jnp.dot(z, w1_ref[...], preferred_element_type=jnp.float32)
    h1 = jnp.maximum(h1 + b1_ref[...], 0.0)                           # (B, 512)  f32
    h2 = jnp.dot(h1.astype(jnp.bfloat16), w2_ref[...],
                 preferred_element_type=jnp.float32)
    h2 = jnp.maximum(h2 + b2_ref[...], 0.0)                           # (B, 1024) f32
    h2_ref[...] = h2.astype(h2_ref.dtype)                             # store bf16


# ----------------------------------------------------------------------------
# Kernel B: one output-column tile of tanh(h2 @ W3_tile + b3_tile).
# W3 is pre-tiled to (n_tiles, H2, TN) so each tile is a contiguous HBM read
# that Pallas double-buffers under the matmul / tanh / store.
# ----------------------------------------------------------------------------
def _fc3_kernel(h2_ref, w3_ref, b3_ref, o_ref):
    h3 = jnp.dot(h2_ref[...], w3_ref[...],                            # (B, TN) f32
                 preferred_element_type=jnp.float32)
    o_ref[...] = jnp.tanh(h3 + b3_ref[...])


@functools.partial(jax.jit, static_argnames=("num_points",))
def point_cloud_generator(z, w1, b1, w2, b2, w3_tiled, b3, num_points=NUM_POINTS):
    B = z.shape[0]
    out_dim = num_points * 3
    n_tiles = w3_tiled.shape[0]
    tn = w3_tiled.shape[2]
    assert n_tiles * tn == out_dim

    # Zero-pad the contraction dim 100 -> 128 (W1 is pre-padded to match).
    k = z.shape[1]
    if k != w1.shape[0]:
        z = jnp.pad(z, ((0, 0), (0, w1.shape[0] - k)))

    def full2d(arr):
        # Whole array resident in VMEM (constant block index).
        return pl.BlockSpec(arr.shape, lambda *_: (0, 0))

    # --- Kernel A: h2, computed once -------------------------------------
    h2 = pl.pallas_call(
        _h2_kernel,
        out_shape=jax.ShapeDtypeStruct((B, w2.shape[1]), jnp.bfloat16),
        grid=(1,),
        in_specs=[full2d(z), full2d(w1), full2d(b1), full2d(w2), full2d(b2)],
        out_specs=pl.BlockSpec((B, w2.shape[1]), lambda i: (0, 0)),
        compiler_params=pltpu.CompilerParams(
            dimension_semantics=("arbitrary",),
        ),
    )(z, w1, b1, w2, b2)

    # --- Kernel B: stream W3 column tiles ---------------------------------
    out = pl.pallas_call(
        _fc3_kernel,
        out_shape=jax.ShapeDtypeStruct((B, out_dim), jnp.float32),
        grid=(n_tiles,),
        in_specs=[
            full2d(h2),                                           # (B, 1024) bf16, resident
            pl.BlockSpec((None, w3_tiled.shape[1], tn),           # (1024, TN) bf16 tile,
                         lambda j: (j, 0, 0)),                    #   contiguous HBM slab
            pl.BlockSpec((1, tn), lambda j: (0, j)),              # (1, TN)   f32
        ],
        out_specs=pl.BlockSpec((B, tn), lambda j: (0, j)),        # (B, TN)   f32
        compiler_params=pltpu.CompilerParams(
            dimension_semantics=("parallel",),
            vmem_limit_bytes=32 * 1024 * 1024,
        ),
    )(h2, w3_tiled, b3)

    # Glue: (B, num_points*3) -> (B, num_points, 3), matching torch .view(-1,1024,3).
    return out.reshape(B, num_points, 3)


def init_params(key):
    """Deterministic, synthetic parameter init (PyTorch Linear shapes, f32)."""
    ks = jax.random.split(key, 6)

    def lin(kw, kb, fan_in, fan_out):
        bound = 1.0 / jnp.sqrt(fan_in)
        # stored as (in, out) so the kernel does x @ W + b
        w = jax.random.uniform(kw, (fan_in, fan_out), jnp.float32, -bound, bound)
        b = jax.random.uniform(kb, (1, fan_out), jnp.float32, -bound, bound)
        return w, b

    w1, b1 = lin(ks[0], ks[1], Z_DIM, H1)
    w2, b2 = lin(ks[2], ks[3], H1, H2)
    w3, b3 = lin(ks[4], ks[5], H2, OUT_DIM)
    return w1, b1, w2, b2, w3, b3


def prepare_params(w1, b1, w2, b2, w3, b3, tn=TN):
    """Pad W1 (100 -> 128 rows, zero-filled), cast weights to bf16, and
    column-tile W3 to (out_dim//tn, H2, tn) so each tile is contiguous in HBM."""
    w1p = jnp.pad(w1, ((0, K_PAD - w1.shape[0]), (0, 0))).astype(jnp.bfloat16)
    h2_dim, out_dim = w3.shape
    assert out_dim % tn == 0
    w3_tiled = (w3.reshape(h2_dim, out_dim // tn, tn)
                  .transpose(1, 0, 2)
                  .astype(jnp.bfloat16))                 # (n_tiles, H2, TN)
    return (w1p, b1,
            w2.astype(jnp.bfloat16), b2,
            w3_tiled, b3)


def reference_f32(z, w1, b1, w2, b2, w3, b3):
    """Full f32 reference using the ORIGINAL (unquantized) weights."""
    x = jnp.maximum(z @ w1 + b1, 0.0)
    x = jnp.maximum(x @ w2 + b2, 0.0)
    x = jnp.tanh(x @ w3 + b3)
    return x.reshape(-1, NUM_POINTS, 3)


if __name__ == "__main__":
    key = jax.random.PRNGKey(0)
    k_z, k_p = jax.random.split(key)

    B = 64  # matches the original script's z = torch.randn(64, z_dim)
    z = jax.random.normal(k_z, (B, Z_DIM), dtype=jnp.float32)

    raw = init_params(k_p)
    params = prepare_params(*raw)

    out = point_cloud_generator(z, *params)
    out = jax.block_until_ready(out)

    assert out.shape == (B, NUM_POINTS, 3), out.shape

    ref = reference_f32(z, *raw)
    # bf16 weights/activations (f32 accumulate) vs full-f32 reference; tanh
    # output is bounded, so an absolute tolerance is appropriate.
    max_err = float(jnp.max(jnp.abs(out - ref)))
    assert max_err < 2e-2, max_err

    print("KERNEL_OK")
</pallas_src>

<mosaic_0001>
module attributes {stable_mosaic.version = 11 : i64} {
  func.func @_h2_kernel(%arg0: i32, %arg1: memref<64x128xf32, #tpu.memory_space<vmem>>, %arg2: memref<128x512xbf16, #tpu.memory_space<vmem>>, %arg3: memref<1x512xf32, #tpu.memory_space<vmem>>, %arg4: memref<512x1024xbf16, #tpu.memory_space<vmem>>, %arg5: memref<1x1024xf32, #tpu.memory_space<vmem>>, %arg6: memref<64x1024xbf16, #tpu.memory_space<vmem>>) attributes {dimension_semantics = [#tpu.dimension_semantics<arbitrary>], iteration_bounds = array<i64: 1>, scalar_prefetch = 0 : i64, scratch_operands = 0 : i64, tpu.core_type = #tpu.core_type<tc>, window_params = [{pipeline_mode = #tpu.pipeline_mode<synchronous>, transform_indices = @transform_0, window_bounds = array<i64: 64, 128>}, {pipeline_mode = #tpu.pipeline_mode<synchronous>, transform_indices = @transform_1, window_bounds = array<i64: 128, 512>}, {pipeline_mode = #tpu.pipeline_mode<synchronous>, transform_indices = @transform_2, window_bounds = array<i64: 1, 512>}, {pipeline_mode = #tpu.pipeline_mode<synchronous>, transform_indices = @transform_3, window_bounds = array<i64: 512, 1024>}, {pipeline_mode = #tpu.pipeline_mode<synchronous>, transform_indices = @transform_4, window_bounds = array<i64: 1, 1024>}, {pipeline_mode = #tpu.pipeline_mode<synchronous>, transform_indices = @transform_5, window_bounds = array<i64: 64, 1024>}]} {
    %c0 = arith.constant 0 : index
    %c0_0 = arith.constant 0 : index
    %0 = vector.load %arg1[%c0, %c0_0] : memref<64x128xf32, #tpu.memory_space<vmem>>, vector<64x128xf32>
    %1 = arith.truncf %0 : vector<64x128xf32> to vector<64x128xbf16>
    %c0_1 = arith.constant 0 : index
    %c0_2 = arith.constant 0 : index
    %2 = vector.load %arg2[%c0_1, %c0_2] : memref<128x512xbf16, #tpu.memory_space<vmem>>, vector<128x512xbf16>
    %cst = arith.constant dense<0.000000e+00> : vector<64x512xf32>
    %3 = tpu.matmul %1, %2, %cst {dimension_numbers = #tpu.dot_dimension_numbers<[1], [0], [0], [1], [0, 0, 1, 1], [], []>} : vector<64x128xbf16>, vector<128x512xbf16>, vector<64x512xf32> -> vector<64x512xf32>
    %c0_3 = arith.constant 0 : index
    %c0_4 = arith.constant 0 : index
    %4 = vector.load %arg3[%c0_3, %c0_4] : memref<1x512xf32, #tpu.memory_space<vmem>>, vector<1x512xf32>
    %5 = vector.broadcast %4 : vector<1x512xf32> to vector<64x512xf32>
    %6 = arith.addf %3, %5 : vector<64x512xf32>
    %cst_5 = arith.constant 0.000000e+00 : f32
    %7 = vector.broadcast %cst_5 : f32 to vector<64x512xf32>
    %8 = arith.maximumf %6, %7 : vector<64x512xf32>
    %9 = arith.truncf %8 : vector<64x512xf32> to vector<64x512xbf16>
    %c0_6 = arith.constant 0 : index
    %c0_7 = arith.constant 0 : index
    %10 = vector.load %arg4[%c0_6, %c0_7] : memref<512x1024xbf16, #tpu.memory_space<vmem>>, vector<512x1024xbf16>
    %cst_8 = arith.constant dense<0.000000e+00> : vector<64x1024xf32>
    %11 = tpu.matmul %9, %10, %cst_8 {dimension_numbers = #tpu.dot_dimension_numbers<[1], [0], [0], [1], [0, 0, 1, 1], [], []>} : vector<64x512xbf16>, vector<512x1024xbf16>, vector<64x1024xf32> -> vector<64x1024xf32>
    %c0_9 = arith.constant 0 : index
    %c0_10 = arith.constant 0 : index
    %12 = vector.load %arg5[%c0_9, %c0_10] : memref<1x1024xf32, #tpu.memory_space<vmem>>, vector<1x1024xf32>
    %13 = vector.broadcast %12 : vector<1x1024xf32> to vector<64x1024xf32>
    %14 = arith.addf %11, %13 : vector<64x1024xf32>
    %cst_11 = arith.constant 0.000000e+00 : f32
    %15 = vector.broadcast %cst_11 : f32 to vector<64x1024xf32>
    %16 = arith.maximumf %14, %15 : vector<64x1024xf32>
    %17 = arith.truncf %16 : vector<64x1024xf32> to vector<64x1024xbf16>
    %c0_12 = arith.constant 0 : index
    %c0_13 = arith.constant 0 : index
    %18 = vector.load %arg6[%c0_12, %c0_13] : memref<64x1024xbf16, #tpu.memory_space<vmem>>, vector<64x1024xbf16>
    tpu.vector_store %arg6[%c0_12, %c0_13], %17 {strides = array<i32>} : memref<64x1024xbf16, #tpu.memory_space<vmem>>, vector<64x1024xbf16>,
    return
  }
  func.func @transform_0(%arg0: i32) -> (i32, i32) {
    %c0_i32 = arith.constant 0 : i32
    %c0_i32_0 = arith.constant 0 : i32
    %c0_i32_1 = arith.constant 0 : i32
    return %c0_i32, %c0_i32_0 : i32, i32
  }
  func.func @transform_1(%arg0: i32) -> (i32, i32) {
    %c0_i32 = arith.constant 0 : i32
    %c0_i32_0 = arith.constant 0 : i32
    %c0_i32_1 = arith.constant 0 : i32
    return %c0_i32, %c0_i32_0 : i32, i32
  }
  func.func @transform_2(%arg0: i32) -> (i32, i32) {
    %c0_i32 = arith.constant 0 : i32
    %c0_i32_0 = arith.constant 0 : i32
    %c0_i32_1 = arith.constant 0 : i32
    return %c0_i32, %c0_i32_0 : i32, i32
  }
  func.func @transform_3(%arg0: i32) -> (i32, i32) {
    %c0_i32 = arith.constant 0 : i32
    %c0_i32_0 = arith.constant 0 : i32
    %c0_i32_1 = arith.constant 0 : i32
    return %c0_i32, %c0_i32_0 : i32, i32
  }
  func.func @transform_4(%arg0: i32) -> (i32, i32) {
    %c0_i32 = arith.constant 0 : i32
    %c0_i32_0 = arith.constant 0 : i32
    %c0_i32_1 = arith.constant 0 : i32
    return %c0_i32, %c0_i32_0 : i32, i32
  }
  func.func @transform_5(%arg0: i32) -> (i32, i32) {
    %c0_i32 = arith.constant 0 : i32
    %c0_i32_0 = arith.constant 0 : i32
    %c0_i32_1 = arith.constant 0 : i32
    return %c0_i32, %c0_i32_0 : i32, i32
  }
}

module attributes {stable_mosaic.version = 11 : i64} {
  func.func @_fc3_kernel(%arg0: i32, %arg1: memref<64x1024xbf16, #tpu.memory_space<vmem>>, %arg2: memref<1x1024x768xbf16, #tpu.memory_space<vmem>>, %arg3: memref<1x768xf32, #tpu.memory_space<vmem>>, %arg4: memref<64x768xf32, #tpu.memory_space<vmem>>) attributes {dimension_semantics = [#tpu.dimension_semantics<parallel>], iteration_bounds = array<i64: 4>, scalar_prefetch = 0 : i64, scratch_operands = 0 : i64, tpu.core_type = #tpu.core_type<tc>, window_params = [{pipeline_mode = #tpu.pipeline_mode<synchronous>, transform_indices = @transform_0, window_bounds = array<i64: 64, 1024>}, {transform_indices = @transform_1, window_bounds = array<i64: 1, 1024, 768>}, {transform_indices = @transform_2, window_bounds = array<i64: 1, 768>}, {transform_indices = @transform_3, window_bounds = array<i64: 64, 768>}]} {
    %c0 = arith.constant 0 : index
    %c0_0 = arith.constant 0 : index
    %0 = vector.load %arg1[%c0, %c0_0] : memref<64x1024xbf16, #tpu.memory_space<vmem>>, vector<64x1024xbf16>
    %c0_1 = arith.constant 0 : index
    %c0_2 = arith.constant 0 : index
    %c0_3 = arith.constant 0 : index
    %1 = vector.load %arg2[%c0_1, %c0_2, %c0_3] : memref<1x1024x768xbf16, #tpu.memory_space<vmem>>, vector<1x1024x768xbf16>
    %2 = vector.shape_cast %1 : vector<1x1024x768xbf16> to vector<1024x768xbf16>
    %cst = arith.constant dense<0.000000e+00> : vector<64x768xf32>
    %3 = tpu.matmul %0, %2, %cst {dimension_numbers = #tpu.dot_dimension_numbers<[1], [0], [0], [1], [0, 0, 1, 1], [], []>} : vector<64x1024xbf16>, vector<1024x768xbf16>, vector<64x768xf32> -> vector<64x768xf32>
    %c0_4 = arith.constant 0 : index
    %c0_5 = arith.constant 0 : index
    %4 = vector.load %arg3[%c0_4, %c0_5] : memref<1x768xf32, #tpu.memory_space<vmem>>, vector<1x768xf32>
    %5 = vector.broadcast %4 : vector<1x768xf32> to vector<64x768xf32>
    %6 = arith.addf %3, %5 : vector<64x768xf32>
    %7 = math.tanh %6 : vector<64x768xf32>
    %c0_6 = arith.constant 0 : index
    %c0_7 = arith.constant 0 : index
    %8 = vector.load %arg4[%c0_6, %c0_7] : memref<64x768xf32, #tpu.memory_space<vmem>>, vector<64x768xf32>
    tpu.vector_store %arg4[%c0_6, %c0_7], %7 {strides = array<i32>} : memref<64x768xf32, #tpu.memory_space<vmem>>, vector<64x768xf32>,
    return
  }
  func.func @transform_0(%arg0: i32) -> (i32, i32) {
    %c0_i32 = arith.constant 0 : i32
    %c0_i32_0 = arith.constant 0 : i32
    %c0_i32_1 = arith.constant 0 : i32
    return %c0_i32, %c0_i32_0 : i32, i32
  }
  func.func @transform_1(%arg0: i32) -> (i32, i32, i32) {
    %c0_i32 = arith.constant 0 : i32
    %c0_i32_0 = arith.constant 0 : i32
    %c0_i32_1 = arith.constant 0 : i32
    return %arg0, %c0_i32, %c0_i32_0 : i32, i32, i32
  }
  func.func @transform_2(%arg0: i32) -> (i32, i32) {
    %c0_i32 = arith.constant 0 : i32
    %c0_i32_0 = arith.constant 0 : i32
    return %c0_i32, %arg0 : i32, i32
  }
  func.func @transform_3(%arg0: i32) -> (i32, i32) {
    %c0_i32 = arith.constant 0 : i32
    %c0_i32_0 = arith.constant 0 : i32
    return %c0_i32, %arg0 : i32, i32
  }
}

</mosaic_0001>

<llo_original>
// kernel: point_cloud_generator.2
$region0: #{point_cloud_generator.2}
  #allocation0 [shape = 'u32[]', space=smem, size = 0x4, offset = 0x4, fixed_abs, tag = 'smem constant byte address 0x4 - core index']
  #allocation1 [shape = 'u32[144,128]{1,0:T(1,128)}', space=vmem, size = 0x12000, scoped, tag = 'internal scratch']
  %s0 = inlined_call_operand.vmem [shape: f32[64,128], index: 0, kind: input, shape index: {}]
  %s1 = inlined_call_operand.hbm [shape: bf16[128,512], index: 1, kind: input, shape index: {}]
  %s2 = inlined_call_operand.hbm [shape: f32[1,512], index: 2, kind: input, shape index: {}]
  %s3 = inlined_call_operand.hbm [shape: bf16[512,1024], index: 3, kind: input, shape index: {}]
  %s4 = inlined_call_operand.hbm [shape: f32[1,1024], index: 4, kind: input, shape index: {}]
  %s5 = inlined_call_operand.vmem [shape: bf16[64,1024], index: 5, kind: output, shape index: {}]
  %s6 = sld [smem:[#allocation0]]
  $region46: #{point_cloud_generator.2} parent=0
    _
  %s8 = ssub.s32 1, %s6
  %s9 = scalar_select 0, %s8, %s6
  $region1: #{point_cloud_generator.2} parent=0
    #allocation2 [shape = 'u8[131072]{0}', space=vmem, size = 0x20000, scoped, tag = 'input window, operand 1, single buffered']
    #allocation3 [shape = 's32[1]{0}', space=sflag, size = 0x4, scoped, tag = 'scoped memory for point_cloud_generator.2']
    #allocation4 [shape = 'u8[2048]{0}', space=vmem, size = 0x800, scoped, tag = 'input window, operand 2, single buffered']
    #allocation5 [shape = 's32[1]{0}', space=sflag, size = 0x4, scoped, tag = 'scoped memory for point_cloud_generator.2']
    #allocation6 [shape = 'u8[1048576]{0}', space=vmem, size = 0x100000, scoped, tag = 'input window, operand 3, single buffered']
    #allocation7 [shape = 'u8[4096]{0}', space=vmem, size = 0x1000, scoped, tag = 'input window, operand 4, single buffered']
    #allocation8 [shape = 's32[1]{0}', space=sflag, size = 0x4, scoped, tag = 'scoped memory for point_cloud_generator.2']
    %10 = vsyncpa [#allocation3], 0
    %11 = vsyncpa [#allocation5], 0
    %12 = vsyncpa [#allocation8], 0
    // Predicated region
    $region2: #{point_cloud_generator.2} parent=1 // pred_check
      _
    $region3: #{point_cloud_generator.2} parent=1 // pred_check_branch
      %14 = sbr.rel (0) target = $region5
    $region4: #{point_cloud_generator.2} parent=1 // pred_region
      _
    $region5: #{point_cloud_generator.2} parent=1 // pred_fallthru
      _
    // Predicated region
    $region6: #{point_cloud_generator.2} parent=1 // pred_check
      _
    $region7: #{point_cloud_generator.2} parent=1 // pred_check_branch
      %16 = sbr.rel (0) target = $region9
    $region8: #{point_cloud_generator.2} parent=1 // pred_region
      %s18 = ssub.s32 4096, 4096
      %19 = vsyncadd [#allocation3], %s18
      %s20 = sshll.u32 [#allocation2], 4
      %s21 = int_to_ptr.vmem [resolvable:$true] %s20
      %26 = dma.hbm_to_vmem [thread:$0]  %s1, 4096, %s21, [#allocation3], 256, 256, 16
    $region9: #{point_cloud_generator.2} parent=1 // pred_fallthru
      _
    // Predicated region
    $region10: #{point_cloud_generator.2} parent=1 // pred_check
      _
    $region11: #{point_cloud_generator.2} parent=1 // pred_check_branch
      %28 = sbr.rel (0) target = $region13
    $region12: #{point_cloud_generator.2} parent=1 // pred_region
      %s30 = ssub.s32 64, 64
      %31 = vsyncadd [#allocation5], %s30
      %s33 = sshll.u32 [#allocation4], 4
      %s34 = int_to_ptr.vmem [resolvable:$true] %s33
      %36 = dma.hbm_to_vmem [thread:$0]  %s2, 64, %s34, [#allocation5]
    $region13: #{point_cloud_generator.2} parent=1 // pred_fallthru
      _
    // Predicated region
    $region14: #{point_cloud_generator.2} parent=1 // pred_check
      _
    $region15: #{point_cloud_generator.2} parent=1 // pred_check_branch
      %38 = sbr.rel (0) target = $region17
    $region16: #{point_cloud_generator.2} parent=1 // pred_region
      %s40 = ssub.s32 32768, 32768
      %41 = vsyncadd [#allocation5], %s40
      %s42 = sshll.u32 [#allocation6], 4
      %s43 = int_to_ptr.vmem [resolvable:$true] %s42
      %48 = dma.hbm_to_vmem [thread:$0]  %s3, 32768, %s43, [#allocation5], 512, 512, 32
    $region17: #{point_cloud_generator.2} parent=1 // pred_fallthru
      _
    // Predicated region
    $region18: #{point_cloud_generator.2} parent=1 // pred_check
      _
    $region19: #{point_cloud_generator.2} parent=1 // pred_check_branch
      %50 = sbr.rel (0) target = $region21
    $region20: #{point_cloud_generator.2} parent=1 // pred_region
      %s52 = ssub.s32 128, 128
      %53 = vsyncadd [#allocation8], %s52
      %s55 = sshll.u32 [#allocation7], 4
      %s56 = int_to_ptr.vmem [resolvable:$true] %s55
      %58 = dma.hbm_to_vmem [thread:$0]  %s4, 128, %s56, [#allocation8]
    $region21: #{point_cloud_generator.2} parent=1 // pred_fallthru
      _
    // Predicated region
    $region22: #{point_cloud_generator.2} parent=1 // pred_check
      _
    $region23: #{point_cloud_generator.2} parent=1 // pred_check_branch
      %60 = sbr.rel (0) target = $region25
    $region24: #{point_cloud_generator.2} parent=1 // pred_region
      %61 = dma.done [#allocation3], 4096
    $region25: #{point_cloud_generator.2} parent=1 // pred_fallthru
      _
    // Predicated region
    $region26: #{point_cloud_generator.2} parent=1 // pred_check
      _
    $region27: #{point_cloud_generator.2} parent=1 // pred_check_branch
      %63 = sbr.rel (0) target = $region29
    $region28: #{point_cloud_generator.2} parent=1 // pred_region
      %64 = dma.done [#allocation5], 64
    $region29: #{point_cloud_generator.2} parent=1 // pred_fallthru
      _
    // Predicated region
    $region30: #{point_cloud_generator.2} parent=1 // pred_check
      _
    $region31: #{point_cloud_generator.2} parent=1 // pred_check_branch
      %66 = sbr.rel (0) target = $region33
    $region32: #{point_cloud_generator.2} parent=1 // pred_region
      %67 = dma.done [#allocation5], 32768
    $region33: #{point_cloud_generator.2} parent=1 // pred_fallthru
      _
    // Predicated region
    $region34: #{point_cloud_generator.2} parent=1 // pred_check
      _
    $region35: #{point_cloud_generator.2} parent=1 // pred_check_branch
      %69 = sbr.rel (0) target = $region37
    $region36: #{point_cloud_generator.2} parent=1 // pred_region
      %70 = dma.done [#allocation8], 128
    $region37: #{point_cloud_generator.2} parent=1 // pred_fallthru
      _
    %v72 = vld [vmem:[%s0] sm:$0xff]
    %v73 = vld [vmem:[%s0 + $0x8] sm:$0xff]
    %v74 = vld [vmem:[%s0 + $0x10] sm:$0xff]
    %v75 = vld [vmem:[%s0 + $0x18] sm:$0xff]
    %v76 = vld [vmem:[%s0 + $0x20] sm:$0xff]
    %v77 = vld [vmem:[%s0 + $0x28] sm:$0xff]
    %v78 = vld [vmem:[%s0 + $0x30] sm:$0xff]
    %v79 = vld [vmem:[%s0 + $0x38] sm:$0xff]
    %v80 = vpack.c.bf16 %v73, %v72
    %v81 = vpack.c.bf16 %v75, %v74
    %v82 = vpack.c.bf16 %v77, %v76
    %v83 = vpack.c.bf16 %v79, %v78
    %v84 = vld [vmem:[#allocation2] sm:$0xff]
    %v85 = vld [vmem:[#allocation2 + $0x8] sm:$0xff]
    %v86 = vld [vmem:[#allocation2 + $0x10] sm:$0xff]
    %v87 = vld [vmem:[#allocation2 + $0x18] sm:$0xff]
    %v88 = vld [vmem:[#allocation2 + $0x20] sm:$0xff]
    %v89 = vld [vmem:[#allocation2 + $0x28] sm:$0xff]
    %v90 = vld [vmem:[#allocation2 + $0x30] sm:$0xff]
    %v91 = vld [vmem:[#allocation2 + $0x38] sm:$0xff]
    %v92 = vld [vmem:[#allocation2 + $0x40] sm:$0xff]
    %v93 = vld [vmem:[#allocation2 + $0x48] sm:$0xff]
    %v94 = vld [vmem:[#allocation2 + $0x50] sm:$0xff]
    %v95 = vld [vmem:[#allocation2 + $0x58] sm:$0xff]
    %v96 = vld [vmem:[#allocation2 + $0x60] sm:$0xff]
    %v97 = vld [vmem:[#allocation2 + $0x68] sm:$0xff]
    %v98 = vld [vmem:[#allocation2 + $0x70] sm:$0xff]
    %v99 = vld [vmem:[#allocation2 + $0x78] sm:$0xff]
    %v100 = vld [vmem:[#allocation2 + $0x80] sm:$0xff]
    %v101 = vld [vmem:[#allocation2 + $0x88] sm:$0xff]
    %v102 = vld [vmem:[#allocation2 + $0x90] sm:$0xff]
    %v103 = vld [vmem:[#allocation2 + $0x98] sm:$0xff]
    %v104 = vld [vmem:[#allocation2 + $0xa0] sm:$0xff]
    %v105 = vld [vmem:[#allocation2 + $0xa8] sm:$0xff]
    %v106 = vld [vmem:[#allocation2 + $0xb0] sm:$0xff]
    %v107 = vld [vmem:[#allocation2 + $0xb8] sm:$0xff]
    %v108 = vld [vmem:[#allocation2 + $0xc0] sm:$0xff]
    %v109 = vld [vmem:[#allocation2 + $0xc8] sm:$0xff]
    %v110 = vld [vmem:[#allocation2 + $0xd0] sm:$0xff]
    %v111 = vld [vmem:[#allocation2 + $0xd8] sm:$0xff]
    %v112 = vld [vmem:[#allocation2 + $0xe0] sm:$0xff]
    %v113 = vld [vmem:[#allocation2 + $0xe8] sm:$0xff]
    %v114 = vld [vmem:[#allocation2 + $0xf0] sm:$0xff]
    %v115 = vld [vmem:[#allocation2 + $0xf8] sm:$0xff]
    %v116 = vld [vmem:[#allocation4] sm:$0xf]
    %v118 = vlaneseq
    %v119 = vshrl.u32 %v118, 7
    %v120 = vsub.s32 0, %v119
    %v121 = vrot.slane %v116, %v120
    %v122 = vlaneseq
    %v123 = vshrl.u32 %v122, 7
    %v124 = vsub.s32 1, %v123
    %v125 = vrot.slane %v116, %v124
    %v126 = vlaneseq
    %v127 = vshrl.u32 %v126, 7
    %v128 = vsub.s32 2, %v127
    %v129 = vrot.slane %v116, %v128
    %v130 = vlaneseq
    %v131 = vshrl.u32 %v130, 7
    %v132 = vsub.s32 3, %v131
    %v133 = vrot.slane %v116, %v132
    %v170 = vunpack.c.l.b16 %v84
    %v171 = vunpack.c.h.b16 %v84
    %v172 = vunpack.c.l.b16 %v85
    %v173 = vunpack.c.h.b16 %v85
    %v174 = vunpack.c.l.b16 %v86
    %v175 = vunpack.c.h.b16 %v86
    %v176 = vunpack.c.l.b16 %v87
    %v177 = vunpack.c.h.b16 %v87
    %v178 = vunpack.c.l.b16 %v88
    %v179 = vunpack.c.h.b16 %v88
    %v180 = vunpack.c.l.b16 %v89
    %v181 = vunpack.c.h.b16 %v89
    %v182 = vunpack.c.l.b16 %v90
    %v183 = vunpack.c.h.b16 %v90
    %v184 = vunpack.c.l.b16 %v91
    %v185 = vunpack.c.h.b16 %v91
    %v186 = vunpack.c.l.b16 %v92
    %v187 = vunpack.c.h.b16 %v92
    %v188 = vunpack.c.l.b16 %v93
    %v189 = vunpack.c.h.b16 %v93
    %v190 = vunpack.c.l.b16 %v94
    %v191 = vunpack.c.h.b16 %v94
    %v192 = vunpack.c.l.b16 %v95
    %v193 = vunpack.c.h.b16 %v95
    %v194 = vunpack.c.l.b16 %v96
    %v195 = vunpack.c.h.b16 %v96
    %v196 = vunpack.c.l.b16 %v97
    %v197 = vunpack.c.h.b16 %v97
    %v198 = vunpack.c.l.b16 %v98
    %v199 = vunpack.c.h.b16 %v98
    %v200 = vunpack.c.l.b16 %v99
    %v201 = vunpack.c.h.b16 %v99
    %v202 = vunpack.c.l.b16 %v100
    %v203 = vunpack.c.h.b16 %v100
    %v204 = vunpack.c.l.b16 %v101
    %v205 = vunpack.c.h.b16 %v101
    %v206 = vunpack.c.l.b16 %v102
    %v207 = vunpack.c.h.b16 %v102
    %v208 = vunpack.c.l.b16 %v103
    %v209 = vunpack.c.h.b16 %v103
    %v210 = vunpack.c.l.b16 %v104
    %v211 = vunpack.c.h.b16 %v104
    %v212 = vunpack.c.l.b16 %v105
    %v213 = vunpack.c.h.b16 %v105
    %v214 = vunpack.c.l.b16 %v106
    %v215 = vunpack.c.h.b16 %v106
    %v216 = vunpack.c.l.b16 %v107
    %v217 = vunpack.c.h.b16 %v107
    %v218 = vunpack.c.l.b16 %v108
    %v219 = vunpack.c.h.b16 %v108
    %v220 = vunpack.c.l.b16 %v109
    %v221 = vunpack.c.h.b16 %v109
    %v222 = vunpack.c.l.b16 %v110
    %v223 = vunpack.c.h.b16 %v110
    %v224 = vunpack.c.l.b16 %v111
    %v225 = vunpack.c.h.b16 %v111
    %v226 = vunpack.c.l.b16 %v112
    %v227 = vunpack.c.h.b16 %v112
    %v228 = vunpack.c.l.b16 %v113
    %v229 = vunpack.c.h.b16 %v113
    %v230 = vunpack.c.l.b16 %v114
    %v231 = vunpack.c.h.b16 %v114
    %v232 = vunpack.c.l.b16 %v115
    %v233 = vunpack.c.h.b16 %v115
    %v234 = vpack.c.b16 %v174, %v170
    %v235 = vpack.c.b16 %v175, %v171
    %v236 = vpack.c.b16 %v176, %v172
    %v237 = vpack.c.b16 %v177, %v173
    %v238 = vpack.c.b16 %v182, %v178
    %v239 = vpack.c.b16 %v183, %v179
    %v240 = vpack.c.b16 %v184, %v180
    %v241 = vpack.c.b16 %v185, %v181
    %v242 = vpack.c.b16 %v190, %v186
    %v243 = vpack.c.b16 %v191, %v187
    %v244 = vpack.c.b16 %v192, %v188
    %v245 = vpack.c.b16 %v193, %v189
    %v246 = vpack.c.b16 %v198, %v194
    %v247 = vpack.c.b16 %v199, %v195
    %v248 = vpack.c.b16 %v200, %v196
    %v249 = vpack.c.b16 %v201, %v197
    %v250 = vpack.c.b16 %v206, %v202
    %v251 = vpack.c.b16 %v207, %v203
    %v252 = vpack.c.b16 %v208, %v204
    %v253 = vpack.c.b16 %v209, %v205
    %v254 = vpack.c.b16 %v214, %v210
    %v255 = vpack.c.b16 %v215, %v211
    %v256 = vpack.c.b16 %v216, %v212
    %v257 = vpack.c.b16 %v217, %v213
    %v258 = vpack.c.b16 %v222, %v218
    %v259 = vpack.c.b16 %v223, %v219
    %v260 = vpack.c.b16 %v224, %v220
    %v261 = vpack.c.b16 %v225, %v221
    %v262 = vpack.c.b16 %v230, %v226
    %v263 = vpack.c.b16 %v231, %v227
    %v264 = vpack.c.b16 %v232, %v228
    %v265 = vpack.c.b16 %v233, %v229
    %298 = vmatprep.subr.bf16.mxu0 %v235
    %299 = vmatpush1.bf16.msra.mxu0 %v234
    %300 = vmatprep.subr.bf16.mxu0 %v239
    %301 = vmatpush1.bf16.msra.mxu0 %v238
    %302 = vmatprep.subr.bf16.mxu0 %v243
    %303 = vmatpush1.bf16.msra.mxu0 %v242
    %304 = vmatprep.subr.bf16.mxu0 %v247
    %305 = vmatpush1.bf16.msra.mxu0 %v246
    %306 = vmatprep.subr.bf16.mxu0 %v251
    %307 = vmatpush1.bf16.msra.mxu0 %v250
    %308 = vmatprep.subr.bf16.mxu0 %v255
    %309 = vmatpush1.bf16.msra.mxu0 %v254
    %310 = vmatprep.subr.bf16.mxu0 %v259
    %311 = vmatpush1.bf16.msra.mxu0 %v258
    %312 = vmatprep.subr.bf16.mxu0 %v263
    %313 = vmatpush1.bf16.msra.mxu0 %v262
    %314 = vmatprep.subr.bf16.mxu0 0
    %315 = vmatpush1.bf16.msra.mxu0 0
    %316 = vmatprep.subr.bf16.mxu0 0
    %317 = vmatpush1.bf16.msra.mxu0 0
    %318 = vmatprep.subr.bf16.mxu0 0
    %319 = vmatpush1.bf16.msra.mxu0 0
    %320 = vmatprep.subr.bf16.mxu0 0
    %321 = vmatpush1.bf16.msra.mxu0 0
    %322 = vmatprep.subr.bf16.mxu0 0
    %323 = vmatpush1.bf16.msra.mxu0 0
    %324 = vmatprep.subr.bf16.mxu0 0
    %325 = vmatpush1.bf16.msra.mxu0 0
    %326 = vmatprep.subr.bf16.mxu0 0
    %327 = vmatpush1.bf16.msra.mxu0 0
    %328 = vmatprep.subr.bf16.mxu0 0
    %329 = vmatpush1.bf16.msra.mxu0 0
    %330 = vmatprep.mubr.bf16.mxu0 0
    %331 = vmatmul.mubr.bf16.gmra.mrb[0].mxu0 %v80
    %v332 = vpop.f32.mrb[0].mxu0
    %v333 = vadd.f32 %v121, %v332
    %v334 = vpop.f32.mrb[0].mxu0
    %v335 = vadd.f32 %v125, %v334
    %v336 = vpop.f32.mrb[0].mxu0
    %v337 = vadd.f32 %v121, %v336
    %v338 = vpop.f32.mrb[0].mxu0
    %v339 = vadd.f32 %v125, %v338
    %340 = vmatprep.mubr.bf16.mxu0 0
    %341 = vmatmul.mubr.bf16.gmra.mrb[0].mxu0 %v81
    %v342 = vpop.f32.mrb[0].mxu0
    %v343 = vadd.f32 %v121, %v342
    %v344 = vpop.f32.mrb[0].mxu0
    %v345 = vadd.f32 %v125, %v344
    %v346 = vpop.f32.mrb[0].mxu0
    %v347 = vadd.f32 %v121, %v346
    %v348 = vpop.f32.mrb[0].mxu0
    %v349 = vadd.f32 %v125, %v348
    %350 = vmatprep.mubr.bf16.mxu0 0
    %351 = vmatmul.mubr.bf16.gmra.mrb[0].mxu0 %v82
    %v352 = vpop.f32.mrb[0].mxu0
    %v353 = vadd.f32 %v121, %v352
    %v354 = vpop.f32.mrb[0].mxu0
    %v355 = vadd.f32 %v125, %v354
    %v356 = vpop.f32.mrb[0].mxu0
    %v357 = vadd.f32 %v121, %v356
    %v358 = vpop.f32.mrb[0].mxu0
    %v359 = vadd.f32 %v125, %v358
    %360 = vmatprep.mubr.bf16.mxu0 0
    %361 = vmatmul.mubr.bf16.gmra.mrb[0].mxu0 %v83
    %v362 = vpop.f32.mrb[0].mxu0
    %v363 = vadd.f32 %v121, %v362
    %v364 = vpop.f32.mrb[0].mxu0
    %v365 = vadd.f32 %v125, %v364
    %v366 = vpop.f32.mrb[0].mxu0
    %v367 = vadd.f32 %v121, %v366
    %v368 = vpop.f32.mrb[0].mxu0
    %v369 = vadd.f32 %v125, %v368
    %370 = vdwg.mxu0
    %371 = vmatprep.subr.bf16.mxu0 %v237
    %372 = vmatpush1.bf16.msra.mxu0 %v236
    %373 = vmatprep.subr.bf16.mxu0 %v241
    %374 = vmatpush1.bf16.msra.mxu0 %v240
    %375 = vmatprep.subr.bf16.mxu0 %v245
    %376 = vmatpush1.bf16.msra.mxu0 %v244
    %377 = vmatprep.subr.bf16.mxu0 %v249
    %378 = vmatpush1.bf16.msra.mxu0 %v248
    %379 = vmatprep.subr.bf16.mxu0 %v253
    %380 = vmatpush1.bf16.msra.mxu0 %v252
    %381 = vmatprep.subr.bf16.mxu0 %v257
    %382 = vmatpush1.bf16.msra.mxu0 %v256
    %383 = vmatprep.subr.bf16.mxu0 %v261
    %384 = vmatpush1.bf16.msra.mxu0 %v260
    %385 = vmatprep.subr.bf16.mxu0 %v265
    %386 = vmatpush1.bf16.msra.mxu0 %v264
    %387 = vmatprep.subr.bf16.mxu0 0
    %388 = vmatpush1.bf16.msra.mxu0 0
    %389 = vmatprep.subr.bf16.mxu0 0
    %390 = vmatpush1.bf16.msra.mxu0 0
    %391 = vmatprep.subr.bf16.mxu0 0
    %392 = vmatpush1.bf16.msra.mxu0 0
    %393 = vmatprep.subr.bf16.mxu0 0
    %394 = vmatpush1.bf16.msra.mxu0 0
    %395 = vmatprep.subr.bf16.mxu0 0
    %396 = vmatpush1.bf16.msra.mxu0 0
    %397 = vmatprep.subr.bf16.mxu0 0
    %398 = vmatpush1.bf16.msra.mxu0 0
    %399 = vmatprep.subr.bf16.mxu0 0
    %400 = vmatpush1.bf16.msra.mxu0 0
    %401 = vmatprep.subr.bf16.mxu0 0
    %402 = vmatpush1.bf16.msra.mxu0 0
    %403 = vmatprep.mubr.bf16.mxu0 0
    %404 = vmatmul.mubr.bf16.gmra.mrb[0].mxu0 %v80
    %v405 = vpop.f32.mrb[0].mxu0
    %v406 = vadd.f32 %v129, %v405
    %v407 = vpop.f32.mrb[0].mxu0
    %v408 = vadd.f32 %v133, %v407
    %v409 = vpop.f32.mrb[0].mxu0
    %v410 = vadd.f32 %v129, %v409
    %v411 = vpop.f32.mrb[0].mxu0
    %v412 = vadd.f32 %v133, %v411
    %413 = vmatprep.mubr.bf16.mxu0 0
    %414 = vmatmul.mubr.bf16.gmra.mrb[0].mxu0 %v81
    %v415 = vpop.f32.mrb[0].mxu0
    %v416 = vadd.f32 %v129, %v415
    %v417 = vpop.f32.mrb[0].mxu0
    %v418 = vadd.f32 %v133, %v417
    %v419 = vpop.f32.mrb[0].mxu0
    %v420 = vadd.f32 %v129, %v419
    %v421 = vpop.f32.mrb[0].mxu0
    %v422 = vadd.f32 %v133, %v421
    %423 = vmatprep.mubr.bf16.mxu0 0
    %424 = vmatmul.mubr.bf16.gmra.mrb[0].mxu0 %v82
    %v425 = vpop.f32.mrb[0].mxu0
    %v426 = vadd.f32 %v129, %v425
    %v427 = vpop.f32.mrb[0].mxu0
    %v428 = vadd.f32 %v133, %v427
    %v429 = vpop.f32.mrb[0].mxu0
    %v430 = vadd.f32 %v129, %v429
    %v431 = vpop.f32.mrb[0].mxu0
    %v432 = vadd.f32 %v133, %v431
    %433 = vmatprep.mubr.bf16.mxu0 0
    %434 = vmatmul.mubr.bf16.gmra.mrb[0].mxu0 %v83
    %v435 = vpop.f32.mrb[0].mxu0
    %v436 = vadd.f32 %v129, %v435
    %v437 = vpop.f32.mrb[0].mxu0
    %v438 = vadd.f32 %v133, %v437
    %v439 = vpop.f32.mrb[0].mxu0
    %v440 = vadd.f32 %v129, %v439
    %v441 = vpop.f32.mrb[0].mxu0
    %v442 = vadd.f32 %v133, %v441
    %443 = vdwg.mxu0
    %v444 = vmax.f32 %v333, 0.0
    %v445 = vmax.f32 %v335, 0.0
    %v446 = vmax.f32 %v406, 0.0
    %v447 = vmax.f32 %v408, 0.0
    %v448 = vmax.f32 %v337, 0.0
    %v449 = vmax.f32 %v339, 0.0
    %v450 = vmax.f32 %v410, 0.0
    %v451 = vmax.f32 %v412, 0.0
    %v452 = vmax.f32 %v343, 0.0
    %v453 = vmax.f32 %v345, 0.0
    %v454 = vmax.f32 %v416, 0.0
    %v455 = vmax.f32 %v418, 0.0
    %v456 = vmax.f32 %v347, 0.0
    %v457 = vmax.f32 %v349, 0.0
    %v458 = vmax.f32 %v420, 0.0
    %v459 = vmax.f32 %v422, 0.0
    %v460 = vmax.f32 %v353, 0.0
    %v461 = vmax.f32 %v355, 0.0
    %v462 = vmax.f32 %v426, 0.0
    %v463 = vmax.f32 %v428, 0.0
    %v464 = vmax.f32 %v357, 0.0
    %v465 = vmax.f32 %v359, 0.0
    %v466 = vmax.f32 %v430, 0.0
    %v467 = vmax.f32 %v432, 0.0
    %v468 = vmax.f32 %v363, 0.0
    %v469 = vmax.f32 %v365, 0.0
    %v470 = vmax.f32 %v436, 0.0
    %v471 = vmax.f32 %v438, 0.0
    %v472 = vmax.f32 %v367, 0.0
    %v473 = vmax.f32 %v369, 0.0
    %v474 = vmax.f32 %v440, 0.0
    %v475 = vmax.f32 %v442, 0.0
    %v476 = vpack.c.bf16 %v448, %v444
    %v477 = vpack.c.bf16 %v449, %v445
    %v478 = vpack.c.bf16 %v450, %v446
    %v479 = vpack.c.bf16 %v451, %v447
    %v480 = vpack.c.bf16 %v456, %v452
    %v481 = vpack.c.bf16 %v457, %v453
    %v482 = vpack.c.bf16 %v458, %v454
    %v483 = vpack.c.bf16 %v459, %v455
    %v484 = vpack.c.bf16 %v464, %v460
    %v485 = vpack.c.bf16 %v465, %v461
    %v486 = vpack.c.bf16 %v466, %v462
    %v487 = vpack.c.bf16 %v467, %v463
    %v488 = vpack.c.bf16 %v472, %v468
    %v489 = vpack.c.bf16 %v473, %v469
    %v490 = vpack.c.bf16 %v474, %v470
    %v491 = vpack.c.bf16 %v475, %v471
    %v492 = vld [vmem:[#allocation6] sm:$0xff]
    %v493 = vld [vmem:[#allocation6 + $0x8] sm:$0xff]
    %v494 = vld [vmem:[#allocation6 + $0x10] sm:$0xff]
    %v495 = vld [vmem:[#allocation6 + $0x18] sm:$0xff]
    %v496 = vld [vmem:[#allocation6 + $0x20] sm:$0xff]
    %v497 = vld [vmem:[#allocation6 + $0x28] sm:$0xff]
    %v498 = vld [vmem:[#allocation6 + $0x30] sm:$0xff]
    %v499 = vld [vmem:[#allocation6 + $0x38] sm:$0xff]
    %v500 = vld [vmem:[#allocation6 + $0x40] sm:$0xff]
    %v501 = vld [vmem:[#allocation6 + $0x48] sm:$0xff]
    %v502 = vld [vmem:[#allocation6 + $0x50] sm:$0xff]
    %v503 = vld [vmem:[#allocation6 + $0x58] sm:$0xff]
    %v504 = vld [vmem:[#allocation6 + $0x60] sm:$0xff]
    %v505 = vld [vmem:[#allocation6 + $0x68] sm:$0xff]
    %v506 = vld [vmem:[#allocation6 + $0x70] sm:$0xff]
    %v507 = vld [vmem:[#allocation6 + $0x78] sm:$0xff]
    %v508 = vld [vmem:[#allocation6 + $0x80] sm:$0xff]
    %v509 = vld [vmem:[#allocation6 + $0x88] sm:$0xff]
    %v510 = vld [vmem:[#allocation6 + $0x90] sm:$0xff]
    %v511 = vld [vmem:[#allocation6 + $0x98] sm:$0xff]
    %v512 = vld [vmem:[#allocation6 + $0xa0] sm:$0xff]
    %v513 = vld [vmem:[#allocation6 + $0xa8] sm:$0xff]
    %v514 = vld [vmem:[#allocation6 + $0xb0] sm:$0xff]
    %v515 = vld [vmem:[#allocation6 + $0xb8] sm:$0xff]
    %v516 = vld [vmem:[#allocation6 + $0xc0] sm:$0xff]
    %v517 = vld [vmem:[#allocation6 + $0xc8] sm:$0xff]
    %v518 = vld [vmem:[#allocation6 + $0xd0] sm:$0xff]
    %v519 = vld [vmem:[#allocation6 + $0xd8] sm:$0xff]
    %v520 = vld [vmem:[#allocation6 + $0xe0] sm:$0xff]
    %v521 = vld [vmem:[#allocation6 + $0xe8] sm:$0xff]
    %v522 = vld [vmem:[#allocation6 + $0xf0] sm:$0xff]
    %v523 = vld [vmem:[#allocation6 + $0xf8] sm:$0xff]
    %v524 = vld [vmem:[#allocation6 + $0x100] sm:$0xff]
    %v525 = vld [vmem:[#allocation6 + $0x108] sm:$0xff]
    %v526 = vld [vmem:[#allocation6 + $0x110] sm:$0xff]
    %v527 = vld [vmem:[#allocation6 + $0x118] sm:$0xff]
    %v528 = vld [vmem:[#allocation6 + $0x120] sm:$0xff]
    %v529 = vld [vmem:[#allocation6 + $0x128] sm:$0xff]
    %v530 = vld [vmem:[#allocation6 + $0x130] sm:$0xff]
    %v531 = vld [vmem:[#allocation6 + $0x138] sm:$0xff]
    %v532 = vld [vmem:[#allocation6 + $0x140] sm:$0xff]
    %v533 = vld [vmem:[#allocation6 + $0x148] sm:$0xff]
    %v534 = vld [vmem:[#allocation6 + $0x150] sm:$0xff]
    %v535 = vld [vmem:[#allocation6 + $0x158] sm:$0xff]
    %v536 = vld [vmem:[#allocation6 + $0x160] sm:$0xff]
    %v537 = vld [vmem:[#allocation6 + $0x168] sm:$0xff]
    %v538 = vld [vmem:[#allocation6 + $0x170] sm:$0xff]
    %v539 = vld [vmem:[#allocation6 + $0x178] sm:$0xff]
    %v540 = vld [vmem:[#allocation6 + $0x180] sm:$0xff]
    %v541 = vld [vmem:[#allocation6 + $0x188] sm:$0xff]
    %v542 = vld [vmem:[#allocation6 + $0x190] sm:$0xff]
    %v543 = vld [vmem:[#allocation6 + $0x198] sm:$0xff]
    %v544 = vld [vmem:[#allocation6 + $0x1a0] sm:$0xff]
    %v545 = vld [vmem:[#allocation6 + $0x1a8] sm:$0xff]
    %v546 = vld [vmem:[#allocation6 + $0x1b0] sm:$0xff]
    %v547 = vld [vmem:[#allocation6 + $0x1b8] sm:$0xff]
    %v548 = vld [vmem:[#allocation6 + $0x1c0] sm:$0xff]
    %v549 = vld [vmem:[#allocation6 + $0x1c8] sm:$0xff]
    %v550 = vld [vmem:[#allocation6 + $0x1d0] sm:$0xff]
    %v551 = vld [vmem:[#allocation6 + $0x1d8] sm:$0xff]
    %v552 = vld [vmem:[#allocation6 + $0x1e0] sm:$0xff]
    %v553 = vld [vmem:[#allocation6 + $0x1e8] sm:$0xff]
    %v554 = vld [vmem:[#allocation6 + $0x1f0] sm:$0xff]
    %v555 = vld [vmem:[#allocation6 + $0x1f8] sm:$0xff]
    %v556 = vld [vmem:[#allocation6 + $0x200] sm:$0xff]
    %v557 = vld [vmem:[#allocation6 + $0x208] sm:$0xff]
    %v558 = vld [vmem:[#allocation6 + $0x210] sm:$0xff]
    %v559 = vld [vmem:[#allocation6 + $0x218] sm:$0xff]
    %v560 = vld [vmem:[#allocation6 + $0x220] sm:$0xff]
    %v561 = vld [vmem:[#allocation6 + $0x228] sm:$0xff]
    %v562 = vld [vmem:[#allocation6 + $0x230] sm:$0xff]
    %v563 = vld [vmem:[#allocation6 + $0x238] sm:$0xff]
    %v564 = vld [vmem:[#allocation6 + $0x240] sm:$0xff]
    %v565 = vld [vmem:[#allocation6 + $0x248] sm:$0xff]
    %v566 = vld [vmem:[#allocation6 + $0x250] sm:$0xff]
    %v567 = vld [vmem:[#allocation6 + $0x258] sm:$0xff]
    %v568 = vld [vmem:[#allocation6 + $0x260] sm:$0xff]
    %v569 = vld [vmem:[#allocation6 + $0x268] sm:$0xff]
    %v570 = vld [vmem:[#allocation6 + $0x270] sm:$0xff]
    %v571 = vld [vmem:[#allocation6 + $0x278] sm:$0xff]
    %v572 = vld [vmem:[#allocation6 + $0x280] sm:$0xff]
    %v573 = vld [vmem:[#allocation6 + $0x288] sm:$0xff]
    %v574 = vld [vmem:[#allocation6 + $0x290] sm:$0xff]
    %v575 = vld [vmem:[#allocation6 + $0x298] sm:$0xff]
    %v576 = vld [vmem:[#allocation6 + $0x2a0] sm:$0xff]
    %v577 = vld [vmem:[#allocation6 + $0x2a8] sm:$0xff]
    %v578 = vld [vmem:[#allocation6 + $0x2b0] sm:$0xff]
    %v579 = vld [vmem:[#allocation6 + $0x2b8] sm:$0xff]
    %v580 = vld [vmem:[#allocation6 + $0x2c0] sm:$0xff]
    %v581 = vld [vmem:[#allocation6 + $0x2c8] sm:$0xff]
    %v582 = vld [vmem:[#allocation6 + $0x2d0] sm:$0xff]
    %v583 = vld [vmem:[#allocation6 + $0x2d8] sm:$0xff]
    %v584 = vld [vmem:[#allocation6 + $0x2e0] sm:$0xff]
    %v585 = vld [vmem:[#allocation6 + $0x2e8] sm:$0xff]
    %v586 = vld [vmem:[#allocation6 + $0x2f0] sm:$0xff]
    %v587 = vld [vmem:[#allocation6 + $0x2f8] sm:$0xff]
    %v588 = vld [vmem:[#allocation6 + $0x300] sm:$0xff]
    %v589 = vld [vmem:[#allocation6 + $0x308] sm:$0xff]
    %v590 = vld [vmem:[#allocation6 + $0x310] sm:$0xff]
    %v591 = vld [vmem:[#allocation6 + $0x318] sm:$0xff]
    %v592 = vld [vmem:[#allocation6 + $0x320] sm:$0xff]
    %v593 = vld [vmem:[#allocation6 + $0x328] sm:$0xff]
    %v594 = vld [vmem:[#allocation6 + $0x330] sm:$0xff]
    %v595 = vld [vmem:[#allocation6 + $0x338] sm:$0xff]
    %v596 = vld [vmem:[#allocation6 + $0x340] sm:$0xff]
    %v597 = vld [vmem:[#allocation6 + $0x348] sm:$0xff]
    %v598 = vld [vmem:[#allocation6 + $0x350] sm:$0xff]
    %v599 = vld [vmem:[#allocation6 + $0x358] sm:$0xff]
    %v600 = vld [vmem:[#allocation6 + $0x360] sm:$0xff]
    %v601 = vld [vmem:[#allocation6 + $0x368] sm:$0xff]
    %v602 = vld [vmem:[#allocation6 + $0x370] sm:$0xff]
    %v603 = vld [vmem:[#allocation6 + $0x378] sm:$0xff]
    %v604 = vld [vmem:[#allocation6 + $0x380] sm:$0xff]
    %v605 = vld [vmem:[#allocation6 + $0x388] sm:$0xff]
    %v606 = vld [vmem:[#allocation6 + $0x390] sm:$0xff]
    %v607 = vld [vmem:[#allocation6 + $0x398] sm:$0xff]
    %v608 = vld [vmem:[#allocation6 + $0x3a0] sm:$0xff]
    %v609 = vld [vmem:[#allocation6 + $0x3a8] sm:$0xff]
    %v610 = vld [vmem:[#allocation6 + $0x3b0] sm:$0xff]
    %v611 = vld [vmem:[#allocation6 + $0x3b8] sm:$0xff]
    %v612 = vld [vmem:[#allocation6 + $0x3c0] sm:$0xff]
    %v613 = vld [vmem:[#allocation6 + $0x3c8] sm:$0xff]
    %v614 = vld [vmem:[#allocation6 + $0x3d0] sm:$0xff]
    %v615 = vld [vmem:[#allocation6 + $0x3d8] sm:$0xff]
    %v616 = vld [vmem:[#allocation6 + $0x3e0] sm:$0xff]
    %v617 = vld [vmem:[#allocation6 + $0x3e8] sm:$0xff]
    %v618 = vld [vmem:[#allocation6 + $0x3f0] sm:$0xff]
    %v619 = vld [vmem:[#allocation6 + $0x3f8] sm:$0xff]
    %v620 = vld [vmem:[#allocation6 + $0x400] sm:$0xff]
    %v621 = vld [vmem:[#allocation6 + $0x408] sm:$0xff]
    %v622 = vld [vmem:[#allocation6 + $0x410] sm:$0xff]
    %v623 = vld [vmem:[#allocation6 + $0x418] sm:$0xff]
    %v624 = vld [vmem:[#allocation6 + $0x420] sm:$0xff]
    %v625 = vld [vmem:[#allocation6 + $0x428] sm:$0xff]
    %v626 = vld [vmem:[#allocation6 + $0x430] sm:$0xff]
    %v627 = vld [vmem:[#allocation6 + $0x438] sm:$0xff]
    %v628 = vld [vmem:[#allocation6 + $0x440] sm:$0xff]
    %v629 = vld [vmem:[#allocation6 + $0x448] sm:$0xff]
    %v630 = vld [vmem:[#allocation6 + $0x450] sm:$0xff]
    %v631 = vld [vmem:[#allocation6 + $0x458] sm:$0xff]
    %v632 = vld [vmem:[#allocation6 + $0x460] sm:$0xff]
    %v633 = vld [vmem:[#allocation6 + $0x468] sm:$0xff]
    %v634 = vld [vmem:[#allocation6 + $0x470] sm:$0xff]
    %v635 = vld [vmem:[#allocation6 + $0x478] sm:$0xff]
    %v636 = vld [vmem:[#allocation6 + $0x480] sm:$0xff]
    %v637 = vld [vmem:[#allocation6 + $0x488] sm:$0xff]
    %v638 = vld [vmem:[#allocation6 + $0x490] sm:$0xff]
    %v639 = vld [vmem:[#allocation6 + $0x498] sm:$0xff]
    %v640 = vld [vmem:[#allocation6 + $0x4a0] sm:$0xff]
    %v641 = vld [vmem:[#allocation6 + $0x4a8] sm:$0xff]
    %v642 = vld [vmem:[#allocation6 + $0x4b0] sm:$0xff]
    %v643 = vld [vmem:[#allocation6 + $0x4b8] sm:$0xff]
    %v644 = vld [vmem:[#allocation6 + $0x4c0] sm:$0xff]
    %v645 = vld [vmem:[#allocation6 + $0x4c8] sm:$0xff]
    %v646 = vld [vmem:[#allocation6 + $0x4d0] sm:$0xff]
    %v647 = vld [vmem:[#allocation6 + $0x4d8] sm:$0xff]
    %v648 = vld [vmem:[#allocation6 + $0x4e0] sm:$0xff]
    %v649 = vld [vmem:[#allocation6 + $0x4e8] sm:$0xff]
    %v650 = vld [vmem:[#allocation6 + $0x4f0] sm:$0xff]
    %v651 = vld [vmem:[#allocation6 + $0x4f8] sm:$0xff]
    %v652 = vld [vmem:[#allocation6 + $0x500] sm:$0xff]
    %v653 = vld [vmem:[#allocation6 + $0x508] sm:$0xff]
    %v654 = vld [vmem:[#allocation6 + $0x510] sm:$0xff]
    %v655 = vld [vmem:[#allocation6 + $0x518] sm:$0xff]
    %v656 = vld [vmem:[#allocation6 + $0x520] sm:$0xff]
    %v657 = vld [vmem:[#allocation6 + $0x528] sm:$0xff]
    %v658 = vld [vmem:[#allocation6 + $0x530] sm:$0xff]
    %v659 = vld [vmem:[#allocation6 + $0x538] sm:$0xff]
    %v660 = vld [vmem:[#allocation6 + $0x540] sm:$0xff]
    %v661 = vld [vmem:[#allocation6 + $0x548] sm:$0xff]
    %v662 = vld [vmem:[#allocation6 + $0x550] sm:$0xff]
    %v663 = vld [vmem:[#allocation6 + $0x558] sm:$0xff]
    %v664 = vld [vmem:[#allocation6 + $0x560] sm:$0xff]
    %v665 = vld [vmem:[#allocation6 + $0x568] sm:$0xff]
    %v666 = vld [vmem:[#allocation6 + $0x570] sm:$0xff]
    %v667 = vld [vmem:[#allocation6 + $0x578] sm:$0xff]
    %v668 = vld [vmem:[#allocation6 + $0x580] sm:$0xff]
    %v669 = vld [vmem:[#allocation6 + $0x588] sm:$0xff]
    %v670 = vld [vmem:[#allocation6 + $0x590] sm:$0xff]
    %v671 = vld [vmem:[#allocation6 + $0x598] sm:$0xff]
    %v672 = vld [vmem:[#allocation6 + $0x5a0] sm:$0xff]
    %v673 = vld [vmem:[#allocation6 + $0x5a8] sm:$0xff]
    %v674 = vld [vmem:[#allocation6 + $0x5b0] sm:$0xff]
    %v675 = vld [vmem:[#allocation6 + $0x5b8] sm:$0xff]
    %v676 = vld [vmem:[#allocation6 + $0x5c0] sm:$0xff]
    %v677 = vld [vmem:[#allocation6 + $0x5c8] sm:$0xff]
    %v678 = vld [vmem:[#allocation6 + $0x5d0] sm:$0xff]
    %v679 = vld [vmem:[#allocation6 + $0x5d8] sm:$0xff]
    %v680 = vld [vmem:[#allocation6 + $0x5e0] sm:$0xff]
    %v681 = vld [vmem:[#allocation6 + $0x5e8] sm:$0xff]
    %v682 = vld [vmem:[#allocation6 + $0x5f0] sm:$0xff]
    %v683 = vld [vmem:[#allocation6 + $0x5f8] sm:$0xff]
    %v684 = vld [vmem:[#allocation6 + $0x600] sm:$0xff]
    %v685 = vld [vmem:[#allocation6 + $0x608] sm:$0xff]
    %v686 = vld [vmem:[#allocation6 + $0x610] sm:$0xff]
    %v687 = vld [vmem:[#allocation6 + $0x618] sm:$0xff]
    %v688 = vld [vmem:[#allocation6 + $0x620] sm:$0xff]
    %v689 = vld [vmem:[#allocation6 + $0x628] sm:$0xff]
    %v690 = vld [vmem:[#allocation6 + $0x630] sm:$0xff]
    %v691 = vld [vmem:[#allocation6 + $0x638] sm:$0xff]
    %v692 = vld [vmem:[#allocation6 + $0x640] sm:$0xff]
    %v693 = vld [vmem:[#allocation6 + $0x648] sm:$0xff]
    %v694 = vld [vmem:[#allocation6 + $0x650] sm:$0xff]
    %v695 = vld [vmem:[#allocation6 + $0x658] sm:$0xff]
    %v696 = vld [vmem:[#allocation6 + $0x660] sm:$0xff]
    %v697 = vld [vmem:[#allocation6 + $0x668] sm:$0xff]
    %v698 = vld [vmem:[#allocation6 + $0x670] sm:$0xff]
    %v699 = vld [vmem:[#allocation6 + $0x678] sm:$0xff]
    %v700 = vld [vmem:[#allocation6 + $0x680] sm:$0xff]
    %v701 = vld [vmem:[#allocation6 + $0x688] sm:$0xff]
    %v702 = vld [vmem:[#allocation6 + $0x690] sm:$0xff]
    %v703 = vld [vmem:[#allocation6 + $0x698] sm:$0xff]
    %v704 = vld [vmem:[#allocation6 + $0x6a0] sm:$0xff]
    %v705 = vld [vmem:[#allocation6 + $0x6a8] sm:$0xff]
    %v706 = vld [vmem:[#allocation6 + $0x6b0] sm:$0xff]
    %v707 = vld [vmem:[#allocation6 + $0x6b8] sm:$0xff]
    %v708 = vld [vmem:[#allocation6 + $0x6c0] sm:$0xff]
    %v709 = vld [vmem:[#allocation6 + $0x6c8] sm:$0xff]
    %v710 = vld [vmem:[#allocation6 + $0x6d0] sm:$0xff]
    %v711 = vld [vmem:[#allocation6 + $0x6d8] sm:$0xff]
    %v712 = vld [vmem:[#allocation6 + $0x6e0] sm:$0xff]
    %v713 = vld [vmem:[#allocation6 + $0x6e8] sm:$0xff]
    %v714 = vld [vmem:[#allocation6 + $0x6f0] sm:$0xff]
    %v715 = vld [vmem:[#allocation6 + $0x6f8] sm:$0xff]
    %v716 = vld [vmem:[#allocation6 + $0x700] sm:$0xff]
    %v717 = vld [vmem:[#allocation6 + $0x708] sm:$0xff]
    %v718 = vld [vmem:[#allocation6 + $0x710] sm:$0xff]
    %v719 = vld [vmem:[#allocation6 + $0x718] sm:$0xff]
    %v720 = vld [vmem:[#allocation6 + $0x720] sm:$0xff]
    %v721 = vld [vmem:[#allocation6 + $0x728] sm:$0xff]
    %v722 = vld [vmem:[#allocation6 + $0x730] sm:$0xff]
    %v723 = vld [vmem:[#allocation6 + $0x738] sm:$0xff]
    %v724 = vld [vmem:[#allocation6 + $0x740] sm:$0xff]
    %v725 = vld [vmem:[#allocation6 + $0x748] sm:$0xff]
    %v726 = vld [vmem:[#allocation6 + $0x750] sm:$0xff]
    %v727 = vld [vmem:[#allocation6 + $0x758] sm:$0xff]
    %v728 = vld [vmem:[#allocation6 + $0x760] sm:$0xff]
    %v729 = vld [vmem:[#allocation6 + $0x768] sm:$0xff]
    %v730 = vld [vmem:[#allocation6 + $0x770] sm:$0xff]
    %v731 = vld [vmem:[#allocation6 + $0x778] sm:$0xff]
    %v732 = vld [vmem:[#allocation6 + $0x780] sm:$0xff]
    %v733 = vld [vmem:[#allocation6 + $0x788] sm:$0xff]
    %v734 = vld [vmem:[#allocation6 + $0x790] sm:$0xff]
    %v735 = vld [vmem:[#allocation6 + $0x798] sm:$0xff]
    %v736 = vld [vmem:[#allocation6 + $0x7a0] sm:$0xff]
    %v737 = vld [vmem:[#allocation6 + $0x7a8] sm:$0xff]
    %v738 = vld [vmem:[#allocation6 + $0x7b0] sm:$0xff]
    %v739 = vld [vmem:[#allocation6 + $0x7b8] sm:$0xff]
    %v740 = vld [vmem:[#allocation6 + $0x7c0] sm:$0xff]
    %v741 = vld [vmem:[#allocation6 + $0x7c8] sm:$0xff]
    %v742 = vld [vmem:[#allocation6 + $0x7d0] sm:$0xff]
    %v743 = vld [vmem:[#allocation6 + $0x7d8] sm:$0xff]
    %v744 = vld [vmem:[#allocation6 + $0x7e0] sm:$0xff]
    %v745 = vld [vmem:[#allocation6 + $0x7e8] sm:$0xff]
    %v746 = vld [vmem:[#allocation6 + $0x7f0] sm:$0xff]
    %v747 = vld [vmem:[#allocation6 + $0x7f8] sm:$0xff]
    %v748 = vld [vmem:[#allocation7] sm:$0xff]
    %v750 = vlaneseq
    %v751 = vshrl.u32 %v750, 7
    %v752 = vsub.s32 0, %v751
    %v753 = vrot.slane %v748, %v752
    %v754 = vlaneseq
    %v755 = vshrl.u32 %v754, 7
    %v756 = vsub.s32 1, %v755
    %v757 = vrot.slane %v748, %v756
    %v758 = vlaneseq
    %v759 = vshrl.u32 %v758, 7
    %v760 = vsub.s32 2, %v759
    %v761 = vrot.slane %v748, %v760
    %v762 = vlaneseq
    %v763 = vshrl.u32 %v762, 7
    %v764 = vsub.s32 3, %v763
    %v765 = vrot.slane %v748, %v764
    %v766 = vlaneseq
    %v767 = vshrl.u32 %v766, 7
    %v768 = vsub.s32 4, %v767
    %v769 = vrot.slane %v748, %v768
    %v770 = vlaneseq
    %v771 = vshrl.u32 %v770, 7
    %v772 = vsub.s32 5, %v771
    %v773 = vrot.slane %v748, %v772
    %v774 = vlaneseq
    %v775 = vshrl.u32 %v774, 7
    %v776 = vsub.s32 6, %v775
    %v777 = vrot.slane %v748, %v776
    %v778 = vlaneseq
    %v779 = vshrl.u32 %v778, 7
    %v780 = vsub.s32 7, %v779
    %v781 = vrot.slane %v748, %v780
    %v1046 = vunpack.c.l.b16 %v492
    %v1047 = vunpack.c.h.b16 %v492
    %v1048 = vunpack.c.l.b16 %v493
    %v1049 = vunpack.c.h.b16 %v493
    %v1050 = vunpack.c.l.b16 %v494
    %v1051 = vunpack.c.h.b16 %v494
    %v1052 = vunpack.c.l.b16 %v495
    %v1053 = vunpack.c.h.b16 %v495
    %v1054 = vunpack.c.l.b16 %v496
    %v1055 = vunpack.c.h.b16 %v496
    %v1056 = vunpack.c.l.b16 %v497
    %v1057 = vunpack.c.h.b16 %v497
    %v1058 = vunpack.c.l.b16 %v498
    %v1059 = vunpack.c.h.b16 %v498
    %v1060 = vunpack.c.l.b16 %v499
    %v1061 = vunpack.c.h.b16 %v499
    %v1062 = vunpack.c.l.b16 %v500
    %v1063 = vunpack.c.h.b16 %v500
    %v1064 = vunpack.c.l.b16 %v501
    %v1065 = vunpack.c.h.b16 %v501
    %v1066 = vunpack.c.l.b16 %v502
    %v1067 = vunpack.c.h.b16 %v502
    %v1068 = vunpack.c.l.b16 %v503
    %v1069 = vunpack.c.h.b16 %v503
    %v1070 = vunpack.c.l.b16 %v504
    %v1071 = vunpack.c.h.b16 %v504
    %v1072 = vunpack.c.l.b16 %v505
    %v1073 = vunpack.c.h.b16 %v505
    %v1074 = vunpack.c.l.b16 %v506
    %v1075 = vunpack.c.h.b16 %v506
    %v1076 = vunpack.c.l.b16 %v507
    %v1077 = vunpack.c.h.b16 %v507
    %v1078 = vunpack.c.l.b16 %v508
    %v1079 = vunpack.c.h.b16 %v508
    %v1080 = vunpack.c.l.b16 %v509
    %v1081 = vunpack.c.h.b16 %v509
    %v1082 = vunpack.c.l.b16 %v510
    %v1083 = vunpack.c.h.b16 %v510
    %v1084 = vunpack.c.l.b16 %v511
    %v1085 = vunpack.c.h.b16 %v511
    %v1086 = vunpack.c.l.b16 %v512
    %v1087 = vunpack.c.h.b16 %v512
    %v1088 = vunpack.c.l.b16 %v513
    %v1089 = vunpack.c.h.b16 %v513
    %v1090 = vunpack.c.l.b16 %v514
    %v1091 = vunpack.c.h.b16 %v514
    %v1092 = vunpack.c.l.b16 %v515
    %v1093 = vunpack.c.h.b16 %v515
    %v1094 = vunpack.c.l.b16 %v516
    %v1095 = vunpack.c.h.b16 %v516
    %v1096 = vunpack.c.l.b16 %v517
    %v1097 = vunpack.c.h.b16 %v517
    %v1098 = vunpack.c.l.b16 %v518
    %v1099 = vunpack.c.h.b16 %v518
    %v1100 = vunpack.c.l.b16 %v519
    %v1101 = vunpack.c.h.b16 %v519
    %v1102 = vunpack.c.l.b16 %v520
    %v1103 = vunpack.c.h.b16 %v520
    %v1104 = vunpack.c.l.b16 %v521
    %v1105 = vunpack.c.h.b16 %v521
    %v1106 = vunpack.c.l.b16 %v522
    %v1107 = vunpack.c.h.b16 %v522
    %v1108 = vunpack.c.l.b16 %v523
    %v1109 = vunpack.c.h.b16 %v523
    %v1110 = vunpack.c.l.b16 %v524
    %v1111 = vunpack.c.h.b16 %v524
    %v1112 = vunpack.c.l.b16 %v525
    %v1113 = vunpack.c.h.b16 %v525
    %v1114 = vunpack.c.l.b16 %v526
    %v1115 = vunpack.c.h.b16 %v526
    %v1116 = vunpack.c.l.b16 %v527
    %v1117 = vunpack.c.h.b16 %v527
    %v1118 = vunpack.c.l.b16 %v528
    %v1119 = vunpack.c.h.b16 %v528
    %v1120 = vunpack.c.l.b16 %v529
    %v1121 = vunpack.c.h.b16 %v529
    %v1122 = vunpack.c.l.b16 %v530
    %v1123 = vunpack.c.h.b16 %v530
    %v1124 = vunpack.c.l.b16 %v531
    %v1125 = vunpack.c.h.b16 %v531
    %v1126 = vunpack.c.l.b16 %v532
    %v1127 = vunpack.c.h.b16 %v532
    %v1128 = vunpack.c.l.b16 %v533
    %v1129 = vunpack.c.h.b16 %v533
    %v1130 = vunpack.c.l.b16 %v534
    %v1131 = vunpack.c.h.b16 %v534
    %v1132 = vunpack.c.l.b16 %v535
    %v1133 = vunpack.c.h.b16 %v535
    %v1134 = vunpack.c.l.b16 %v536
    %v1135 = vunpack.c.h.b16 %v536
    %v1136 = vunpack.c.l.b16 %v537
    %v1137 = vunpack.c.h.b16 %v537
    %v1138 = vunpack.c.l.b16 %v538
    %v1139 = vunpack.c.h.b16 %v538
    %v1140 = vunpack.c.l.b16 %v539
    %v1141 = vunpack.c.h.b16 %v539
    %v1142 = vunpack.c.l.b16 %v540
    %v1143 = vunpack.c.h.b16 %v540
    %v1144 = vunpack.c.l.b16 %v541
    %v1145 = vunpack.c.h.b16 %v541
    %v1146 = vunpack.c.l.b16 %v542
    %v1147 = vunpack.c.h.b16 %v542
    %v1148 = vunpack.c.l.b16 %v543
    %v1149 = vunpack.c.h.b16 %v543
    %v1150 = vunpack.c.l.b16 %v544
    %v1151 = vunpack.c.h.b16 %v544
    %v1152 = vunpack.c.l.b16 %v545
    %v1153 = vunpack.c.h.b16 %v545
    %v1154 = vunpack.c.l.b16 %v546
    %v1155 = vunpack.c.h.b16 %v546
    %v1156 = vunpack.c.l.b16 %v547
    %v1157 = vunpack.c.h.b16 %v547
    %v1158 = vunpack.c.l.b16 %v548
    %v1159 = vunpack.c.h.b16 %v548
    %v1160 = vunpack.c.l.b16 %v549
    %v1161 = vunpack.c.h.b16 %v549
    %v1162 = vunpack.c.l.b16 %v550
    %v1163 = vunpack.c.h.b16 %v550
    %v1164 = vunpack.c.l.b16 %v551
    %v1165 = vunpack.c.h.b16 %v551
    %v1166 = vunpack.c.l.b16 %v552
    %v1167 = vunpack.c.h.b16 %v552
    %v1168 = vunpack.c.l.b16 %v553
    %v1169 = vunpack.c.h.b16 %v553
    %v1170 = vunpack.c.l.b16 %v554
    %v1171 = vunpack.c.h.b16 %v554
    %v1172 = vunpack.c.l.b16 %v555
    %v1173 = vunpack.c.h.b16 %v555
    %v1174 = vunpack.c.l.b16 %v556
    %v1175 = vunpack.c.h.b16 %v556
    %v1176 = vunpack.c.l.b16 %v557
    %v1177 = vunpack.c.h.b16 %v557
    %v1178 = vunpack.c.l.b16 %v558
    %v1179 = vunpack.c.h.b16 %v558
    %v1180 = vunpack.c.l.b16 %v559
    %v1181 = vunpack.c.h.b16 %v559
    %v1182 = vunpack.c.l.b16 %v560
    %v1183 = vunpack.c.h.b16 %v560
    %v1184 = vunpack.c.l.b16 %v561
    %v1185 = vunpack.c.h.b16 %v561
    %v1186 = vunpack.c.l.b16 %v562
    %v1187 = vunpack.c.h.b16 %v562
    %v1188 = vunpack.c.l.b16 %v563
    %v1189 = vunpack.c.h.b16 %v563
    %v1190 = vunpack.c.l.b16 %v564
    %v1191 = vunpack.c.h.b16 %v564
    %v1192 = vunpack.c.l.b16 %v565
    %v1193 = vunpack.c.h.b16 %v565
    %v1194 = vunpack.c.l.b16 %v566
    %v1195 = vunpack.c.h.b16 %v566
    %v1196 = vunpack.c.l.b16 %v567
    %v1197 = vunpack.c.h.b16 %v567
    %v1198 = vunpack.c.l.b16 %v568
    %v1199 = vunpack.c.h.b16 %v568
    %v1200 = vunpack.c.l.b16 %v569
    %v1201 = vunpack.c.h.b16 %v569
    %v1202 = vunpack.c.l.b16 %v570
    %v1203 = vunpack.c.h.b16 %v570
    %v1204 = vunpack.c.l.b16 %v571
    %v1205 = vunpack.c.h.b16 %v571
    %v1206 = vunpack.c.l.b16 %v572
    %v1207 = vunpack.c.h.b16 %v572
    %v1208 = vunpack.c.l.b16 %v573
    %v1209 = vunpack.c.h.b16 %v573
    %v1210 = vunpack.c.l.b16 %v574
    %v1211 = vunpack.c.h.b16 %v574
    %v1212 = vunpack.c.l.b16 %v575
    %v1213 = vunpack.c.h.b16 %v575
    %v1214 = vunpack.c.l.b16 %v576
    %v1215 = vunpack.c.h.b16 %v576
    %v1216 = vunpack.c.l.b16 %v577
    %v1217 = vunpack.c.h.b16 %v577
    %v1218 = vunpack.c.l.b16 %v578
    %v1219 = vunpack.c.h.b16 %v578
    %v1220 = vunpack.c.l.b16 %v579
    %v1221 = vunpack.c.h.b16 %v579
    %v1222 = vunpack.c.l.b16 %v580
    %v1223 = vunpack.c.h.b16 %v580
    %v1224 = vunpack.c.l.b16 %v581
    %v1225 = vunpack.c.h.b16 %v581
    %v1226 = vunpack.c.l.b16 %v582
    %v1227 = vunpack.c.h.b16 %v582
    %v1228 = vunpack.c.l.b16 %v583
    %v1229 = vunpack.c.h.b16 %v583
    %v1230 = vunpack.c.l.b16 %v584
    %v1231 = vunpack.c.h.b16 %v584
    %v1232 = vunpack.c.l.b16 %v585
    %v1233 = vunpack.c.h.b16 %v585
    %v1234 = vunpack.c.l.b16 %v586
    %v1235 = vunpack.c.h.b16 %v586
    %v1236 = vunpack.c.l.b16 %v587
    %v1237 = vunpack.c.h.b16 %v587
    %v1238 = vunpack.c.l.b16 %v588
    %v1239 = vunpack.c.h.b16 %v588
    %v1240 = vunpack.c.l.b16 %v589
    %v1241 = vunpack.c.h.b16 %v589
    %v1242 = vunpack.c.l.b16 %v590
    %v1243 = vunpack.c.h.b16 %v590
    %v1244 = vunpack.c.l.b16 %v591
    %v1245 = vunpack.c.h.b16 %v591
    %v1246 = vunpack.c.l.b16 %v592
    %v1247 = vunpack.c.h.b16 %v592
    %v1248 = vunpack.c.l.b16 %v593
    %v1249 = vunpack.c.h.b16 %v593
    %v1250 = vunpack.c.l.b16 %v594
    %v1251 = vunpack.c.h.b16 %v594
    %v1252 = vunpack.c.l.b16 %v595
    %v1253 = vunpack.c.h.b16 %v595
    %v1254 = vunpack.c.l.b16 %v596
    %v1255 = vunpack.c.h.b16 %v596
    %v1256 = vunpack.c.l.b16 %v597
    %v1257 = vunpack.c.h.b16 %v597
    %v1258 = vunpack.c.l.b16 %v598
    %v1259 = vunpack.c.h.b16 %v598
    %v1260 = vunpack.c.l.b16 %v599
    %v1261 = vunpack.c.h.b16 %v599
    %v1262 = vunpack.c.l.b16 %v600
    %v1263 = vunpack.c.h.b16 %v600
    %v1264 = vunpack.c.l.b16 %v601
    %v1265 = vunpack.c.h.b16 %v601
    %v1266 = vunpack.c.l.b16 %v602
    %v1267 = vunpack.c.h.b16 %v602
    %v1268 = vunpack.c.l.b16 %v603
    %v1269 = vunpack.c.h.b16 %v603
    %v1270 = vunpack.c.l.b16 %v604
    %v1271 = vunpack.c.h.b16 %v604
    %v1272 = vunpack.c.l.b16 %v605
    %v1273 = vunpack.c.h.b16 %v605
    %v1274 = vunpack.c.l.b16 %v606
    %v1275 = vunpack.c.h.b16 %v606
    %v1276 = vunpack.c.l.b16 %v607
    %v1277 = vunpack.c.h.b16 %v607
    %v1278 = vunpack.c.l.b16 %v608
    %v1279 = vunpack.c.h.b16 %v608
    %v1280 = vunpack.c.l.b16 %v609
    %v1281 = vunpack.c.h.b16 %v609
    %v1282 = vunpack.c.l.b16 %v610
    %v1283 = vunpack.c.h.b16 %v610
    %v1284 = vunpack.c.l.b16 %v611
    %v1285 = vunpack.c.h.b16 %v611
    %v1286 = vunpack.c.l.b16 %v612
    %v1287 = vunpack.c.h.b16 %v612
    %v1288 = vunpack.c.l.b16 %v613
    %v1289 = vunpack.c.h.b16 %v613
    %v1290 = vunpack.c.l.b16 %v614
    %v1291 = vunpack.c.h.b16 %v614
    %v1292 = vunpack.c.l.b16 %v615
    %v1293 = vunpack.c.h.b16 %v615
    %v1294 = vunpack.c.l.b16 %v616
    %v1295 = vunpack.c.h.b16 %v616
    %v1296 = vunpack.c.l.b16 %v617
    %v1297 = vunpack.c.h.b16 %v617
    %v1298 = vunpack.c.l.b16 %v618
    %v1299 = vunpack.c.h.b16 %v618
    %v1300 = vunpack.c.l.b16 %v619
    %v1301 = vunpack.c.h.b16 %v619
    %v1302 = vunpack.c.l.b16 %v620
    %v1303 = vunpack.c.h.b16 %v620
    %v1304 = vunpack.c.l.b16 %v621
    %v1305 = vunpack.c.h.b16 %v621
    %v1306 = vunpack.c.l.b16 %v622
    %v1307 = vunpack.c.h.b16 %v622
    %v1308 = vunpack.c.l.b16 %v623
    %v1309 = vunpack.c.h.b16 %v623
    %v1310 = vunpack.c.l.b16 %v624
    %v1311 = vunpack.c.h.b16 %v624
    %v1312 = vunpack.c.l.b16 %v625
    %v1313 = vunpack.c.h.b16 %v625
    %v1314 = vunpack.c.l.b16 %v626
    %v1315 = vunpack.c.h.b16 %v626
    %v1316 = vunpack.c.l.b16 %v627
    %v1317 = vunpack.c.h.b16 %v627
    %v1318 = vunpack.c.l.b16 %v628
    %v1319 = vunpack.c.h.b16 %v628
    %v1320 = vunpack.c.l.b16 %v629
    %v1321 = vunpack.c.h.b16 %v629
    %v1322 = vunpack.c.l.b16 %v630
    %v1323 = vunpack.c.h.b16 %v630
    %v1324 = vunpack.c.l.b16 %v631
    %v1325 = vunpack.c.h.b16 %v631
    %v1326 = vunpack.c.l.b16 %v632
    %v1327 = vunpack.c.h.b16 %v632
    %v1328 = vunpack.c.l.b16 %v633
    %v1329 = vunpack.c.h.b16 %v633
    %v1330 = vunpack.c.l.b16 %v634
    %v1331 = vunpack.c.h.b16 %v634
    %v1332 = vunpack.c.l.b16 %v635
    %v1333 = vunpack.c.h.b16 %v635
    %v1334 = vunpack.c.l.b16 %v636
    %v1335 = vunpack.c.h.b16 %v636
    %v1336 = vunpack.c.l.b16 %v637
    %v1337 = vunpack.c.h.b16 %v637
    %v1338 = vunpack.c.l.b16 %v638
    %v1339 = vunpack.c.h.b16 %v638
    %v1340 = vunpack.c.l.b16 %v639
    %v1341 = vunpack.c.h.b16 %v639
    %v1342 = vunpack.c.l.b16 %v640
    %v1343 = vunpack.c.h.b16 %v640
    %v1344 = vunpack.c.l.b16 %v641
    %v1345 = vunpack.c.h.b16 %v641
    %v1346 = vunpack.c.l.b16 %v642
    %v1347 = vunpack.c.h.b16 %v642
    %v1348 = vunpack.c.l.b16 %v643
    %v1349 = vunpack.c.h.b16 %v643
    %v1350 = vunpack.c.l.b16 %v644
    %v1351 = vunpack.c.h.b16 %v644
    %v1352 = vunpack.c.l.b16 %v645
    %v1353 = vunpack.c.h.b16 %v645
    %v1354 = vunpack.c.l.b16 %v646
    %v1355 = vunpack.c.h.b16 %v646
    %v1356 = vunpack.c.l.b16 %v647
    %v1357 = vunpack.c.h.b16 %v647
    %v1358 = vunpack.c.l.b16 %v648
    %v1359 = vunpack.c.h.b16 %v648
    %v1360 = vunpack.c.l.b16 %v649
    %v1361 = vunpack.c.h.b16 %v649
    %v1362 = vunpack.c.l.b16 %v650
    %v1363 = vunpack.c.h.b16 %v650
    %v1364 = vunpack.c.l.b16 %v651
    %v1365 = vunpack.c.h.b16 %v651
    %v1366 = vunpack.c.l.b16 %v652
    %v1367 = vunpack.c.h.b16 %v652
    %v1368 = vunpack.c.l.b16 %v653
    %v1369 = vunpack.c.h.b16 %v653
    %v1370 = vunpack.c.l.b16 %v654
    %v1371 = vunpack.c.h.b16 %v654
    %v1372 = vunpack.c.l.b16 %v655
    %v1373 = vunpack.c.h.b16 %v655
    %v1374 = vunpack.c.l.b16 %v656
    %v1375 = vunpack.c.h.b16 %v656
    %v1376 = vunpack.c.l.b16 %v657
    %v1377 = vunpack.c.h.b16 %v657
    %v1378 = vunpack.c.l.b16 %v658
    %v1379 = vunpack.c.h.b16 %v658
    %v1380 = vunpack.c.l.b16 %v659
    %v1381 = vunpack.c.h.b16 %v659
    %v1382 = vunpack.c.l.b16 %v660
    %v1383 = vunpack.c.h.b16 %v660
    %v1384 = vunpack.c.l.b16 %v661
    %v1385 = vunpack.c.h.b16 %v661
    %v1386 = vunpack.c.l.b16 %v662
    %v1387 = vunpack.c.h.b16 %v662
    %v1388 = vunpack.c.l.b16 %v663
    %v1389 = vunpack.c.h.b16 %v663
    %v1390 = vunpack.c.l.b16 %v664
    %v1391 = vunpack.c.h.b16 %v664
    %v1392 = vunpack.c.l.b16 %v665
    %v1393 = vunpack.c.h.b16 %v665
    %v1394 = vunpack.c.l.b16 %v666
    %v1395 = vunpack.c.h.b16 %v666
    %v1396 = vunpack.c.l.b16 %v667
    %v1397 = vunpack.c.h.b16 %v667
    %v1398 = vunpack.c.l.b16 %v668
    %v1399 = vunpack.c.h.b16 %v668
    %v1400 = vunpack.c.l.b16 %v669
    %v1401 = vunpack.c.h.b16 %v669
    %v1402 = vunpack.c.l.b16 %v670
    %v1403 = vunpack.c.h.b16 %v670
    %v1404 = vunpack.c.l.b16 %v671
    %v1405 = vunpack.c.h.b16 %v671
    %v1406 = vunpack.c.l.b16 %v672
    %v1407 = vunpack.c.h.b16 %v672
    %v1408 = vunpack.c.l.b16 %v673
    %v1409 = vunpack.c.h.b16 %v673
    %v1410 = vunpack.c.l.b16 %v674
    %v1411 = vunpack.c.h.b16 %v674
    %v1412 = vunpack.c.l.b16 %v675
    %v1413 = vunpack.c.h.b16 %v675
    %v1414 = vunpack.c.l.b16 %v676
    %v1415 = vunpack.c.h.b16 %v676
    %v1416 = vunpack.c.l.b16 %v677
    %v1417 = vunpack.c.h.b16 %v677
    %v1418 = vunpack.c.l.b16 %v678
    %v1419 = vunpack.c.h.b16 %v678
    %v1420 = vunpack.c.l.b16 %v679
    %v1421 = vunpack.c.h.b16 %v679
    %v1422 = vunpack.c.l.b16 %v680
    %v1423 = vunpack.c.h.b16 %v680
    %v1424 = vunpack.c.l.b16 %v681
    %v1425 = vunpack.c.h.b16 %v681
    %v1426 = vunpack.c.l.b16 %v682
    %v1427 = vunpack.c.h.b16 %v682
    %v1428 = vunpack.c.l.b16 %v683
    %v1429 = vunpack.c.h.b16 %v683
    %v1430 = vunpack.c.l.b16 %v684
    %v1431 = vunpack.c.h.b16 %v684
    %v1432 = vunpack.c.l.b16 %v685
    %v1433 = vunpack.c.h.b16 %v685
    %v1434 = vunpack.c.l.b16 %v686
    %v1435 = vunpack.c.h.b16 %v686
    %v1436 = vunpack.c.l.b16 %v687
    %v1437 = vunpack.c.h.b16 %v687
    %v1438 = vunpack.c.l.b16 %v688
    %v1439 = vunpack.c.h.b16 %v688
    %v1440 = vunpack.c.l.b16 %v689
    %v1441 = vunpack.c.h.b16 %v689
    %v1442 = vunpack.c.l.b16 %v690
    %v1443 = vunpack.c.h.b16 %v690
    %v1444 = vunpack.c.l.b16 %v691
    %v1445 = vunpack.c.h.b16 %v691
    %v1446 = vunpack.c.l.b16 %v692
    %v1447 = vunpack.c.h.b16 %v692
    %v1448 = vunpack.c.l.b16 %v693
    %v1449 = vunpack.c.h.b16 %v693
    %v1450 = vunpack.c.l.b16 %v694
    %v1451 = vunpack.c.h.b16 %v694
    %v1452 = vunpack.c.l.b16 %v695
    %v1453 = vunpack.c.h.b16 %v695
    %v1454 = vunpack.c.l.b16 %v696
    %v1455 = vunpack.c.h.b16 %v696
    %v1456 = vunpack.c.l.b16 %v697
    %v1457 = vunpack.c.h.b16 %v697
    %v1458 = vunpack.c.l.b16 %v698
    %v1459 = vunpack.c.h.b16 %v698
    %v1460 = vunpack.c.l.b16 %v699
    %v1461 = vunpack.c.h.b16 %v699
    %v1462 = vunpack.c.l.b16 %v700
    %v1463 = vunpack.c.h.b16 %v700
    %v1464 = vunpack.c.l.b16 %v701
    %v1465 = vunpack.c.h.b16 %v701
    %v1466 = vunpack.c.l.b16 %v702
    %v1467 = vunpack.c.h.b16 %v702
    %v1468 = vunpack.c.l.b16 %v703
    %v1469 = vunpack.c.h.b16 %v703
    %v1470 = vunpack.c.l.b16 %v704
    %v1471 = vunpack.c.h.b16 %v704
    %v1472 = vunpack.c.l.b16 %v705
    %v1473 = vunpack.c.h.b16 %v705
    %v1474 = vunpack.c.l.b16 %v706
    %v1475 = vunpack.c.h.b16 %v706
    %v1476 = vunpack.c.l.b16 %v707
    %v1477 = vunpack.c.h.b16 %v707
    %v1478 = vunpack.c.l.b16 %v708
    %v1479 = vunpack.c.h.b16 %v708
    %v1480 = vunpack.c.l.b16 %v709
    %v1481 = vunpack.c.h.b16 %v709
    %v1482 = vunpack.c.l.b16 %v710
    %v1483 = vunpack.c.h.b16 %v710
    %v1484 = vunpack.c.l.b16 %v711
    %v1485 = vunpack.c.h.b16 %v711
    %v1486 = vunpack.c.l.b16 %v712
    %v1487 = vunpack.c.h.b16 %v712
    %v1488 = vunpack.c.l.b16 %v713
    %v1489 = vunpack.c.h.b16 %v713
    %v1490 = vunpack.c.l.b16 %v714
    %v1491 = vunpack.c.h.b16 %v714
    %v1492 = vunpack.c.l.b16 %v715
    %v1493 = vunpack.c.h.b16 %v715
    %v1494 = vunpack.c.l.b16 %v716
    %v1495 = vunpack.c.h.b16 %v716
    %v1496 = vunpack.c.l.b16 %v717
    %v1497 = vunpack.c.h.b16 %v717
    %v1498 = vunpack.c.l.b16 %v718
    %v1499 = vunpack.c.h.b16 %v718
    %v1500 = vunpack.c.l.b16 %v719
    %v1501 = vunpack.c.h.b16 %v719
    %v1502 = vunpack.c.l.b16 %v720
    %v1503 = vunpack.c.h.b16 %v720
    %v1504 = vunpack.c.l.b16 %v721
    %v1505 = vunpack.c.h.b16 %v721
    %v1506 = vunpack.c.l.b16 %v722
    %v1507 = vunpack.c.h.b16 %v722
    %v1508 = vunpack.c.l.b16 %v723
    %v1509 = vunpack.c.h.b16 %v723
    %v1510 = vunpack.c.l.b16 %v724
    %v1511 = vunpack.c.h.b16 %v724
    %v1512 = vunpack.c.l.b16 %v725
    %v1513 = vunpack.c.h.b16 %v725
    %v1514 = vunpack.c.l.b16 %v726
    %v1515 = vunpack.c.h.b16 %v726
    %v1516 = vunpack.c.l.b16 %v727
    %v1517 = vunpack.c.h.b16 %v727
    %v1518 = vunpack.c.l.b16 %v728
    %v1519 = vunpack.c.h.b16 %v728
    %v1520 = vunpack.c.l.b16 %v729
    %v1521 = vunpack.c.h.b16 %v729
    %v1522 = vunpack.c.l.b16 %v730
    %v1523 = vunpack.c.h.b16 %v730
    %v1524 = vunpack.c.l.b16 %v731
    %v1525 = vunpack.c.h.b16 %v731
    %v1526 = vunpack.c.l.b16 %v732
    %v1527 = vunpack.c.h.b16 %v732
    %v1528 = vunpack.c.l.b16 %v733
    %v1529 = vunpack.c.h.b16 %v733
    %v1530 = vunpack.c.l.b16 %v734
    %v1531 = vunpack.c.h.b16 %v734
    %v1532 = vunpack.c.l.b16 %v735
    %v1533 = vunpack.c.h.b16 %v735
    %v1534 = vunpack.c.l.b16 %v736
    %v1535 = vunpack.c.h.b16 %v736
    %v1536 = vunpack.c.l.b16 %v737
    %v1537 = vunpack.c.h.b16 %v737
    %v1538 = vunpack.c.l.b16 %v738
    %v1539 = vunpack.c.h.b16 %v738
    %v1540 = vunpack.c.l.b16 %v739
    %v1541 = vunpack.c.h.b16 %v739
    %v1542 = vunpack.c.l.b16 %v740
    %v1543 = vunpack.c.h.b16 %v740
    %v1544 = vunpack.c.l.b16 %v741
    %v1545 = vunpack.c.h.b16 %v741
    %v1546 = vunpack.c.l.b16 %v742
    %v1547 = vunpack.c.h.b16 %v742
    %v1548 = vunpack.c.l.b16 %v743
    %v1549 = vunpack.c.h.b16 %v743
    %v1550 = vunpack.c.l.b16 %v744
    %v1551 = vunpack.c.h.b16 %v744
    %v1552 = vunpack.c.l.b16 %v745
    %v1553 = vunpack.c.h.b16 %v745
    %v1554 = vunpack.c.l.b16 %v746
    %v1555 = vunpack.c.h.b16 %v746
    %v1556 = vunpack.c.l.b16 %v747
    %v1557 = vunpack.c.h.b16 %v747
    %v1558 = vpack.c.b16 %v1054, %v1046
    %v1559 = vpack.c.b16 %v1055, %v1047
    %v1560 = vpack.c.b16 %v1056, %v1048
    %v1561 = vpack.c.b16 %v1057, %v1049
    %v1562 = vpack.c.b16 %v1058, %v1050
    %v1563 = vpack.c.b16 %v1059, %v1051
    %v1564 = vpack.c.b16 %v1060, %v1052
    %v1565 = vpack.c.b16 %v1061, %v1053
    %v1566 = vpack.c.b16 %v1070, %v1062
    %v1567 = vpack.c.b16 %v1071, %v1063
    %v1568 = vpack.c.b16 %v1072, %v1064
    %v1569 = vpack.c.b16 %v1073, %v1065
    %v1570 = vpack.c.b16 %v1074, %v1066
    %v1571 = vpack.c.b16 %v1075, %v1067
    %v1572 = vpack.c.b16 %v1076, %v1068
    %v1573 = vpack.c.b16 %v1077, %v1069
    %v1574 = vpack.c.b16 %v1086, %v1078
    %v1575 = vpack.c.b16 %v1087, %v1079
    %v1576 = vpack.c.b16 %v1088, %v1080
    %v1577 = vpack.c.b16 %v1089, %v1081
    %v1578 = vpack.c.b16 %v1090, %v1082
    %v1579 = vpack.c.b16 %v1091, %v1083
    %v1580 = vpack.c.b16 %v1092, %v1084
    %v1581 = vpack.c.b16 %v1093, %v1085
    %v1582 = vpack.c.b16 %v1102, %v1094
    %v1583 = vpack.c.b16 %v1103, %v1095
    %v1584 = vpack.c.b16 %v1104, %v1096
    %v1585 = vpack.c.b16 %v1105, %v1097
    %v1586 = vpack.c.b16 %v1106, %v1098
    %v1587 = vpack.c.b16 %v1107, %v1099
    %v1588 = vpack.c.b16 %v1108, %v1100
    %v1589 = vpack.c.b16 %v1109, %v1101
    %v1590 = vpack.c.b16 %v1118, %v1110
    %v1591 = vpack.c.b16 %v1119, %v1111
    %v1592 = vpack.c.b16 %v1120, %v1112
    %v1593 = vpack.c.b16 %v1121, %v1113
    %v1594 = vpack.c.b16 %v1122, %v1114
    %v1595 = vpack.c.b16 %v1123, %v1115
    %v1596 = vpack.c.b16 %v1124, %v1116
    %v1597 = vpack.c.b16 %v1125, %v1117
    %v1598 = vpack.c.b16 %v1134, %v1126
    %v1599 = vpack.c.b16 %v1135, %v1127
    %v1600 = vpack.c.b16 %v1136, %v1128
    %v1601 = vpack.c.b16 %v1137, %v1129
    %v1602 = vpack.c.b16 %v1138, %v1130
    %v1603 = vpack.c.b16 %v1139, %v1131
    %v1604 = vpack.c.b16 %v1140, %v1132
    %v1605 = vpack.c.b16 %v1141, %v1133
    %v1606 = vpack.c.b16 %v1150, %v1142
    %v1607 = vpack.c.b16 %v1151, %v1143
    %v1608 = vpack.c.b16 %v1152, %v1144
    %v1609 = vpack.c.b16 %v1153, %v1145
    %v1610 = vpack.c.b16 %v1154, %v1146
    %v1611 = vpack.c.b16 %v1155, %v1147
    %v1612 = vpack.c.b16 %v1156, %v1148
    %v1613 = vpack.c.b16 %v1157, %v1149
    %v1614 = vpack.c.b16 %v1166, %v1158
    %v1615 = vpack.c.b16 %v1167, %v1159
    %v1616 = vpack.c.b16 %v1168, %v1160
    %v1617 = vpack.c.b16 %v1169, %v1161
    %v1618 = vpack.c.b16 %v1170, %v1162
    %v1619 = vpack.c.b16 %v1171, %v1163
    %v1620 = vpack.c.b16 %v1172, %v1164
    %v1621 = vpack.c.b16 %v1173, %v1165
    %v1622 = vpack.c.b16 %v1182, %v1174
    %v1623 = vpack.c.b16 %v1183, %v1175
    %v1624 = vpack.c.b16 %v1184, %v1176
    %v1625 = vpack.c.b16 %v1185, %v1177
    %v1626 = vpack.c.b16 %v1186, %v1178
    %v1627 = vpack.c.b16 %v1187, %v1179
    %v1628 = vpack.c.b16 %v1188, %v1180
    %v1629 = vpack.c.b16 %v1189, %v1181
    %v1630 = vpack.c.b16 %v1198, %v1190
    %v1631 = vpack.c.b16 %v1199, %v1191
    %v1632 = vpack.c.b16 %v1200, %v1192
    %v1633 = vpack.c.b16 %v1201, %v1193
    %v1634 = vpack.c.b16 %v1202, %v1194
    %v1635 = vpack.c.b16 %v1203, %v1195
    %v1636 = vpack.c.b16 %v1204, %v1196
    %v1637 = vpack.c.b16 %v1205, %v1197
    %v1638 = vpack.c.b16 %v1214, %v1206
    %v1639 = vpack.c.b16 %v1215, %v1207
    %v1640 = vpack.c.b16 %v1216, %v1208
    %v1641 = vpack.c.b16 %v1217, %v1209
    %v1642 = vpack.c.b16 %v1218, %v1210
    %v1643 = vpack.c.b16 %v1219, %v1211
    %v1644 = vpack.c.b16 %v1220, %v1212
    %v1645 = vpack.c.b16 %v1221, %v1213
    %v1646 = vpack.c.b16 %v1230, %v1222
    %v1647 = vpack.c.b16 %v1231, %v1223
    %v1648 = vpack.c.b16 %v1232, %v1224
    %v1649 = vpack.c.b16 %v1233, %v1225
    %v1650 = vpack.c.b16 %v1234, %v1226
    %v1651 = vpack.c.b16 %v1235, %v1227
    %v1652 = vpack.c.b16 %v1236, %v1228
    %v1653 = vpack.c.b16 %v1237, %v1229
    %v1654 = vpack.c.b16 %v1246, %v1238
    %v1655 = vpack.c.b16 %v1247, %v1239
    %v1656 = vpack.c.b16 %v1248, %v1240
    %v1657 = vpack.c.b16 %v1249, %v1241
    %v1658 = vpack.c.b16 %v1250, %v1242
    %v1659 = vpack.c.b16 %v1251, %v1243
    %v1660 = vpack.c.b16 %v1252, %v1244
    %v1661 = vpack.c.b16 %v1253, %v1245
    %v1662 = vpack.c.b16 %v1262, %v1254
    %v1663 = vpack.c.b16 %v1263, %v1255
    %v1664 = vpack.c.b16 %v1264, %v1256
    %v1665 = vpack.c.b16 %v1265, %v1257
    %v1666 = vpack.c.b16 %v1266, %v1258
    %v1667 = vpack.c.b16 %v1267, %v1259
    %v1668 = vpack.c.b16 %v1268, %v1260
    %v1669 = vpack.c.b16 %v1269, %v1261
    %v1670 = vpack.c.b16 %v1278, %v1270
    %v1671 = vpack.c.b16 %v1279, %v1271
    %v1672 = vpack.c.b16 %v1280, %v1272
    %v1673 = vpack.c.b16 %v1281, %v1273
    %v1674 = vpack.c.b16 %v1282, %v1274
    %v1675 = vpack.c.b16 %v1283, %v1275
    %v1676 = vpack.c.b16 %v1284, %v1276
    %v1677 = vpack.c.b16 %v1285, %v1277
    %v1678 = vpack.c.b16 %v1294, %v1286
    %v1679 = vpack.c.b16 %v1295, %v1287
    %v1680 = vpack.c.b16 %v1296, %v1288
    %v1681 = vpack.c.b16 %v1297, %v1289
    %v1682 = vpack.c.b16 %v1298, %v1290
    %v1683 = vpack.c.b16 %v1299, %v1291
    %v1684 = vpack.c.b16 %v1300, %v1292
    %v1685 = vpack.c.b16 %v1301, %v1293
    %v1686 = vpack.c.b16 %v1310, %v1302
    %v1687 = vpack.c.b16 %v1311, %v1303
    %v1688 = vpack.c.b16 %v1312, %v1304
    %v1689 = vpack.c.b16 %v1313, %v1305
    %v1690 = vpack.c.b16 %v1314, %v1306
    %v1691 = vpack.c.b16 %v1315, %v1307
    %v1692 = vpack.c.b16 %v1316, %v1308
    %v1693 = vpack.c.b16 %v1317, %v1309
    %v1694 = vpack.c.b16 %v1326, %v1318
    %v1695 = vpack.c.b16 %v1327, %v1319
    %v1696 = vpack.c.b16 %v1328, %v1320
    %v1697 = vpack.c.b16 %v1329, %v1321
    %v1698 = vpack.c.b16 %v1330, %v1322
    %v1699 = vpack.c.b16 %v1331, %v1323
    %v1700 = vpack.c.b16 %v1332, %v1324
    %v1701 = vpack.c.b16 %v1333, %v1325
    %v1702 = vpack.c.b16 %v1342, %v1334
    %v1703 = vpack.c.b16 %v1343, %v1335
    %v1704 = vpack.c.b16 %v1344, %v1336
    %v1705 = vpack.c.b16 %v1345, %v1337
    %v1706 = vpack.c.b16 %v1346, %v1338
    %v1707 = vpack.c.b16 %v1347, %v1339
    %v1708 = vpack.c.b16 %v1348, %v1340
    %v1709 = vpack.c.b16 %v1349, %v1341
    %v1710 = vpack.c.b16 %v1358, %v1350
    %v1711 = vpack.c.b16 %v1359, %v1351
    %v1712 = vpack.c.b16 %v1360, %v1352
    %v1713 = vpack.c.b16 %v1361, %v1353
    %v1714 = vpack.c.b16 %v1362, %v1354
    %v1715 = vpack.c.b16 %v1363, %v1355
    %v1716 = vpack.c.b16 %v1364, %v1356
    %v1717 = vpack.c.b16 %v1365, %v1357
    %v1718 = vpack.c.b16 %v1374, %v1366
    %v1719 = vpack.c.b16 %v1375, %v1367
    %v1720 = vpack.c.b16 %v1376, %v1368
    %v1721 = vpack.c.b16 %v1377, %v1369
    %v1722 = vpack.c.b16 %v1378, %v1370
    %v1723 = vpack.c.b16 %v1379, %v1371
    %v1724 = vpack.c.b16 %v1380, %v1372
    %v1725 = vpack.c.b16 %v1381, %v1373
    %v1726 = vpack.c.b16 %v1390, %v1382
    %v1727 = vpack.c.b16 %v1391, %v1383
    %v1728 = vpack.c.b16 %v1392, %v1384
    %v1729 = vpack.c.b16 %v1393, %v1385
    %v1730 = vpack.c.b16 %v1394, %v1386
    %v1731 = vpack.c.b16 %v1395, %v1387
    %v1732 = vpack.c.b16 %v1396, %v1388
    %v1733 = vpack.c.b16 %v1397, %v1389
    %v1734 = vpack.c.b16 %v1406, %v1398
    %v1735 = vpack.c.b16 %v1407, %v1399
    %v1736 = vpack.c.b16 %v1408, %v1400
    %v1737 = vpack.c.b16 %v1409, %v1401
    %v1738 = vpack.c.b16 %v1410, %v1402
    %v1739 = vpack.c.b16 %v1411, %v1403
    %v1740 = vpack.c.b16 %v1412, %v1404
    %v1741 = vpack.c.b16 %v1413, %v1405
    %v1742 = vpack.c.b16 %v1422, %v1414
    %v1743 = vpack.c.b16 %v1423, %v1415
    %v1744 = vpack.c.b16 %v1424, %v1416
    %v1745 = vpack.c.b16 %v1425, %v1417
    %v1746 = vpack.c.b16 %v1426, %v1418
    %v1747 = vpack.c.b16 %v1427, %v1419
    %v1748 = vpack.c.b16 %v1428, %v1420
    %v1749 = vpack.c.b16 %v1429, %v1421
    %v1750 = vpack.c.b16 %v1438, %v1430
    %v1751 = vpack.c.b16 %v1439, %v1431
    %v1752 = vpack.c.b16 %v1440, %v1432
    %v1753 = vpack.c.b16 %v1441, %v1433
    %v1754 = vpack.c.b16 %v1442, %v1434
    %v1755 = vpack.c.b16 %v1443, %v1435
    %v1756 = vpack.c.b16 %v1444, %v1436
    %v1757 = vpack.c.b16 %v1445, %v1437
    %v1758 = vpack.c.b16 %v1454, %v1446
    %v1759 = vpack.c.b16 %v1455, %v1447
    %v1760 = vpack.c.b16 %v1456, %v1448
    %v1761 = vpack.c.b16 %v1457, %v1449
    %v1762 = vpack.c.b16 %v1458, %v1450
    %v1763 = vpack.c.b16 %v1459, %v1451
    %v1764 = vpack.c.b16 %v1460, %v1452
    %v1765 = vpack.c.b16 %v1461, %v1453
    %v1766 = vpack.c.b16 %v1470, %v1462
    %v1767 = vpack.c.b16 %v1471, %v1463
    %v1768 = vpack.c.b16 %v1472, %v1464
    %v1769 = vpack.c.b16 %v1473, %v1465
    %v1770 = vpack.c.b16 %v1474, %v1466
    %v1771 = vpack.c.b16 %v1475, %v1467
    %v1772 = vpack.c.b16 %v1476, %v1468
    %v1773 = vpack.c.b16 %v1477, %v1469
    %v1774 = vpack.c.b16 %v1486, %v1478
    %v1775 = vpack.c.b16 %v1487, %v1479
    %v1776 = vpack.c.b16 %v1488, %v1480
    %v1777 = vpack.c.b16 %v1489, %v1481
    %v1778 = vpack.c.b16 %v1490, %v1482
    %v1779 = vpack.c.b16 %v1491, %v1483
    %v1780 = vpack.c.b16 %v1492, %v1484
    %v1781 = vpack.c.b16 %v1493, %v1485
    %v1782 = vpack.c.b16 %v1502, %v1494
    %v1783 = vpack.c.b16 %v1503, %v1495
    %v1784 = vpack.c.b16 %v1504, %v1496
    %v1785 = vpack.c.b16 %v1505, %v1497
    %v1786 = vpack.c.b16 %v1506, %v1498
    %v1787 = vpack.c.b16 %v1507, %v1499
    %v1788 = vpack.c.b16 %v1508, %v1500
    %v1789 = vpack.c.b16 %v1509, %v1501
    %v1790 = vpack.c.b16 %v1518, %v1510
    %v1791 = vpack.c.b16 %v1519, %v1511
    %v1792 = vpack.c.b16 %v1520, %v1512
    %v1793 = vpack.c.b16 %v1521, %v1513
    %v1794 = vpack.c.b16 %v1522, %v1514
    %v1795 = vpack.c.b16 %v1523, %v1515
    %v1796 = vpack.c.b16 %v1524, %v1516
    %v1797 = vpack.c.b16 %v1525, %v1517
    %v1798 = vpack.c.b16 %v1534, %v1526
    %v1799 = vpack.c.b16 %v1535, %v1527
    %v1800 = vpack.c.b16 %v1536, %v1528
    %v1801 = vpack.c.b16 %v1537, %v1529
    %v1802 = vpack.c.b16 %v1538, %v1530
    %v1803 = vpack.c.b16 %v1539, %v1531
    %v1804 = vpack.c.b16 %v1540, %v1532
    %v1805 = vpack.c.b16 %v1541, %v1533
    %v1806 = vpack.c.b16 %v1550, %v1542
    %v1807 = vpack.c.b16 %v1551, %v1543
    %v1808 = vpack.c.b16 %v1552, %v1544
    %v1809 = vpack.c.b16 %v1553, %v1545
    %v1810 = vpack.c.b16 %v1554, %v1546
    %v1811 = vpack.c.b16 %v1555, %v1547
    %v1812 = vpack.c.b16 %v1556, %v1548
    %v1813 = vpack.c.b16 %v1557, %v1549
    %2070 = vmatprep.subr.bf16.mxu0 %v1559
    %2071 = vmatpush1.bf16.msra.mxu0 %v1558
    %2072 = vmatprep.subr.bf16.mxu0 %v1567
    %2073 = vmatpush1.bf16.msra.mxu0 %v1566
    %2074 = vmatprep.subr.bf16.mxu0 %v1575
    %2075 = vmatpush1.bf16.msra.mxu0 %v1574
    %2076 = vmatprep.subr.bf16.mxu0 %v1583
    %2077 = vmatpush1.bf16.msra.mxu0 %v1582
    %2078 = vmatprep.subr.bf16.mxu0 %v1591
    %2079 = vmatpush1.bf16.msra.mxu0 %v1590
    %2080 = vmatprep.subr.bf16.mxu0 %v1599
    %2081 = vmatpush1.bf16.msra.mxu0 %v1598
    %2082 = vmatprep.subr.bf16.mxu0 %v1607
    %2083 = vmatpush1.bf16.msra.mxu0 %v1606
    %2084 = vmatprep.subr.bf16.mxu0 %v1615
    %2085 = vmatpush1.bf16.msra.mxu0 %v1614
    %2086 = vmatprep.subr.bf16.mxu0 %v1623
    %2087 = vmatpush1.bf16.msra.mxu0 %v1622
    %2088 = vmatprep.subr.bf16.mxu0 %v1631
    %2089 = vmatpush1.bf16.msra.mxu0 %v1630
    %2090 = vmatprep.subr.bf16.mxu0 %v1639
    %2091 = vmatpush1.bf16.msra.mxu0 %v1638
    %2092 = vmatprep.subr.bf16.mxu0 %v1647
    %2093 = vmatpush1.bf16.msra.mxu0 %v1646
    %2094 = vmatprep.subr.bf16.mxu0 %v1655
    %2095 = vmatpush1.bf16.msra.mxu0 %v1654
    %2096 = vmatprep.subr.bf16.mxu0 %v1663
    %2097 = vmatpush1.bf16.msra.mxu0 %v1662
    %2098 = vmatprep.subr.bf16.mxu0 %v1671
    %2099 = vmatpush1.bf16.msra.mxu0 %v1670
    %2100 = vmatprep.subr.bf16.mxu0 %v1679
    %2101 = vmatpush1.bf16.msra.mxu0 %v1678
    %2102 = vmatprep.mubr.bf16.mxu0 %v477
    %2103 = vmatmul.mubr.bf16.gmra.mrb[0].mxu0 %v476
    %v2104 = vpop.f32.mrb[0].mxu0
    %v2105 = vadd.f32 %v753, %v2104
    %v2106 = vpop.f32.mrb[0].mxu0
    %v2107 = vadd.f32 %v757, %v2106
    %v2108 = vpop.f32.mrb[0].mxu0
    %v2109 = vadd.f32 %v753, %v2108
    %v2110 = vpop.f32.mrb[0].mxu0
    %v2111 = vadd.f32 %v757, %v2110
    %2112 = vmatprep.mubr.bf16.mxu0 %v481
    %2113 = vmatmul.mubr.bf16.gmra.mrb[0].mxu0 %v480
    %v2114 = vpop.f32.mrb[0].mxu0
    %v2115 = vadd.f32 %v753, %v2114
    %v2116 = vpop.f32.mrb[0].mxu0
    %v2117 = vadd.f32 %v757, %v2116
    %v2118 = vpop.f32.mrb[0].mxu0
    %v2119 = vadd.f32 %v753, %v2118
    %v2120 = vpop.f32.mrb[0].mxu0
    %v2121 = vadd.f32 %v757, %v2120
    %2122 = vmatprep.mubr.bf16.mxu0 %v485
    %2123 = vmatmul.mubr.bf16.gmra.mrb[0].mxu0 %v484
    %v2124 = vpop.f32.mrb[0].mxu0
    %v2125 = vadd.f32 %v753, %v2124
    %v2126 = vpop.f32.mrb[0].mxu0
    %v2127 = vadd.f32 %v757, %v2126
    %v2128 = vpop.f32.mrb[0].mxu0
    %v2129 = vadd.f32 %v753, %v2128
    %v2130 = vpop.f32.mrb[0].mxu0
    %v2131 = vadd.f32 %v757, %v2130
    %2132 = vmatprep.mubr.bf16.mxu0 %v489
    %2133 = vmatmul.mubr.bf16.gmra.mrb[0].mxu0 %v488
    %v2134 = vpop.f32.mrb[0].mxu0
    %v2135 = vadd.f32 %v753, %v2134
    %v2136 = vpop.f32.mrb[0].mxu0
    %v2137 = vadd.f32 %v757, %v2136
    %v2138 = vpop.f32.mrb[0].mxu0
    %v2139 = vadd.f32 %v753, %v2138
    %v2140 = vpop.f32.mrb[0].mxu0
    %v2141 = vadd.f32 %v757, %v2140
    %2142 = vdwg.mxu0
    %2143 = vmatprep.subr.bf16.mxu0 %v1687
    %2144 = vmatpush1.bf16.msra.mxu0 %v1686
    %2145 = vmatprep.subr.bf16.mxu0 %v1695
    %2146 = vmatpush1.bf16.msra.mxu0 %v1694
    %2147 = vmatprep.subr.bf16.mxu0 %v1703
    %2148 = vmatpush1.bf16.msra.mxu0 %v1702
    %2149 = vmatprep.subr.bf16.mxu0 %v1711
    %2150 = vmatpush1.bf16.msra.mxu0 %v1710
    %2151 = vmatprep.subr.bf16.mxu0 %v1719
    %2152 = vmatpush1.bf16.msra.mxu0 %v1718
    %2153 = vmatprep.subr.bf16.mxu0 %v1727
    %2154 = vmatpush1.bf16.msra.mxu0 %v1726
    %2155 = vmatprep.subr.bf16.mxu0 %v1735
    %2156 = vmatpush1.bf16.msra.mxu0 %v1734
    %2157 = vmatprep.subr.bf16.mxu0 %v1743
    %2158 = vmatpush1.bf16.msra.mxu0 %v1742
    %2159 = vmatprep.subr.bf16.mxu0 %v1751
    %2160 = vmatpush1.bf16.msra.mxu0 %v1750
    %2161 = vmatprep.subr.bf16.mxu0 %v1759
    %2162 = vmatpush1.bf16.msra.mxu0 %v1758
    %2163 = vmatprep.subr.bf16.mxu0 %v1767
    %2164 = vmatpush1.bf16.msra.mxu0 %v1766
    %2165 = vmatprep.subr.bf16.mxu0 %v1775
    %2166 = vmatpush1.bf16.msra.mxu0 %v1774
    %2167 = vmatprep.subr.bf16.mxu0 %v1783
    %2168 = vmatpush1.bf16.msra.mxu0 %v1782
    %2169 = vmatprep.subr.bf16.mxu0 %v1791
    %2170 = vmatpush1.bf16.msra.mxu0 %v1790
    %2171 = vmatprep.subr.bf16.mxu0 %v1799
    %2172 = vmatpush1.bf16.msra.mxu0 %v1798
    %2173 = vmatprep.subr.bf16.mxu0 %v1807
    %2174 = vmatpush1.bf16.msra.mxu0 %v1806
    %2175 = vmatprep.mubr.bf16.mxu0 %v479
    %2176 = vmatmul.mubr.bf16.gmra.mrb[0].mxu0 %v478
    %v2177 = vpop.f32.mrb[0].mxu0
    %v2178 = vadd.f32 %v2105, %v2177
    %v2179 = vpop.f32.mrb[0].mxu0
    %v2180 = vadd.f32 %v2107, %v2179
    %v2181 = vpop.f32.mrb[0].mxu0
    %v2182 = vadd.f32 %v2109, %v2181
    %v2183 = vpop.f32.mrb[0].mxu0
    %v2184 = vadd.f32 %v2111, %v2183
    %2185 = vmatprep.mubr.bf16.mxu0 %v483
    %2186 = vmatmul.mubr.bf16.gmra.mrb[0].mxu0 %v482
    %v2187 = vpop.f32.mrb[0].mxu0
    %v2188 = vadd.f32 %v2115, %v2187
    %v2189 = vpop.f32.mrb[0].mxu0
    %v2190 = vadd.f32 %v2117, %v2189
    %v2191 = vpop.f32.mrb[0].mxu0
    %v2192 = vadd.f32 %v2119, %v2191
    %v2193 = vpop.f32.mrb[0].mxu0
    %v2194 = vadd.f32 %v2121, %v2193
    %2195 = vmatprep.mubr.bf16.mxu0 %v487
    %2196 = vmatmul.mubr.bf16.gmra.mrb[0].mxu0 %v486
    %v2197 = vpop.f32.mrb[0].mxu0
    %v2198 = vadd.f32 %v2125, %v2197
    %v2199 = vpop.f32.mrb[0].mxu0
    %v2200 = vadd.f32 %v2127, %v2199
    %v2201 = vpop.f32.mrb[0].mxu0
    %v2202 = vadd.f32 %v2129, %v2201
    %v2203 = vpop.f32.mrb[0].mxu0
    %v2204 = vadd.f32 %v2131, %v2203
    %2205 = vmatprep.mubr.bf16.mxu0 %v491
    %2206 = vmatmul.mubr.bf16.gmra.mrb[0].mxu0 %v490
    %v2207 = vpop.f32.mrb[0].mxu0
    %v2208 = vadd.f32 %v2135, %v2207
    %v2209 = vpop.f32.mrb[0].mxu0
    %v2210 = vadd.f32 %v2137, %v2209
    %v2211 = vpop.f32.mrb[0].mxu0
    %v2212 = vadd.f32 %v2139, %v2211
    %v2213 = vpop.f32.mrb[0].mxu0
    %v2214 = vadd.f32 %v2141, %v2213
    %2215 = vdwg.mxu0
    %2216 = vmatprep.subr.bf16.mxu0 %v1561
    %2217 = vmatpush1.bf16.msra.mxu0 %v1560
    %2218 = vmatprep.subr.bf16.mxu0 %v1569
    %2219 = vmatpush1.bf16.msra.mxu0 %v1568
    %2220 = vmatprep.subr.bf16.mxu0 %v1577
    %2221 = vmatpush1.bf16.msra.mxu0 %v1576
    %2222 = vmatprep.subr.bf16.mxu0 %v1585
    %2223 = vmatpush1.bf16.msra.mxu0 %v1584
    %2224 = vmatprep.subr.bf16.mxu0 %v1593
    %2225 = vmatpush1.bf16.msra.mxu0 %v1592
    %2226 = vmatprep.subr.bf16.mxu0 %v1601
    %2227 = vmatpush1.bf16.msra.mxu0 %v1600
    %2228 = vmatprep.subr.bf16.mxu0 %v1609
    %2229 = vmatpush1.bf16.msra.mxu0 %v1608
    %2230 = vmatprep.subr.bf16.mxu0 %v1617
    %2231 = vmatpush1.bf16.msra.mxu0 %v1616
    %2232 = vmatprep.subr.bf16.mxu0 %v1625
    %2233 = vmatpush1.bf16.msra.mxu0 %v1624
    %2234 = vmatprep.subr.bf16.mxu0 %v1633
    %2235 = vmatpush1.bf16.msra.mxu0 %v1632
    %2236 = vmatprep.subr.bf16.mxu0 %v1641
    %2237 = vmatpush1.bf16.msra.mxu0 %v1640
    %2238 = vmatprep.subr.bf16.mxu0 %v1649
    %2239 = vmatpush1.bf16.msra.mxu0 %v1648
    %2240 = vmatprep.subr.bf16.mxu0 %v1657
    %2241 = vmatpush1.bf16.msra.mxu0 %v1656
    %2242 = vmatprep.subr.bf16.mxu0 %v1665
    %2243 = vmatpush1.bf16.msra.mxu0 %v1664
    %2244 = vmatprep.subr.bf16.mxu0 %v1673
    %2245 = vmatpush1.bf16.msra.mxu0 %v1672
    %2246 = vmatprep.subr.bf16.mxu0 %v1681
    %2247 = vmatpush1.bf16.msra.mxu0 %v1680
    %2248 = vmatprep.mubr.bf16.mxu0 %v477
    %2249 = vmatmul.mubr.bf16.gmra.mrb[0].mxu0 %v476
    %v2250 = vpop.f32.mrb[0].mxu0
    %v2251 = vadd.f32 %v761, %v2250
    %v2252 = vpop.f32.mrb[0].mxu0
    %v2253 = vadd.f32 %v765, %v2252
    %v2254 = vpop.f32.mrb[0].mxu0
    %v2255 = vadd.f32 %v761, %v2254
    %v2256 = vpop.f32.mrb[0].mxu0
    %v2257 = vadd.f32 %v765, %v2256
    %2258 = vmatprep.mubr.bf16.mxu0 %v481
    %2259 = vmatmul.mubr.bf16.gmra.mrb[0].mxu0 %v480
    %v2260 = vpop.f32.mrb[0].mxu0
    %v2261 = vadd.f32 %v761, %v2260
    %v2262 = vpop.f32.mrb[0].mxu0
    %v2263 = vadd.f32 %v765, %v2262
    %v2264 = vpop.f32.mrb[0].mxu0
    %v2265 = vadd.f32 %v761, %v2264
    %v2266 = vpop.f32.mrb[0].mxu0
    %v2267 = vadd.f32 %v765, %v2266
    %2268 = vmatprep.mubr.bf16.mxu0 %v485
    %2269 = vmatmul.mubr.bf16.gmra.mrb[0].mxu0 %v484
    %v2270 = vpop.f32.mrb[0].mxu0
    %v2271 = vadd.f32 %v761, %v2270
    %v2272 = vpop.f32.mrb[0].mxu0
    %v2273 = vadd.f32 %v765, %v2272
    %v2274 = vpop.f32.mrb[0].mxu0
    %v2275 = vadd.f32 %v761, %v2274
    %v2276 = vpop.f32.mrb[0].mxu0
    %v2277 = vadd.f32 %v765, %v2276
    %2278 = vmatprep.mubr.bf16.mxu0 %v489
    %2279 = vmatmul.mubr.bf16.gmra.mrb[0].mxu0 %v488
    %v2280 = vpop.f32.mrb[0].mxu0
    %v2281 = vadd.f32 %v761, %v2280
    %v2282 = vpop.f32.mrb[0].mxu0
    %v2283 = vadd.f32 %v765, %v2282
    %v2284 = vpop.f32.mrb[0].mxu0
    %v2285 = vadd.f32 %v761, %v2284
    %v2286 = vpop.f32.mrb[0].mxu0
    %v2287 = vadd.f32 %v765, %v2286
    %2288 = vdwg.mxu0
    %2289 = vmatprep.subr.bf16.mxu0 %v1689
    %2290 = vmatpush1.bf16.msra.mxu0 %v1688
    %2291 = vmatprep.subr.bf16.mxu0 %v1697
    %2292 = vmatpush1.bf16.msra.mxu0 %v1696
    %2293 = vmatprep.subr.bf16.mxu0 %v1705
    %2294 = vmatpush1.bf16.msra.mxu0 %v1704
    %2295 = vmatprep.subr.bf16.mxu0 %v1713
    %2296 = vmatpush1.bf16.msra.mxu0 %v1712
    %2297 = vmatprep.subr.bf16.mxu0 %v1721
    %2298 = vmatpush1.bf16.msra.mxu0 %v1720
    %2299 = vmatprep.subr.bf16.mxu0 %v1729
    %2300 = vmatpush1.bf16.msra.mxu0 %v1728
    %2301 = vmatprep.subr.bf16.mxu0 %v1737
    %2302 = vmatpush1.bf16.msra.mxu0 %v1736
    %2303 = vmatprep.subr.bf16.mxu0 %v1745
    %2304 = vmatpush1.bf16.msra.mxu0 %v1744
    %2305 = vmatprep.subr.bf16.mxu0 %v1753
    %2306 = vmatpush1.bf16.msra.mxu0 %v1752
    %2307 = vmatprep.subr.bf16.mxu0 %v1761
    %2308 = vmatpush1.bf16.msra.mxu0 %v1760
    %2309 = vmatprep.subr.bf16.mxu0 %v1769
    %2310 = vmatpush1.bf16.msra.mxu0 %v1768
    %2311 = vmatprep.subr.bf16.mxu0 %v1777
    %2312 = vmatpush1.bf16.msra.mxu0 %v1776
    %2313 = vmatprep.subr.bf16.mxu0 %v1785
    %2314 = vmatpush1.bf16.msra.mxu0 %v1784
    %2315 = vmatprep.subr.bf16.mxu0 %v1793
    %2316 = vmatpush1.bf16.msra.mxu0 %v1792
    %2317 = vmatprep.subr.bf16.mxu0 %v1801
    %2318 = vmatpush1.bf16.msra.mxu0 %v1800
    %2319 = vmatprep.subr.bf16.mxu0 %v1809
    %2320 = vmatpush1.bf16.msra.mxu0 %v1808
    %2321 = vmatprep.mubr.bf16.mxu0 %v479
    %2322 = vmatmul.mubr.bf16.gmra.mrb[0].mxu0 %v478
    %v2323 = vpop.f32.mrb[0].mxu0
    %v2324 = vadd.f32 %v2251, %v2323
    %v2325 = vpop.f32.mrb[0].mxu0
    %v2326 = vadd.f32 %v2253, %v2325
    %v2327 = vpop.f32.mrb[0].mxu0
    %v2328 = vadd.f32 %v2255, %v2327
    %v2329 = vpop.f32.mrb[0].mxu0
    %v2330 = vadd.f32 %v2257, %v2329
    %2331 = vmatprep.mubr.bf16.mxu0 %v483
    %2332 = vmatmul.mubr.bf16.gmra.mrb[0].mxu0 %v482
    %v2333 = vpop.f32.mrb[0].mxu0
    %v2334 = vadd.f32 %v2261, %v2333
    %v2335 = vpop.f32.mrb[0].mxu0
    %v2336 = vadd.f32 %v2263, %v2335
    %v2337 = vpop.f32.mrb[0].mxu0
    %v2338 = vadd.f32 %v2265, %v2337
    %v2339 = vpop.f32.mrb[0].mxu0
    %v2340 = vadd.f32 %v2267, %v2339
    %2341 = vmatprep.mubr.bf16.mxu0 %v487
    %2342 = vmatmul.mubr.bf16.gmra.mrb[0].mxu0 %v486
    %v2343 = vpop.f32.mrb[0].mxu0
    %v2344 = vadd.f32 %v2271, %v2343
    %v2345 = vpop.f32.mrb[0].mxu0
    %v2346 = vadd.f32 %v2273, %v2345
    %v2347 = vpop.f32.mrb[0].mxu0
    %v2348 = vadd.f32 %v2275, %v2347
    %v2349 = vpop.f32.mrb[0].mxu0
    %v2350 = vadd.f32 %v2277, %v2349
    %2351 = vmatprep.mubr.bf16.mxu0 %v491
    %2352 = vmatmul.mubr.bf16.gmra.mrb[0].mxu0 %v490
    %v2353 = vpop.f32.mrb[0].mxu0
    %v2354 = vadd.f32 %v2281, %v2353
    %v2355 = vpop.f32.mrb[0].mxu0
    %v2356 = vadd.f32 %v2283, %v2355
    %v2357 = vpop.f32.mrb[0].mxu0
    %v2358 = vadd.f32 %v2285, %v2357
    %v2359 = vpop.f32.mrb[0].mxu0
    %v2360 = vadd.f32 %v2287, %v2359
    %2361 = vdwg.mxu0
    %2362 = vmatprep.subr.bf16.mxu0 %v1563
    %2363 = vmatpush1.bf16.msra.mxu0 %v1562
    %2364 = vmatprep.subr.bf16.mxu0 %v1571
    %2365 = vmatpush1.bf16.msra.mxu0 %v1570
    %2366 = vmatprep.subr.bf16.mxu0 %v1579
    %2367 = vmatpush1.bf16.msra.mxu0 %v1578
    %2368 = vmatprep.subr.bf16.mxu0 %v1587
    %2369 = vmatpush1.bf16.msra.mxu0 %v1586
    %2370 = vmatprep.subr.bf16.mxu0 %v1595
    %2371 = vmatpush1.bf16.msra.mxu0 %v1594
    %2372 = vmatprep.subr.bf16.mxu0 %v1603
    %2373 = vmatpush1.bf16.msra.mxu0 %v1602
    %2374 = vmatprep.subr.bf16.mxu0 %v1611
    %2375 = vmatpush1.bf16.msra.mxu0 %v1610
    %2376 = vmatprep.subr.bf16.mxu0 %v1619
    %2377 = vmatpush1.bf16.msra.mxu0 %v1618
    %2378 = vmatprep.subr.bf16.mxu0 %v1627
    %2379 = vmatpush1.bf16.msra.mxu0 %v1626
    %2380 = vmatprep.subr.bf16.mxu0 %v1635
    %2381 = vmatpush1.bf16.msra.mxu0 %v1634
    %2382 = vmatprep.subr.bf16.mxu0 %v1643
    %2383 = vmatpush1.bf16.msra.mxu0 %v1642
    %2384 = vmatprep.subr.bf16.mxu0 %v1651
    %2385 = vmatpush1.bf16.msra.mxu0 %v1650
    %2386 = vmatprep.subr.bf16.mxu0 %v1659
    %2387 = vmatpush1.bf16.msra.mxu0 %v1658
    %2388 = vmatprep.subr.bf16.mxu0 %v1667
    %2389 = vmatpush1.bf16.msra.mxu0 %v1666
    %2390 = vmatprep.subr.bf16.mxu0 %v1675
    %2391 = vmatpush1.bf16.msra.mxu0 %v1674
    %2392 = vmatprep.subr.bf16.mxu0 %v1683
    %2393 = vmatpush1.bf16.msra.mxu0 %v1682
    %2394 = vmatprep.mubr.bf16.mxu0 %v477
    %2395 = vmatmul.mubr.bf16.gmra.mrb[0].mxu0 %v476
    %v2396 = vpop.f32.mrb[0].mxu0
    %v2397 = vadd.f32 %v769, %v2396
    %v2398 = vpop.f32.mrb[0].mxu0
    %v2399 = vadd.f32 %v773, %v2398
    %v2400 = vpop.f32.mrb[0].mxu0
    %v2401 = vadd.f32 %v769, %v2400
    %v2402 = vpop.f32.mrb[0].mxu0
    %v2403 = vadd.f32 %v773, %v2402
    %2404 = vmatprep.mubr.bf16.mxu0 %v481
    %2405 = vmatmul.mubr.bf16.gmra.mrb[0].mxu0 %v480
    %v2406 = vpop.f32.mrb[0].mxu0
    %v2407 = vadd.f32 %v769, %v2406
    %v2408 = vpop.f32.mrb[0].mxu0
    %v2409 = vadd.f32 %v773, %v2408
    %v2410 = vpop.f32.mrb[0].mxu0
    %v2411 = vadd.f32 %v769, %v2410
    %v2412 = vpop.f32.mrb[0].mxu0
    %v2413 = vadd.f32 %v773, %v2412
    %2414 = vmatprep.mubr.bf16.mxu0 %v485
    %2415 = vmatmul.mubr.bf16.gmra.mrb[0].mxu0 %v484
    %v2416 = vpop.f32.mrb[0].mxu0
    %v2417 = vadd.f32 %v769, %v2416
    %v2418 = vpop.f32.mrb[0].mxu0
    %v2419 = vadd.f32 %v773, %v2418
    %v2420 = vpop.f32.mrb[0].mxu0
    %v2421 = vadd.f32 %v769, %v2420
    %v2422 = vpop.f32.mrb[0].mxu0
    %v2423 = vadd.f32 %v773, %v2422
    %2424 = vmatprep.mubr.bf16.mxu0 %v489
    %2425 = vmatmul.mubr.bf16.gmra.mrb[0].mxu0 %v488
    %v2426 = vpop.f32.mrb[0].mxu0
    %v2427 = vadd.f32 %v769, %v2426
    %v2428 = vpop.f32.mrb[0].mxu0
    %v2429 = vadd.f32 %v773, %v2428
    %v2430 = vpop.f32.mrb[0].mxu0
    %v2431 = vadd.f32 %v769, %v2430
    %v2432 = vpop.f32.mrb[0].mxu0
    %v2433 = vadd.f32 %v773, %v2432
    %2434 = vdwg.mxu0
    %2435 = vmatprep.subr.bf16.mxu0 %v1691
    %2436 = vmatpush1.bf16.msra.mxu0 %v1690
    %2437 = vmatprep.subr.bf16.mxu0 %v1699
    %2438 = vmatpush1.bf16.msra.mxu0 %v1698
    %2439 = vmatprep.subr.bf16.mxu0 %v1707
    %2440 = vmatpush1.bf16.msra.mxu0 %v1706
    %2441 = vmatprep.subr.bf16.mxu0 %v1715
    %2442 = vmatpush1.bf16.msra.mxu0 %v1714
    %2443 = vmatprep.subr.bf16.mxu0 %v1723
    %2444 = vmatpush1.bf16.msra.mxu0 %v1722
    %2445 = vmatprep.subr.bf16.mxu0 %v1731
    %2446 = vmatpush1.bf16.msra.mxu0 %v1730
    %2447 = vmatprep.subr.bf16.mxu0 %v1739
    %2448 = vmatpush1.bf16.msra.mxu0 %v1738
    %2449 = vmatprep.subr.bf16.mxu0 %v1747
    %2450 = vmatpush1.bf16.msra.mxu0 %v1746
    %2451 = vmatprep.subr.bf16.mxu0 %v1755
    %2452 = vmatpush1.bf16.msra.mxu0 %v1754
    %2453 = vmatprep.subr.bf16.mxu0 %v1763
    %2454 = vmatpush1.bf16.msra.mxu0 %v1762
    %2455 = vmatprep.subr.bf16.mxu0 %v1771
    %2456 = vmatpush1.bf16.msra.mxu0 %v1770
    %2457 = vmatprep.subr.bf16.mxu0 %v1779
    %2458 = vmatpush1.bf16.msra.mxu0 %v1778
    %2459 = vmatprep.subr.bf16.mxu0 %v1787
    %2460 = vmatpush1.bf16.msra.mxu0 %v1786
    %2461 = vmatprep.subr.bf16.mxu0 %v1795
    %2462 = vmatpush1.bf16.msra.mxu0 %v1794
    %2463 = vmatprep.subr.bf16.mxu0 %v1803
    %2464 = vmatpush1.bf16.msra.mxu0 %v1802
    %2465 = vmatprep.subr.bf16.mxu0 %v1811
    %2466 = vmatpush1.bf16.msra.mxu0 %v1810
    %2467 = vmatprep.mubr.bf16.mxu0 %v479
    %2468 = vmatmul.mubr.bf16.gmra.mrb[0].mxu0 %v478
    %v2469 = vpop.f32.mrb[0].mxu0
    %v2470 = vadd.f32 %v2397, %v2469
    %v2471 = vpop.f32.mrb[0].mxu0
    %v2472 = vadd.f32 %v2399, %v2471
    %v2473 = vpop.f32.mrb[0].mxu0
    %v2474 = vadd.f32 %v2401, %v2473
    %v2475 = vpop.f32.mrb[0].mxu0
    %v2476 = vadd.f32 %v2403, %v2475
    %2477 = vmatprep.mubr.bf16.mxu0 %v483
    %2478 = vmatmul.mubr.bf16.gmra.mrb[0].mxu0 %v482
    %v2479 = vpop.f32.mrb[0].mxu0
    %v2480 = vadd.f32 %v2407, %v2479
    %v2481 = vpop.f32.mrb[0].mxu0
    %v2482 = vadd.f32 %v2409, %v2481
    %v2483 = vpop.f32.mrb[0].mxu0
    %v2484 = vadd.f32 %v2411, %v2483
    %v2485 = vpop.f32.mrb[0].mxu0
    %v2486 = vadd.f32 %v2413, %v2485
    %2487 = vmatprep.mubr.bf16.mxu0 %v487
    %2488 = vmatmul.mubr.bf16.gmra.mrb[0].mxu0 %v486
    %v2489 = vpop.f32.mrb[0].mxu0
    %v2490 = vadd.f32 %v2417, %v2489
    %v2491 = vpop.f32.mrb[0].mxu0
    %v2492 = vadd.f32 %v2419, %v2491
    %v2493 = vpop.f32.mrb[0].mxu0
    %v2494 = vadd.f32 %v2421, %v2493
    %v2495 = vpop.f32.mrb[0].mxu0
    %v2496 = vadd.f32 %v2423, %v2495
    %2497 = vmatprep.mubr.bf16.mxu0 %v491
    %2498 = vmatmul.mubr.bf16.gmra.mrb[0].mxu0 %v490
    %v2499 = vpop.f32.mrb[0].mxu0
    %v2500 = vadd.f32 %v2427, %v2499
    %v2501 = vpop.f32.mrb[0].mxu0
    %v2502 = vadd.f32 %v2429, %v2501
    %v2503 = vpop.f32.mrb[0].mxu0
    %v2504 = vadd.f32 %v2431, %v2503
    %v2505 = vpop.f32.mrb[0].mxu0
    %v2506 = vadd.f32 %v2433, %v2505
    %2507 = vdwg.mxu0
    %2508 = vmatprep.subr.bf16.mxu0 %v1565
    %2509 = vmatpush1.bf16.msra.mxu0 %v1564
    %2510 = vmatprep.subr.bf16.mxu0 %v1573
    %2511 = vmatpush1.bf16.msra.mxu0 %v1572
    %2512 = vmatprep.subr.bf16.mxu0 %v1581
    %2513 = vmatpush1.bf16.msra.mxu0 %v1580
    %2514 = vmatprep.subr.bf16.mxu0 %v1589
    %2515 = vmatpush1.bf16.msra.mxu0 %v1588
    %2516 = vmatprep.subr.bf16.mxu0 %v1597
    %2517 = vmatpush1.bf16.msra.mxu0 %v1596
    %2518 = vmatprep.subr.bf16.mxu0 %v1605
    %2519 = vmatpush1.bf16.msra.mxu0 %v1604
    %2520 = vmatprep.subr.bf16.mxu0 %v1613
    %2521 = vmatpush1.bf16.msra.mxu0 %v1612
    %2522 = vmatprep.subr.bf16.mxu0 %v1621
    %2523 = vmatpush1.bf16.msra.mxu0 %v1620
    %2524 = vmatprep.subr.bf16.mxu0 %v1629
    %2525 = vmatpush1.bf16.msra.mxu0 %v1628
    %2526 = vmatprep.subr.bf16.mxu0 %v1637
    %2527 = vmatpush1.bf16.msra.mxu0 %v1636
    %2528 = vmatprep.subr.bf16.mxu0 %v1645
    %2529 = vmatpush1.bf16.msra.mxu0 %v1644
    %2530 = vmatprep.subr.bf16.mxu0 %v1653
    %2531 = vmatpush1.bf16.msra.mxu0 %v1652
    %2532 = vmatprep.subr.bf16.mxu0 %v1661
    %2533 = vmatpush1.bf16.msra.mxu0 %v1660
    %2534 = vmatprep.subr.bf16.mxu0 %v1669
    %2535 = vmatpush1.bf16.msra.mxu0 %v1668
    %2536 = vmatprep.subr.bf16.mxu0 %v1677
    %2537 = vmatpush1.bf16.msra.mxu0 %v1676
    %2538 = vmatprep.subr.bf16.mxu0 %v1685
    %2539 = vmatpush1.bf16.msra.mxu0 %v1684
    %2540 = vmatprep.mubr.bf16.mxu0 %v477
    %2541 = vmatmul.mubr.bf16.gmra.mrb[0].mxu0 %v476
    %v2542 = vpop.f32.mrb[0].mxu0
    %v2543 = vadd.f32 %v777, %v2542
    %v2544 = vpop.f32.mrb[0].mxu0
    %v2545 = vadd.f32 %v781, %v2544
    %v2546 = vpop.f32.mrb[0].mxu0
    %v2547 = vadd.f32 %v777, %v2546
    %v2548 = vpop.f32.mrb[0].mxu0
    %v2549 = vadd.f32 %v781, %v2548
    %2550 = vmatprep.mubr.bf16.mxu0 %v481
    %2551 = vmatmul.mubr.bf16.gmra.mrb[0].mxu0 %v480
    %v2552 = vpop.f32.mrb[0].mxu0
    %v2553 = vadd.f32 %v777, %v2552
    %v2554 = vpop.f32.mrb[0].mxu0
    %v2555 = vadd.f32 %v781, %v2554
    %v2556 = vpop.f32.mrb[0].mxu0
    %v2557 = vadd.f32 %v777, %v2556
    %v2558 = vpop.f32.mrb[0].mxu0
    %v2559 = vadd.f32 %v781, %v2558
    %2560 = vmatprep.mubr.bf16.mxu0 %v485
    %2561 = vmatmul.mubr.bf16.gmra.mrb[0].mxu0 %v484
    %v2562 = vpop.f32.mrb[0].mxu0
    %v2563 = vadd.f32 %v777, %v2562
    %v2564 = vpop.f32.mrb[0].mxu0
    %v2565 = vadd.f32 %v781, %v2564
    %v2566 = vpop.f32.mrb[0].mxu0
    %v2567 = vadd.f32 %v777, %v2566
    %v2568 = vpop.f32.mrb[0].mxu0
    %v2569 = vadd.f32 %v781, %v2568
    %2570 = vmatprep.mubr.bf16.mxu0 %v489
    %2571 = vmatmul.mubr.bf16.gmra.mrb[0].mxu0 %v488
    %v2572 = vpop.f32.mrb[0].mxu0
    %v2573 = vadd.f32 %v777, %v2572
    %v2574 = vpop.f32.mrb[0].mxu0
    %v2575 = vadd.f32 %v781, %v2574
    %v2576 = vpop.f32.mrb[0].mxu0
    %v2577 = vadd.f32 %v777, %v2576
    %v2578 = vpop.f32.mrb[0].mxu0
    %v2579 = vadd.f32 %v781, %v2578
    %2580 = vdwg.mxu0
    %2581 = vmatprep.subr.bf16.mxu0 %v1693
    %2582 = vmatpush1.bf16.msra.mxu0 %v1692
    %2583 = vmatprep.subr.bf16.mxu0 %v1701
    %2584 = vmatpush1.bf16.msra.mxu0 %v1700
    %2585 = vmatprep.subr.bf16.mxu0 %v1709
    %2586 = vmatpush1.bf16.msra.mxu0 %v1708
    %2587 = vmatprep.subr.bf16.mxu0 %v1717
    %2588 = vmatpush1.bf16.msra.mxu0 %v1716
    %2589 = vmatprep.subr.bf16.mxu0 %v1725
    %2590 = vmatpush1.bf16.msra.mxu0 %v1724
    %2591 = vmatprep.subr.bf16.mxu0 %v1733
    %2592 = vmatpush1.bf16.msra.mxu0 %v1732
    %2593 = vmatprep.subr.bf16.mxu0 %v1741
    %2594 = vmatpush1.bf16.msra.mxu0 %v1740
    %2595 = vmatprep.subr.bf16.mxu0 %v1749
    %2596 = vmatpush1.bf16.msra.mxu0 %v1748
    %2597 = vmatprep.subr.bf16.mxu0 %v1757
    %2598 = vmatpush1.bf16.msra.mxu0 %v1756
    %2599 = vmatprep.subr.bf16.mxu0 %v1765
    %2600 = vmatpush1.bf16.msra.mxu0 %v1764
    %2601 = vmatprep.subr.bf16.mxu0 %v1773
    %2602 = vmatpush1.bf16.msra.mxu0 %v1772
    %2603 = vmatprep.subr.bf16.mxu0 %v1781
    %2604 = vmatpush1.bf16.msra.mxu0 %v1780
    %2605 = vmatprep.subr.bf16.mxu0 %v1789
    %2606 = vmatpush1.bf16.msra.mxu0 %v1788
    %2607 = vmatprep.subr.bf16.mxu0 %v1797
    %2608 = vmatpush1.bf16.msra.mxu0 %v1796
    %2609 = vmatprep.subr.bf16.mxu0 %v1805
    %2610 = vmatpush1.bf16.msra.mxu0 %v1804
    %2611 = vmatprep.subr.bf16.mxu0 %v1813
    %2612 = vmatpush1.bf16.msra.mxu0 %v1812
    %2613 = vmatprep.mubr.bf16.mxu0 %v479
    %2614 = vmatmul.mubr.bf16.gmra.mrb[0].mxu0 %v478
    %v2615 = vpop.f32.mrb[0].mxu0
    %v2616 = vadd.f32 %v2543, %v2615
    %v2617 = vpop.f32.mrb[0].mxu0
    %v2618 = vadd.f32 %v2545, %v2617
    %v2619 = vpop.f32.mrb[0].mxu0
    %v2620 = vadd.f32 %v2547, %v2619
    %v2621 = vpop.f32.mrb[0].mxu0
    %v2622 = vadd.f32 %v2549, %v2621
    %2623 = vmatprep.mubr.bf16.mxu0 %v483
    %2624 = vmatmul.mubr.bf16.gmra.mrb[0].mxu0 %v482
    %v2625 = vpop.f32.mrb[0].mxu0
    %v2626 = vadd.f32 %v2553, %v2625
    %v2627 = vpop.f32.mrb[0].mxu0
    %v2628 = vadd.f32 %v2555, %v2627
    %v2629 = vpop.f32.mrb[0].mxu0
    %v2630 = vadd.f32 %v2557, %v2629
    %v2631 = vpop.f32.mrb[0].mxu0
    %v2632 = vadd.f32 %v2559, %v2631
    %2633 = vmatprep.mubr.bf16.mxu0 %v487
    %2634 = vmatmul.mubr.bf16.gmra.mrb[0].mxu0 %v486
    %v2635 = vpop.f32.mrb[0].mxu0
    %v2636 = vadd.f32 %v2563, %v2635
    %v2637 = vpop.f32.mrb[0].mxu0
    %v2638 = vadd.f32 %v2565, %v2637
    %v2639 = vpop.f32.mrb[0].mxu0
    %v2640 = vadd.f32 %v2567, %v2639
    %v2641 = vpop.f32.mrb[0].mxu0
    %v2642 = vadd.f32 %v2569, %v2641
    %2643 = vmatprep.mubr.bf16.mxu0 %v491
    %2644 = vmatmul.mubr.bf16.gmra.mrb[0].mxu0 %v490
    %v2645 = vpop.f32.mrb[0].mxu0
    %v2646 = vadd.f32 %v2573, %v2645
    %v2647 = vpop.f32.mrb[0].mxu0
    %v2648 = vadd.f32 %v2575, %v2647
    %v2649 = vpop.f32.mrb[0].mxu0
    %v2650 = vadd.f32 %v2577, %v2649
    %v2651 = vpop.f32.mrb[0].mxu0
    %v2652 = vadd.f32 %v2579, %v2651
    %2653 = vdwg.mxu0
    %v2654 = vmax.f32 %v2178, 0.0
    %v2655 = vmax.f32 %v2180, 0.0
    %v2656 = vmax.f32 %v2324, 0.0
    %v2657 = vmax.f32 %v2326, 0.0
    %v2658 = vmax.f32 %v2470, 0.0
    %v2659 = vmax.f32 %v2472, 0.0
    %v2660 = vmax.f32 %v2616, 0.0
    %v2661 = vmax.f32 %v2618, 0.0
    %v2662 = vmax.f32 %v2182, 0.0
    %v2663 = vmax.f32 %v2184, 0.0
    %v2664 = vmax.f32 %v2328, 0.0
    %v2665 = vmax.f32 %v2330, 0.0
    %v2666 = vmax.f32 %v2474, 0.0
    %v2667 = vmax.f32 %v2476, 0.0
    %v2668 = vmax.f32 %v2620, 0.0
    %v2669 = vmax.f32 %v2622, 0.0
    %v2670 = vmax.f32 %v2188, 0.0
    %v2671 = vmax.f32 %v2190, 0.0
    %v2672 = vmax.f32 %v2334, 0.0
    %v2673 = vmax.f32 %v2336, 0.0
    %v2674 = vmax.f32 %v2480, 0.0
    %v2675 = vmax.f32 %v2482, 0.0
    %v2676 = vmax.f32 %v2626, 0.0
    %v2677 = vmax.f32 %v2628, 0.0
    %v2678 = vmax.f32 %v2192, 0.0
    %v2679 = vmax.f32 %v2194, 0.0
    %v2680 = vmax.f32 %v2338, 0.0
    %v2681 = vmax.f32 %v2340, 0.0
    %v2682 = vmax.f32 %v2484, 0.0
    %v2683 = vmax.f32 %v2486, 0.0
    %v2684 = vmax.f32 %v2630, 0.0
    %v2685 = vmax.f32 %v2632, 0.0
    %v2686 = vmax.f32 %v2198, 0.0
    %v2687 = vmax.f32 %v2200, 0.0
    %v2688 = vmax.f32 %v2344, 0.0
    %v2689 = vmax.f32 %v2346, 0.0
    %v2690 = vmax.f32 %v2490, 0.0
    %v2691 = vmax.f32 %v2492, 0.0
    %v2692 = vmax.f32 %v2636, 0.0
    %v2693 = vmax.f32 %v2638, 0.0
    %v2694 = vmax.f32 %v2202, 0.0
    %v2695 = vmax.f32 %v2204, 0.0
    %v2696 = vmax.f32 %v2348, 0.0
    %v2697 = vmax.f32 %v2350, 0.0
    %v2698 = vmax.f32 %v2494, 0.0
    %v2699 = vmax.f32 %v2496, 0.0
    %v2700 = vmax.f32 %v2640, 0.0
    %v2701 = vmax.f32 %v2642, 0.0
    %v2702 = vmax.f32 %v2208, 0.0
    %v2703 = vmax.f32 %v2210, 0.0
    %v2704 = vmax.f32 %v2354, 0.0
    %v2705 = vmax.f32 %v2356, 0.0
    %v2706 = vmax.f32 %v2500, 0.0
    %v2707 = vmax.f32 %v2502, 0.0
    %v2708 = vmax.f32 %v2646, 0.0
    %v2709 = vmax.f32 %v2648, 0.0
    %v2710 = vmax.f32 %v2212, 0.0
    %v2711 = vmax.f32 %v2214, 0.0
    %v2712 = vmax.f32 %v2358, 0.0
    %v2713 = vmax.f32 %v2360, 0.0
    %v2714 = vmax.f32 %v2504, 0.0
    %v2715 = vmax.f32 %v2506, 0.0
    %v2716 = vmax.f32 %v2650, 0.0
    %v2717 = vmax.f32 %v2652, 0.0
    %v2718 = vpack.c.bf16 %v2662, %v2654
    %v2719 = vpack.c.bf16 %v2663, %v2655
    %v2720 = vpack.c.bf16 %v2664, %v2656
    %v2721 = vpack.c.bf16 %v2665, %v2657
    %v2722 = vpack.c.bf16 %v2666, %v2658
    %v2723 = vpack.c.bf16 %v2667, %v2659
    %v2724 = vpack.c.bf16 %v2668, %v2660
    %v2725 = vpack.c.bf16 %v2669, %v2661
    %v2726 = vpack.c.bf16 %v2678, %v2670
    %v2727 = vpack.c.bf16 %v2679, %v2671
    %v2728 = vpack.c.bf16 %v2680, %v2672
    %v2729 = vpack.c.bf16 %v2681, %v2673
    %v2730 = vpack.c.bf16 %v2682, %v2674
    %v2731 = vpack.c.bf16 %v2683, %v2675
    %v2732 = vpack.c.bf16 %v2684, %v2676
    %v2733 = vpack.c.bf16 %v2685, %v2677
    %v2734 = vpack.c.bf16 %v2694, %v2686
    %v2735 = vpack.c.bf16 %v2695, %v2687
    %v2736 = vpack.c.bf16 %v2696, %v2688
    %v2737 = vpack.c.bf16 %v2697, %v2689
    %v2738 = vpack.c.bf16 %v2698, %v2690
    %v2739 = vpack.c.bf16 %v2699, %v2691
    %v2740 = vpack.c.bf16 %v2700, %v2692
    %v2741 = vpack.c.bf16 %v2701, %v2693
    %v2742 = vpack.c.bf16 %v2710, %v2702
    %v2743 = vpack.c.bf16 %v2711, %v2703
    %v2744 = vpack.c.bf16 %v2712, %v2704
    %v2745 = vpack.c.bf16 %v2713, %v2705
    %v2746 = vpack.c.bf16 %v2714, %v2706
    %v2747 = vpack.c.bf16 %v2715, %v2707
    %v2748 = vpack.c.bf16 %v2716, %v2708
    %v2749 = vpack.c.bf16 %v2717, %v2709
    %v2782 = vunpack.c.l.b16 %v2718
    %v2783 = vunpack.c.l.b16 %v2719
    %v2784 = vunpack.c.l.b16 %v2720
    %v2785 = vunpack.c.l.b16 %v2721
    %v2786 = vunpack.c.l.b16 %v2722
    %v2787 = vunpack.c.l.b16 %v2723
    %v2788 = vunpack.c.l.b16 %v2724
    %v2789 = vunpack.c.l.b16 %v2725
    %v2790 = vunpack.c.h.b16 %v2718
    %v2791 = vunpack.c.h.b16 %v2719
    %v2792 = vunpack.c.h.b16 %v2720
    %v2793 = vunpack.c.h.b16 %v2721
    %v2794 = vunpack.c.h.b16 %v2722
    %v2795 = vunpack.c.h.b16 %v2723
    %v2796 = vunpack.c.h.b16 %v2724
    %v2797 = vunpack.c.h.b16 %v2725
    %v2798 = vunpack.c.l.b16 %v2726
    %v2799 = vunpack.c.l.b16 %v2727
    %v2800 = vunpack.c.l.b16 %v2728
    %v2801 = vunpack.c.l.b16 %v2729
    %v2802 = vunpack.c.l.b16 %v2730
    %v2803 = vunpack.c.l.b16 %v2731
    %v2804 = vunpack.c.l.b16 %v2732
    %v2805 = vunpack.c.l.b16 %v2733
    %v2806 = vunpack.c.h.b16 %v2726
    %v2807 = vunpack.c.h.b16 %v2727
    %v2808 = vunpack.c.h.b16 %v2728
    %v2809 = vunpack.c.h.b16 %v2729
    %v2810 = vunpack.c.h.b16 %v2730
    %v2811 = vunpack.c.h.b16 %v2731
    %v2812 = vunpack.c.h.b16 %v2732
    %v2813 = vunpack.c.h.b16 %v2733
    %v2814 = vunpack.c.l.b16 %v2734
    %v2815 = vunpack.c.l.b16 %v2735
    %v2816 = vunpack.c.l.b16 %v2736
    %v2817 = vunpack.c.l.b16 %v2737
    %v2818 = vunpack.c.l.b16 %v2738
    %v2819 = vunpack.c.l.b16 %v2739
    %v2820 = vunpack.c.l.b16 %v2740
    %v2821 = vunpack.c.l.b16 %v2741
    %v2822 = vunpack.c.h.b16 %v2734
    %v2823 = vunpack.c.h.b16 %v2735
    %v2824 = vunpack.c.h.b16 %v2736
    %v2825 = vunpack.c.h.b16 %v2737
    %v2826 = vunpack.c.h.b16 %v2738
    %v2827 = vunpack.c.h.b16 %v2739
    %v2828 = vunpack.c.h.b16 %v2740
    %v2829 = vunpack.c.h.b16 %v2741
    %v2830 = vunpack.c.l.b16 %v2742
    %v2831 = vunpack.c.l.b16 %v2743
    %v2832 = vunpack.c.l.b16 %v2744
    %v2833 = vunpack.c.l.b16 %v2745
    %v2834 = vunpack.c.l.b16 %v2746
    %v2835 = vunpack.c.l.b16 %v2747
    %v2836 = vunpack.c.l.b16 %v2748
    %v2837 = vunpack.c.l.b16 %v2749
    %v2838 = vunpack.c.h.b16 %v2742
    %v2839 = vunpack.c.h.b16 %v2743
    %v2840 = vunpack.c.h.b16 %v2744
    %v2841 = vunpack.c.h.b16 %v2745
    %v2842 = vunpack.c.h.b16 %v2746
    %v2843 = vunpack.c.h.b16 %v2747
    %v2844 = vunpack.c.h.b16 %v2748
    %v2845 = vunpack.c.h.b16 %v2749
    %v2846 = vpack.c.b16 %v2783, %v2782
    %v2847 = vpack.c.b16 %v2785, %v2784
    %v2848 = vpack.c.b16 %v2787, %v2786
    %v2849 = vpack.c.b16 %v2789, %v2788
    %v2850 = vpack.c.b16 %v2791, %v2790
    %v2851 = vpack.c.b16 %v2793, %v2792
    %v2852 = vpack.c.b16 %v2795, %v2794
    %v2853 = vpack.c.b16 %v2797, %v2796
    %v2854 = vpack.c.b16 %v2799, %v2798
    %v2855 = vpack.c.b16 %v2801, %v2800
    %v2856 = vpack.c.b16 %v2803, %v2802
    %v2857 = vpack.c.b16 %v2805, %v2804
    %v2858 = vpack.c.b16 %v2807, %v2806
    %v2859 = vpack.c.b16 %v2809, %v2808
    %v2860 = vpack.c.b16 %v2811, %v2810
    %v2861 = vpack.c.b16 %v2813, %v2812
    %v2862 = vpack.c.b16 %v2815, %v2814
    %v2863 = vpack.c.b16 %v2817, %v2816
    %v2864 = vpack.c.b16 %v2819, %v2818
    %v2865 = vpack.c.b16 %v2821, %v2820
    %v2866 = vpack.c.b16 %v2823, %v2822
    %v2867 = vpack.c.b16 %v2825, %v2824
    %v2868 = vpack.c.b16 %v2827, %v2826
    %v2869 = vpack.c.b16 %v2829, %v2828
    %v2870 = vpack.c.b16 %v2831, %v2830
    %v2871 = vpack.c.b16 %v2833, %v2832
    %v2872 = vpack.c.b16 %v2835, %v2834
    %v2873 = vpack.c.b16 %v2837, %v2836
    %v2874 = vpack.c.b16 %v2839, %v2838
    %v2875 = vpack.c.b16 %v2841, %v2840
    %v2876 = vpack.c.b16 %v2843, %v2842
    %v2877 = vpack.c.b16 %v2845, %v2844
    %2910 = vst [vmem:[%s5] sm:$0xff] %v2846
    %2911 = vst [vmem:[%s5 + $0x8] sm:$0xff] %v2847
    %2912 = vst [vmem:[%s5 + $0x10] sm:$0xff] %v2848
    %2913 = vst [vmem:[%s5 + $0x18] sm:$0xff] %v2849
    %2914 = vst [vmem:[%s5 + $0x20] sm:$0xff] %v2850
    %2915 = vst [vmem:[%s5 + $0x28] sm:$0xff] %v2851
    %2916 = vst [vmem:[%s5 + $0x30] sm:$0xff] %v2852
    %2917 = vst [vmem:[%s5 + $0x38] sm:$0xff] %v2853
    %2918 = vst [vmem:[%s5 + $0x40] sm:$0xff] %v2854
    %2919 = vst [vmem:[%s5 + $0x48] sm:$0xff] %v2855
    %2920 = vst [vmem:[%s5 + $0x50] sm:$0xff] %v2856
    %2921 = vst [vmem:[%s5 + $0x58] sm:$0xff] %v2857
    %2922 = vst [vmem:[%s5 + $0x60] sm:$0xff] %v2858
    %2923 = vst [vmem:[%s5 + $0x68] sm:$0xff] %v2859
    %2924 = vst [vmem:[%s5 + $0x70] sm:$0xff] %v2860
    %2925 = vst [vmem:[%s5 + $0x78] sm:$0xff] %v2861
    %2926 = vst [vmem:[%s5 + $0x80] sm:$0xff] %v2862
    %2927 = vst [vmem:[%s5 + $0x88] sm:$0xff] %v2863
    %2928 = vst [vmem:[%s5 + $0x90] sm:$0xff] %v2864
    %2929 = vst [vmem:[%s5 + $0x98] sm:$0xff] %v2865
    %2930 = vst [vmem:[%s5 + $0xa0] sm:$0xff] %v2866
    %2931 = vst [vmem:[%s5 + $0xa8] sm:$0xff] %v2867
    %2932 = vst [vmem:[%s5 + $0xb0] sm:$0xff] %v2868
    %2933 = vst [vmem:[%s5 + $0xb8] sm:$0xff] %v2869
    %2934 = vst [vmem:[%s5 + $0xc0] sm:$0xff] %v2870
    %2935 = vst [vmem:[%s5 + $0xc8] sm:$0xff] %v2871
    %2936 = vst [vmem:[%s5 + $0xd0] sm:$0xff] %v2872
    %2937 = vst [vmem:[%s5 + $0xd8] sm:$0xff] %v2873
    %2938 = vst [vmem:[%s5 + $0xe0] sm:$0xff] %v2874
    %2939 = vst [vmem:[%s5 + $0xe8] sm:$0xff] %v2875
    %2940 = vst [vmem:[%s5 + $0xf0] sm:$0xff] %v2876
    %2941 = vst [vmem:[%s5 + $0xf8] sm:$0xff] %v2877
    // Predicated region
    $region38: #{point_cloud_generator.2} parent=1 // pred_check
      _
    $region39: #{point_cloud_generator.2} parent=1 // pred_check_branch
      %2943 = sbr.rel (0) target = $region41
    $region40: #{point_cloud_generator.2} parent=1 // pred_region
      _
    $region41: #{point_cloud_generator.2} parent=1 // pred_fallthru
      _
    // Predicated region
    $region42: #{point_cloud_generator.2} parent=1 // pred_check
      _
    $region43: #{point_cloud_generator.2} parent=1 // pred_check_branch
      %2945 = sbr.rel (0) target = $region45
    $region44: #{point_cloud_generator.2} parent=1 // pred_region
      _
    $region45: #{point_cloud_generator.2} parent=1 // pred_fallthru
      _
    %2946 = vsyncpa [#allocation3], 1
    %2947 = vsyncpa [#allocation5], 1
    %2948 = vsyncpa [#allocation8], 1

// kernel: point_cloud_generator.3
$region0: #{point_cloud_generator.3}
  #allocation0 [shape = 'u32[]', space=smem, size = 0x4, offset = 0x4, fixed_abs, tag = 'smem constant byte address 0x4 - core index']
  #allocation1 [shape = 'u32[144,128]{1,0:T(1,128)}', space=vmem, size = 0x12000, scoped, tag = 'internal scratch']
  %s0 = inlined_call_operand.vmem [shape: bf16[64,1024], index: 0, kind: input, shape index: {}]
  %s1 = inlined_call_operand.hbm [shape: bf16[4,1024,768], index: 1, kind: input, shape index: {}]
  %s2 = inlined_call_operand.hbm [shape: f32[1,3072], index: 2, kind: input, shape index: {}]
  %s3 = inlined_call_operand.vmem [shape: f32[64,3072], index: 3, kind: output, shape index: {}]
  %s4 = sld [smem:[#allocation0]]
  $region72: #{point_cloud_generator.3} parent=0
    _
  %s6 = ssub.s32 1, %s4
  %s7 = scalar_select 0, %s6, %s4
  $region1: #{point_cloud_generator.3} parent=0
    #allocation2 [shape = 'u8[3145728]{0}', space=vmem, size = 0x300000, scoped, tag = 'input window, operand 1']
    #allocation3 [shape = 's32[2]{0}', space=sflag, size = 0x8, scoped, tag = 'scoped memory for point_cloud_generator.3']
    #allocation4 [shape = 'u8[6144]{0}', space=vmem, size = 0x1800, scoped, tag = 'input window, operand 2']
    #allocation5 [shape = 's32[2]{0}', space=sflag, size = 0x8, scoped, tag = 'scoped memory for point_cloud_generator.3']
    #allocation6 [shape = 'u8[393216]{0}', space=vmem, size = 0x60000, scoped, tag = 'output window, operand 0']
    %8 = vsyncpa [#allocation3], 0
    %s9 = scalar_lea.sflag [#allocation3], 1
    %10 = vsyncpa %s9, 0
    %11 = vsyncpa [#allocation5], 0
    %s12 = scalar_lea.sflag [#allocation5], 1
    %13 = vsyncpa %s12, 0
    loop: start=0, step=1, limit=6
    $region2: #{point_cloud_generator.3} parent=1 // loop_pre_header
      _
    $region3: #{point_cloud_generator.3} parent=1 // loop_header
      %s15 = sphi 0, %s19
      %p16 = scmp.ge.s32.totalorder %s15, 6
      %s23 = sphi 0, %s23
      %s25 = sphi 0, %s23
      %s26 = sphi 0, %s25
      %s40 = sphi 0, %s26
      %s46 = sphi 0, %s48
      %s49 = sphi 0, %s46
      %s50 = sphi 0, %s49
      %s66 = sphi 0, %s50
      %s72 = sphi 0, %s74
      %s75 = sphi 0, %s72
      %s76 = sphi 0, %s75
      %s92 = sphi 0, %s76
      %s98 = sphi 0, %s100
      %s101 = sphi 0, %s98
      %s102 = sphi 0, %s101
      %s118 = sphi 0, %s102
    $region4: #{point_cloud_generator.3} parent=1 // loop_header_branch
      %18 = sbr.rel (%p16) target = $region8
    $region5: #{point_cloud_generator.3} parent=1 // loop_body
      %s20 = ssub.s32 %s15, 1
      %s21 = ssub.s32 %s15, 2
      %s22 = sadd.s32 %s15, 1
      %s24 = sadd.s32 %s23, 1
      %p27 = scmp.eq.s32.totalorder %s15, 3
      %p28 = scmp.ne.s32.totalorder %s23, %s25
      %p29 = scmp.eq.s32.totalorder %s15, 0
      %p30 = por %p28, %p29
      %p31 = scmp.ne.s32.totalorder %s23, %s25
      %p32 = scmp.eq.s32.totalorder %s20, 3
      %p33 = por %p31, %p32
      %p34 = scmp.ne.s32.totalorder %s25, %s26
      %p35 = scmp.eq.s32.totalorder %s20, 0
      %p36 = por %p34, %p35
      %p37 = scmp.ne.s32.totalorder %s25, %s26
      %p38 = scmp.eq.s32.totalorder %s21, 3
      %p39 = por %p37, %p38
      %p41 = scmp.ne.s32.totalorder %s26, %s40
      %p42 = scmp.eq.s32.totalorder %s21, 0
      %p43 = por %p41, %p42
      %s44 = ssub.s32 %s15, %s22
      %p45 = scmp.eq.s32.totalorder %s44, 0
      %s47 = sadd.s32 %s46, 1
      %s48 = scalar_select %p45, %s46, %s47
      %p51 = pneg %p45
      %p52 = scmp.eq.s32.totalorder %s15, 3
      %p53 = por %p51, %p52
      %p54 = scmp.ne.s32.totalorder %s46, %s49
      %p55 = scmp.eq.s32.totalorder %s15, 0
      %p56 = por %p54, %p55
      %p57 = scmp.ne.s32.totalorder %s46, %s49
      %p58 = scmp.eq.s32.totalorder %s20, 3
      %p59 = por %p57, %p58
      %p60 = scmp.ne.s32.totalorder %s49, %s50
      %p61 = scmp.eq.s32.totalorder %s20, 0
      %p62 = por %p60, %p61
      %p63 = scmp.ne.s32.totalorder %s49, %s50
      %p64 = scmp.eq.s32.totalorder %s21, 3
      %p65 = por %p63, %p64
      %p67 = scmp.ne.s32.totalorder %s50, %s66
      %p68 = scmp.eq.s32.totalorder %s21, 0
      %p69 = por %p67, %p68
      %s70 = ssub.s32 %s15, %s22
      %p71 = scmp.eq.s32.totalorder %s70, 0
      %s73 = sadd.s32 %s72, 1
      %s74 = scalar_select %p71, %s72, %s73
      %p77 = pneg %p71
      %p78 = scmp.eq.s32.totalorder %s15, 3
      %p79 = por %p77, %p78
      %p80 = scmp.ne.s32.totalorder %s72, %s75
      %p81 = scmp.eq.s32.totalorder %s15, 0
      %p82 = por %p80, %p81
      %p83 = scmp.ne.s32.totalorder %s72, %s75
      %p84 = scmp.eq.s32.totalorder %s20, 3
      %p85 = por %p83, %p84
      %p86 = scmp.ne.s32.totalorder %s75, %s76
      %p87 = scmp.eq.s32.totalorder %s20, 0
      %p88 = por %p86, %p87
      %p89 = scmp.ne.s32.totalorder %s75, %s76
      %p90 = scmp.eq.s32.totalorder %s21, 3
      %p91 = por %p89, %p90
      %p93 = scmp.ne.s32.totalorder %s76, %s92
      %p94 = scmp.eq.s32.totalorder %s21, 0
      %p95 = por %p93, %p94
      %s96 = ssub.s32 %s15, %s22
      %p97 = scmp.eq.s32.totalorder %s96, 0
      %s99 = sadd.s32 %s98, 1
      %s100 = scalar_select %p97, %s98, %s99
      %p103 = pneg %p97
      %p104 = scmp.eq.s32.totalorder %s15, 3
      %p105 = por %p103, %p104
      %p106 = scmp.ne.s32.totalorder %s98, %s101
      %p107 = scmp.eq.s32.totalorder %s15, 0
      %p108 = por %p106, %p107
      %p109 = scmp.ne.s32.totalorder %s98, %s101
      %p110 = scmp.eq.s32.totalorder %s20, 3
      %p111 = por %p109, %p110
      %p112 = scmp.ne.s32.totalorder %s101, %s102
      %p113 = scmp.eq.s32.totalorder %s20, 0
      %p114 = por %p112, %p113
      %p115 = scmp.ne.s32.totalorder %s101, %s102
      %p116 = scmp.eq.s32.totalorder %s21, 3
      %p117 = por %p115, %p116
      %p119 = scmp.ne.s32.totalorder %s102, %s118
      %p120 = scmp.eq.s32.totalorder %s21, 0
      %p121 = por %p119, %p120
      %p122 = scmp.le.s32.totalorder 1, %s15
      %p123 = scmp.lt.s32.totalorder %s15, 5
      %p124 = pnand %p122, %p123
      %p125 = pneg %p124
      // Predicated region
      $region9: #{point_cloud_generator.3} parent=5 // pred_check
        _
      $region10: #{point_cloud_generator.3} parent=5 // pred_check_branch
        %127 = sbr.rel (%p124) target = $region12
      $region11: #{point_cloud_generator.3} parent=5 // pred_region
        %s128 = ssub.s32 %s15, 1
        // Predicated region
        $region13: #{point_cloud_generator.3} parent=11 // pred_check
          %p129 = pneg %p36
        $region14: #{point_cloud_generator.3} parent=11 // pred_check_branch
          %131 = sbr.rel (%p129) target = $region16
        $region15: #{point_cloud_generator.3} parent=11 // pred_region
          _
        $region16: #{point_cloud_generator.3} parent=11 // pred_fallthru
          _
      $region12: #{point_cloud_generator.3} parent=5 // pred_fallthru
        _
      %p132 = scmp.lt.s32.totalorder %s15, 4
      // Predicated region
      $region17: #{point_cloud_generator.3} parent=5 // pred_check
        %p133 = pneg %p132
      $region18: #{point_cloud_generator.3} parent=5 // pred_check_branch
        %135 = sbr.rel (%p133) target = $region20
      $region19: #{point_cloud_generator.3} parent=5 // pred_region
        // Predicated region
        $region21: #{point_cloud_generator.3} parent=19 // pred_check
          %p136 = pneg %p56
        $region22: #{point_cloud_generator.3} parent=19 // pred_check_branch
          %138 = sbr.rel (%p136) target = $region24
        $region23: #{point_cloud_generator.3} parent=19 // pred_region
          %s139 = sand.u32 %s46, 1
          %s140 = scalar_lea.sflag [#allocation3], %s139
          %s141 = sand.u32 %s46, 1
          %s142 = smul.addr %s141, 3072
          %s143 = scalar_lea.vmem [#allocation2], %s142
          %s145 = ssub.s32 49152, 49152
          %146 = vsyncadd %s140, %s145
          %s147 = smul.addr %s15, 768
          %s148 = smul.addr %s147, 64
          %s149 = scalar_lea.hbm %s1, %s148
          %s150 = sshll.u32 %s143, 4
          %s151 = int_to_ptr.vmem [resolvable:$true] %s150
          %156 = dma.hbm_to_vmem [thread:$0]  %s149, 49152, %s151, %s140, 384, 384, 24
        $region24: #{point_cloud_generator.3} parent=19 // pred_fallthru
          _
        // Predicated region
        $region25: #{point_cloud_generator.3} parent=19 // pred_check
          %p157 = pneg %p82
        $region26: #{point_cloud_generator.3} parent=19 // pred_check_branch
          %159 = sbr.rel (%p157) target = $region28
        $region27: #{point_cloud_generator.3} parent=19 // pred_region
          %s160 = sand.u32 %s72, 1
          %s161 = scalar_lea.sflag [#allocation5], %s160
          %s162 = sand.u32 %s72, 1
          %s163 = smul.addr %s162, 6
          %s164 = scalar_lea.vmem [#allocation4], %s163
          %s165 = smul.u32 6, %s15
          %s167 = ssub.s32 96, 96
          %168 = vsyncadd %s161, %s167
          %s169 = smul.addr %s165, 16
          %s170 = scalar_lea.hbm %s2, %s169
          %s172 = sshll.u32 %s164, 4
          %s173 = int_to_ptr.vmem [resolvable:$true] %s172
          %175 = dma.hbm_to_vmem [thread:$0]  %s170, 96, %s173, %s161
        $region28: #{point_cloud_generator.3} parent=19 // pred_fallthru
          _
      $region20: #{point_cloud_generator.3} parent=5 // pred_fallthru
        _
      %p176 = scmp.le.s32.totalorder 1, %s15
      %p177 = scmp.lt.s32.totalorder %s15, 5
      %p178 = pnand %p176, %p177
      %p179 = pneg %p178
      // Predicated region
      $region29: #{point_cloud_generator.3} parent=5 // pred_check
        _
      $region30: #{point_cloud_generator.3} parent=5 // pred_check_branch
        %181 = sbr.rel (%p178) target = $region32
      $region31: #{point_cloud_generator.3} parent=5 // pred_region
        %s182 = ssub.s32 %s15, 1
        %s183 = sand.u32 %s49, 1
        %s184 = scalar_lea.sflag [#allocation3], %s183
        %s185 = sand.u32 %s49, 1
        %s186 = smul.addr %s185, 3072
        %s187 = scalar_lea.vmem [#allocation2], %s186
        // Predicated region
        $region33: #{point_cloud_generator.3} parent=31 // pred_check
          %p188 = pneg %p62
        $region34: #{point_cloud_generator.3} parent=31 // pred_check_branch
          %190 = sbr.rel (%p188) target = $region36
        $region35: #{point_cloud_generator.3} parent=31 // pred_region
          %191 = dma.done %s184, 49152
        $region36: #{point_cloud_generator.3} parent=31 // pred_fallthru
          _
        %s192 = sand.u32 %s75, 1
        %s193 = scalar_lea.sflag [#allocation5], %s192
        %s194 = sand.u32 %s75, 1
        %s195 = smul.addr %s194, 6
        %s196 = scalar_lea.vmem [#allocation4], %s195
        // Predicated region
        $region37: #{point_cloud_generator.3} parent=31 // pred_check
          %p197 = pneg %p88
        $region38: #{point_cloud_generator.3} parent=31 // pred_check_branch
          %199 = sbr.rel (%p197) target = $region40
        $region39: #{point_cloud_generator.3} parent=31 // pred_region
          %200 = dma.done %s193, 96
        $region40: #{point_cloud_generator.3} parent=31 // pred_fallthru
          _
        %p201 = pneg %p36
        %p202 = pneg %p33
        %s203 = sand.u32 %s49, 1
        %s204 = scalar_lea.sflag [#allocation3], %s203
        %s205 = sand.u32 %s49, 1
        %s206 = smul.addr %s205, 3072
        %s207 = scalar_lea.vmem [#allocation2], %s206
        %p208 = pneg %p62
        %p209 = pneg %p59
        %s210 = sand.u32 %s75, 1
        %s211 = scalar_lea.sflag [#allocation5], %s210
        %s212 = sand.u32 %s75, 1
        %s213 = smul.addr %s212, 6
        %s214 = scalar_lea.vmem [#allocation4], %s213
        %p215 = pneg %p88
        %p216 = pneg %p85
        %p217 = pneg %p114
        %p218 = pneg %p111
        %s219 = sand.u32 %s101, 1
        %s220 = sand.u32 %s101, 1
        %s221 = smul.addr %s220, 384
        %s222 = scalar_lea.vmem [#allocation6], %s221
        %s223 = smul.u32 6, %s20
        %s224 = smul.u32 6, %s20
        %v225 = vld [vmem:[%s0] sm:$0xff]
        %v226 = vld [vmem:[%s0 + $0x8] sm:$0xff]
        %v227 = vld [vmem:[%s0 + $0x10] sm:$0xff]
        %v228 = vld [vmem:[%s0 + $0x18] sm:$0xff]
        %v229 = vld [vmem:[%s0 + $0x20] sm:$0xff]
        %v230 = vld [vmem:[%s0 + $0x28] sm:$0xff]
        %v231 = vld [vmem:[%s0 + $0x30] sm:$0xff]
        %v232 = vld [vmem:[%s0 + $0x38] sm:$0xff]
        %v233 = vld [vmem:[%s0 + $0x40] sm:$0xff]
        %v234 = vld [vmem:[%s0 + $0x48] sm:$0xff]
        %v235 = vld [vmem:[%s0 + $0x50] sm:$0xff]
        %v236 = vld [vmem:[%s0 + $0x58] sm:$0xff]
        %v237 = vld [vmem:[%s0 + $0x60] sm:$0xff]
        %v238 = vld [vmem:[%s0 + $0x68] sm:$0xff]
        %v239 = vld [vmem:[%s0 + $0x70] sm:$0xff]
        %v240 = vld [vmem:[%s0 + $0x78] sm:$0xff]
        %v241 = vld [vmem:[%s0 + $0x80] sm:$0xff]
        %v242 = vld [vmem:[%s0 + $0x88] sm:$0xff]
        %v243 = vld [vmem:[%s0 + $0x90] sm:$0xff]
        %v244 = vld [vmem:[%s0 + $0x98] sm:$0xff]
        %v245 = vld [vmem:[%s0 + $0xa0] sm:$0xff]
        %v246 = vld [vmem:[%s0 + $0xa8] sm:$0xff]
        %v247 = vld [vmem:[%s0 + $0xb0] sm:$0xff]
        %v248 = vld [vmem:[%s0 + $0xb8] sm:$0xff]
        %v249 = vld [vmem:[%s0 + $0xc0] sm:$0xff]
        %v250 = vld [vmem:[%s0 + $0xc8] sm:$0xff]
        %v251 = vld [vmem:[%s0 + $0xd0] sm:$0xff]
        %v252 = vld [vmem:[%s0 + $0xd8] sm:$0xff]
        %v253 = vld [vmem:[%s0 + $0xe0] sm:$0xff]
        %v254 = vld [vmem:[%s0 + $0xe8] sm:$0xff]
        %v255 = vld [vmem:[%s0 + $0xf0] sm:$0xff]
        %v256 = vld [vmem:[%s0 + $0xf8] sm:$0xff]
        %v257 = vld [vmem:[%s187] sm:$0xff]
        %v258 = vld [vmem:[%s187 + $0x8] sm:$0xff]
        %v259 = vld [vmem:[%s187 + $0x10] sm:$0xff]
        %v260 = vld [vmem:[%s187 + $0x18] sm:$0xff]
        %v261 = vld [vmem:[%s187 + $0x20] sm:$0xff]
        %v262 = vld [vmem:[%s187 + $0x28] sm:$0xff]
        %v263 = vld [vmem:[%s187 + $0x30] sm:$0xff]
        %v264 = vld [vmem:[%s187 + $0x38] sm:$0xff]
        %v265 = vld [vmem:[%s187 + $0x40] sm:$0xff]
        %v266 = vld [vmem:[%s187 + $0x48] sm:$0xff]
        %v267 = vld [vmem:[%s187 + $0x50] sm:$0xff]
        %v268 = vld [vmem:[%s187 + $0x58] sm:$0xff]
        %v269 = vld [vmem:[%s187 + $0x60] sm:$0xff]
        %v270 = vld [vmem:[%s187 + $0x68] sm:$0xff]
        %v271 = vld [vmem:[%s187 + $0x70] sm:$0xff]
        %v272 = vld [vmem:[%s187 + $0x78] sm:$0xff]
        %v273 = vld [vmem:[%s187 + $0x80] sm:$0xff]
        %v274 = vld [vmem:[%s187 + $0x88] sm:$0xff]
        %v275 = vld [vmem:[%s187 + $0x90] sm:$0xff]
        %v276 = vld [vmem:[%s187 + $0x98] sm:$0xff]
        %v277 = vld [vmem:[%s187 + $0xa0] sm:$0xff]
        %v278 = vld [vmem:[%s187 + $0xa8] sm:$0xff]
        %v279 = vld [vmem:[%s187 + $0xb0] sm:$0xff]
        %v280 = vld [vmem:[%s187 + $0xb8] sm:$0xff]
        %v281 = vld [vmem:[%s187 + $0xc0] sm:$0xff]
        %v282 = vld [vmem:[%s187 + $0xc8] sm:$0xff]
        %v283 = vld [vmem:[%s187 + $0xd0] sm:$0xff]
        %v284 = vld [vmem:[%s187 + $0xd8] sm:$0xff]
        %v285 = vld [vmem:[%s187 + $0xe0] sm:$0xff]
        %v286 = vld [vmem:[%s187 + $0xe8] sm:$0xff]
        %v287 = vld [vmem:[%s187 + $0xf0] sm:$0xff]
        %v288 = vld [vmem:[%s187 + $0xf8] sm:$0xff]
        %v289 = vld [vmem:[%s187 + $0x100] sm:$0xff]
        %v290 = vld [vmem:[%s187 + $0x108] sm:$0xff]
        %v291 = vld [vmem:[%s187 + $0x110] sm:$0xff]
        %v292 = vld [vmem:[%s187 + $0x118] sm:$0xff]
        %v293 = vld [vmem:[%s187 + $0x120] sm:$0xff]
        %v294 = vld [vmem:[%s187 + $0x128] sm:$0xff]
        %v295 = vld [vmem:[%s187 + $0x130] sm:$0xff]
        %v296 = vld [vmem:[%s187 + $0x138] sm:$0xff]
        %v297 = vld [vmem:[%s187 + $0x140] sm:$0xff]
        %v298 = vld [vmem:[%s187 + $0x148] sm:$0xff]
        %v299 = vld [vmem:[%s187 + $0x150] sm:$0xff]
        %v300 = vld [vmem:[%s187 + $0x158] sm:$0xff]
        %v301 = vld [vmem:[%s187 + $0x160] sm:$0xff]
        %v302 = vld [vmem:[%s187 + $0x168] sm:$0xff]
        %v303 = vld [vmem:[%s187 + $0x170] sm:$0xff]
        %v304 = vld [vmem:[%s187 + $0x178] sm:$0xff]
        %v305 = vld [vmem:[%s187 + $0x180] sm:$0xff]
        %v306 = vld [vmem:[%s187 + $0x188] sm:$0xff]
        %v307 = vld [vmem:[%s187 + $0x190] sm:$0xff]
        %v308 = vld [vmem:[%s187 + $0x198] sm:$0xff]
        %v309 = vld [vmem:[%s187 + $0x1a0] sm:$0xff]
        %v310 = vld [vmem:[%s187 + $0x1a8] sm:$0xff]
        %v311 = vld [vmem:[%s187 + $0x1b0] sm:$0xff]
        %v312 = vld [vmem:[%s187 + $0x1b8] sm:$0xff]
        %v313 = vld [vmem:[%s187 + $0x1c0] sm:$0xff]
        %v314 = vld [vmem:[%s187 + $0x1c8] sm:$0xff]
        %v315 = vld [vmem:[%s187 + $0x1d0] sm:$0xff]
        %v316 = vld [vmem:[%s187 + $0x1d8] sm:$0xff]
        %v317 = vld [vmem:[%s187 + $0x1e0] sm:$0xff]
        %v318 = vld [vmem:[%s187 + $0x1e8] sm:$0xff]
        %v319 = vld [vmem:[%s187 + $0x1f0] sm:$0xff]
        %v320 = vld [vmem:[%s187 + $0x1f8] sm:$0xff]
        %v321 = vld [vmem:[%s187 + $0x200] sm:$0xff]
        %v322 = vld [vmem:[%s187 + $0x208] sm:$0xff]
        %v323 = vld [vmem:[%s187 + $0x210] sm:$0xff]
        %v324 = vld [vmem:[%s187 + $0x218] sm:$0xff]
        %v325 = vld [vmem:[%s187 + $0x220] sm:$0xff]
        %v326 = vld [vmem:[%s187 + $0x228] sm:$0xff]
        %v327 = vld [vmem:[%s187 + $0x230] sm:$0xff]
        %v328 = vld [vmem:[%s187 + $0x238] sm:$0xff]
        %v329 = vld [vmem:[%s187 + $0x240] sm:$0xff]
        %v330 = vld [vmem:[%s187 + $0x248] sm:$0xff]
        %v331 = vld [vmem:[%s187 + $0x250] sm:$0xff]
        %v332 = vld [vmem:[%s187 + $0x258] sm:$0xff]
        %v333 = vld [vmem:[%s187 + $0x260] sm:$0xff]
        %v334 = vld [vmem:[%s187 + $0x268] sm:$0xff]
        %v335 = vld [vmem:[%s187 + $0x270] sm:$0xff]
        %v336 = vld [vmem:[%s187 + $0x278] sm:$0xff]
        %v337 = vld [vmem:[%s187 + $0x280] sm:$0xff]
        %v338 = vld [vmem:[%s187 + $0x288] sm:$0xff]
        %v339 = vld [vmem:[%s187 + $0x290] sm:$0xff]
        %v340 = vld [vmem:[%s187 + $0x298] sm:$0xff]
        %v341 = vld [vmem:[%s187 + $0x2a0] sm:$0xff]
        %v342 = vld [vmem:[%s187 + $0x2a8] sm:$0xff]
        %v343 = vld [vmem:[%s187 + $0x2b0] sm:$0xff]
        %v344 = vld [vmem:[%s187 + $0x2b8] sm:$0xff]
        %v345 = vld [vmem:[%s187 + $0x2c0] sm:$0xff]
        %v346 = vld [vmem:[%s187 + $0x2c8] sm:$0xff]
        %v347 = vld [vmem:[%s187 + $0x2d0] sm:$0xff]
        %v348 = vld [vmem:[%s187 + $0x2d8] sm:$0xff]
        %v349 = vld [vmem:[%s187 + $0x2e0] sm:$0xff]
        %v350 = vld [vmem:[%s187 + $0x2e8] sm:$0xff]
        %v351 = vld [vmem:[%s187 + $0x2f0] sm:$0xff]
        %v352 = vld [vmem:[%s187 + $0x2f8] sm:$0xff]
        %v353 = vld [vmem:[%s187 + $0x300] sm:$0xff]
        %v354 = vld [vmem:[%s187 + $0x308] sm:$0xff]
        %v355 = vld [vmem:[%s187 + $0x310] sm:$0xff]
        %v356 = vld [vmem:[%s187 + $0x318] sm:$0xff]
        %v357 = vld [vmem:[%s187 + $0x320] sm:$0xff]
        %v358 = vld [vmem:[%s187 + $0x328] sm:$0xff]
        %v359 = vld [vmem:[%s187 + $0x330] sm:$0xff]
        %v360 = vld [vmem:[%s187 + $0x338] sm:$0xff]
        %v361 = vld [vmem:[%s187 + $0x340] sm:$0xff]
        %v362 = vld [vmem:[%s187 + $0x348] sm:$0xff]
        %v363 = vld [vmem:[%s187 + $0x350] sm:$0xff]
        %v364 = vld [vmem:[%s187 + $0x358] sm:$0xff]
        %v365 = vld [vmem:[%s187 + $0x360] sm:$0xff]
        %v366 = vld [vmem:[%s187 + $0x368] sm:$0xff]
        %v367 = vld [vmem:[%s187 + $0x370] sm:$0xff]
        %v368 = vld [vmem:[%s187 + $0x378] sm:$0xff]
        %v369 = vld [vmem:[%s187 + $0x380] sm:$0xff]
        %v370 = vld [vmem:[%s187 + $0x388] sm:$0xff]
        %v371 = vld [vmem:[%s187 + $0x390] sm:$0xff]
        %v372 = vld [vmem:[%s187 + $0x398] sm:$0xff]
        %v373 = vld [vmem:[%s187 + $0x3a0] sm:$0xff]
        %v374 = vld [vmem:[%s187 + $0x3a8] sm:$0xff]
        %v375 = vld [vmem:[%s187 + $0x3b0] sm:$0xff]
        %v376 = vld [vmem:[%s187 + $0x3b8] sm:$0xff]
        %v377 = vld [vmem:[%s187 + $0x3c0] sm:$0xff]
        %v378 = vld [vmem:[%s187 + $0x3c8] sm:$0xff]
        %v379 = vld [vmem:[%s187 + $0x3d0] sm:$0xff]
        %v380 = vld [vmem:[%s187 + $0x3d8] sm:$0xff]
        %v381 = vld [vmem:[%s187 + $0x3e0] sm:$0xff]
        %v382 = vld [vmem:[%s187 + $0x3e8] sm:$0xff]
        %v383 = vld [vmem:[%s187 + $0x3f0] sm:$0xff]
        %v384 = vld [vmem:[%s187 + $0x3f8] sm:$0xff]
        %v385 = vld [vmem:[%s187 + $0x400] sm:$0xff]
        %v386 = vld [vmem:[%s187 + $0x408] sm:$0xff]
        %v387 = vld [vmem:[%s187 + $0x410] sm:$0xff]
        %v388 = vld [vmem:[%s187 + $0x418] sm:$0xff]
        %v389 = vld [vmem:[%s187 + $0x420] sm:$0xff]
        %v390 = vld [vmem:[%s187 + $0x428] sm:$0xff]
        %v391 = vld [vmem:[%s187 + $0x430] sm:$0xff]
        %v392 = vld [vmem:[%s187 + $0x438] sm:$0xff]
        %v393 = vld [vmem:[%s187 + $0x440] sm:$0xff]
        %v394 = vld [vmem:[%s187 + $0x448] sm:$0xff]
        %v395 = vld [vmem:[%s187 + $0x450] sm:$0xff]
        %v396 = vld [vmem:[%s187 + $0x458] sm:$0xff]
        %v397 = vld [vmem:[%s187 + $0x460] sm:$0xff]
        %v398 = vld [vmem:[%s187 + $0x468] sm:$0xff]
        %v399 = vld [vmem:[%s187 + $0x470] sm:$0xff]
        %v400 = vld [vmem:[%s187 + $0x478] sm:$0xff]
        %v401 = vld [vmem:[%s187 + $0x480] sm:$0xff]
        %v402 = vld [vmem:[%s187 + $0x488] sm:$0xff]
        %v403 = vld [vmem:[%s187 + $0x490] sm:$0xff]
        %v404 = vld [vmem:[%s187 + $0x498] sm:$0xff]
        %v405 = vld [vmem:[%s187 + $0x4a0] sm:$0xff]
        %v406 = vld [vmem:[%s187 + $0x4a8] sm:$0xff]
        %v407 = vld [vmem:[%s187 + $0x4b0] sm:$0xff]
        %v408 = vld [vmem:[%s187 + $0x4b8] sm:$0xff]
        %v409 = vld [vmem:[%s187 + $0x4c0] sm:$0xff]
        %v410 = vld [vmem:[%s187 + $0x4c8] sm:$0xff]
        %v411 = vld [vmem:[%s187 + $0x4d0] sm:$0xff]
        %v412 = vld [vmem:[%s187 + $0x4d8] sm:$0xff]
        %v413 = vld [vmem:[%s187 + $0x4e0] sm:$0xff]
        %v414 = vld [vmem:[%s187 + $0x4e8] sm:$0xff]
        %v415 = vld [vmem:[%s187 + $0x4f0] sm:$0xff]
        %v416 = vld [vmem:[%s187 + $0x4f8] sm:$0xff]
        %v417 = vld [vmem:[%s187 + $0x500] sm:$0xff]
        %v418 = vld [vmem:[%s187 + $0x508] sm:$0xff]
        %v419 = vld [vmem:[%s187 + $0x510] sm:$0xff]
        %v420 = vld [vmem:[%s187 + $0x518] sm:$0xff]
        %v421 = vld [vmem:[%s187 + $0x520] sm:$0xff]
        %v422 = vld [vmem:[%s187 + $0x528] sm:$0xff]
        %v423 = vld [vmem:[%s187 + $0x530] sm:$0xff]
        %v424 = vld [vmem:[%s187 + $0x538] sm:$0xff]
        %v425 = vld [vmem:[%s187 + $0x540] sm:$0xff]
        %v426 = vld [vmem:[%s187 + $0x548] sm:$0xff]
        %v427 = vld [vmem:[%s187 + $0x550] sm:$0xff]
        %v428 = vld [vmem:[%s187 + $0x558] sm:$0xff]
        %v429 = vld [vmem:[%s187 + $0x560] sm:$0xff]
        %v430 = vld [vmem:[%s187 + $0x568] sm:$0xff]
        %v431 = vld [vmem:[%s187 + $0x570] sm:$0xff]
        %v432 = vld [vmem:[%s187 + $0x578] sm:$0xff]
        %v433 = vld [vmem:[%s187 + $0x580] sm:$0xff]
        %v434 = vld [vmem:[%s187 + $0x588] sm:$0xff]
        %v435 = vld [vmem:[%s187 + $0x590] sm:$0xff]
        %v436 = vld [vmem:[%s187 + $0x598] sm:$0xff]
        %v437 = vld [vmem:[%s187 + $0x5a0] sm:$0xff]
        %v438 = vld [vmem:[%s187 + $0x5a8] sm:$0xff]
        %v439 = vld [vmem:[%s187 + $0x5b0] sm:$0xff]
        %v440 = vld [vmem:[%s187 + $0x5b8] sm:$0xff]
        %v441 = vld [vmem:[%s187 + $0x5c0] sm:$0xff]
        %v442 = vld [vmem:[%s187 + $0x5c8] sm:$0xff]
        %v443 = vld [vmem:[%s187 + $0x5d0] sm:$0xff]
        %v444 = vld [vmem:[%s187 + $0x5d8] sm:$0xff]
        %v445 = vld [vmem:[%s187 + $0x5e0] sm:$0xff]
        %v446 = vld [vmem:[%s187 + $0x5e8] sm:$0xff]
        %v447 = vld [vmem:[%s187 + $0x5f0] sm:$0xff]
        %v448 = vld [vmem:[%s187 + $0x5f8] sm:$0xff]
        %v449 = vld [vmem:[%s187 + $0x600] sm:$0xff]
        %v450 = vld [vmem:[%s187 + $0x608] sm:$0xff]
        %v451 = vld [vmem:[%s187 + $0x610] sm:$0xff]
        %v452 = vld [vmem:[%s187 + $0x618] sm:$0xff]
        %v453 = vld [vmem:[%s187 + $0x620] sm:$0xff]
        %v454 = vld [vmem:[%s187 + $0x628] sm:$0xff]
        %v455 = vld [vmem:[%s187 + $0x630] sm:$0xff]
        %v456 = vld [vmem:[%s187 + $0x638] sm:$0xff]
        %v457 = vld [vmem:[%s187 + $0x640] sm:$0xff]
        %v458 = vld [vmem:[%s187 + $0x648] sm:$0xff]
        %v459 = vld [vmem:[%s187 + $0x650] sm:$0xff]
        %v460 = vld [vmem:[%s187 + $0x658] sm:$0xff]
        %v461 = vld [vmem:[%s187 + $0x660] sm:$0xff]
        %v462 = vld [vmem:[%s187 + $0x668] sm:$0xff]
        %v463 = vld [vmem:[%s187 + $0x670] sm:$0xff]
        %v464 = vld [vmem:[%s187 + $0x678] sm:$0xff]
        %v465 = vld [vmem:[%s187 + $0x680] sm:$0xff]
        %v466 = vld [vmem:[%s187 + $0x688] sm:$0xff]
        %v467 = vld [vmem:[%s187 + $0x690] sm:$0xff]
        %v468 = vld [vmem:[%s187 + $0x698] sm:$0xff]
        %v469 = vld [vmem:[%s187 + $0x6a0] sm:$0xff]
        %v470 = vld [vmem:[%s187 + $0x6a8] sm:$0xff]
        %v471 = vld [vmem:[%s187 + $0x6b0] sm:$0xff]
        %v472 = vld [vmem:[%s187 + $0x6b8] sm:$0xff]
        %v473 = vld [vmem:[%s187 + $0x6c0] sm:$0xff]
        %v474 = vld [vmem:[%s187 + $0x6c8] sm:$0xff]
        %v475 = vld [vmem:[%s187 + $0x6d0] sm:$0xff]
        %v476 = vld [vmem:[%s187 + $0x6d8] sm:$0xff]
        %v477 = vld [vmem:[%s187 + $0x6e0] sm:$0xff]
        %v478 = vld [vmem:[%s187 + $0x6e8] sm:$0xff]
        %v479 = vld [vmem:[%s187 + $0x6f0] sm:$0xff]
        %v480 = vld [vmem:[%s187 + $0x6f8] sm:$0xff]
        %v481 = vld [vmem:[%s187 + $0x700] sm:$0xff]
        %v482 = vld [vmem:[%s187 + $0x708] sm:$0xff]
        %v483 = vld [vmem:[%s187 + $0x710] sm:$0xff]
        %v484 = vld [vmem:[%s187 + $0x718] sm:$0xff]
        %v485 = vld [vmem:[%s187 + $0x720] sm:$0xff]
        %v486 = vld [vmem:[%s187 + $0x728] sm:$0xff]
        %v487 = vld [vmem:[%s187 + $0x730] sm:$0xff]
        %v488 = vld [vmem:[%s187 + $0x738] sm:$0xff]
        %v489 = vld [vmem:[%s187 + $0x740] sm:$0xff]
        %v490 = vld [vmem:[%s187 + $0x748] sm:$0xff]
        %v491 = vld [vmem:[%s187 + $0x750] sm:$0xff]
        %v492 = vld [vmem:[%s187 + $0x758] sm:$0xff]
        %v493 = vld [vmem:[%s187 + $0x760] sm:$0xff]
        %v494 = vld [vmem:[%s187 + $0x768] sm:$0xff]
        %v495 = vld [vmem:[%s187 + $0x770] sm:$0xff]
        %v496 = vld [vmem:[%s187 + $0x778] sm:$0xff]
        %v497 = vld [vmem:[%s187 + $0x780] sm:$0xff]
        %v498 = vld [vmem:[%s187 + $0x788] sm:$0xff]
        %v499 = vld [vmem:[%s187 + $0x790] sm:$0xff]
        %v500 = vld [vmem:[%s187 + $0x798] sm:$0xff]
        %v501 = vld [vmem:[%s187 + $0x7a0] sm:$0xff]
        %v502 = vld [vmem:[%s187 + $0x7a8] sm:$0xff]
        %v503 = vld [vmem:[%s187 + $0x7b0] sm:$0xff]
        %v504 = vld [vmem:[%s187 + $0x7b8] sm:$0xff]
        %v505 = vld [vmem:[%s187 + $0x7c0] sm:$0xff]
        %v506 = vld [vmem:[%s187 + $0x7c8] sm:$0xff]
        %v507 = vld [vmem:[%s187 + $0x7d0] sm:$0xff]
        %v508 = vld [vmem:[%s187 + $0x7d8] sm:$0xff]
        %v509 = vld [vmem:[%s187 + $0x7e0] sm:$0xff]
        %v510 = vld [vmem:[%s187 + $0x7e8] sm:$0xff]
        %v511 = vld [vmem:[%s187 + $0x7f0] sm:$0xff]
        %v512 = vld [vmem:[%s187 + $0x7f8] sm:$0xff]
        %v513 = vld [vmem:[%s187 + $0x800] sm:$0xff]
        %v514 = vld [vmem:[%s187 + $0x808] sm:$0xff]
        %v515 = vld [vmem:[%s187 + $0x810] sm:$0xff]
        %v516 = vld [vmem:[%s187 + $0x818] sm:$0xff]
        %v517 = vld [vmem:[%s187 + $0x820] sm:$0xff]
        %v518 = vld [vmem:[%s187 + $0x828] sm:$0xff]
        %v519 = vld [vmem:[%s187 + $0x830] sm:$0xff]
        %v520 = vld [vmem:[%s187 + $0x838] sm:$0xff]
        %v521 = vld [vmem:[%s187 + $0x840] sm:$0xff]
        %v522 = vld [vmem:[%s187 + $0x848] sm:$0xff]
        %v523 = vld [vmem:[%s187 + $0x850] sm:$0xff]
        %v524 = vld [vmem:[%s187 + $0x858] sm:$0xff]
        %v525 = vld [vmem:[%s187 + $0x860] sm:$0xff]
        %v526 = vld [vmem:[%s187 + $0x868] sm:$0xff]
        %v527 = vld [vmem:[%s187 + $0x870] sm:$0xff]
        %v528 = vld [vmem:[%s187 + $0x878] sm:$0xff]
        %v529 = vld [vmem:[%s187 + $0x880] sm:$0xff]
        %v530 = vld [vmem:[%s187 + $0x888] sm:$0xff]
        %v531 = vld [vmem:[%s187 + $0x890] sm:$0xff]
        %v532 = vld [vmem:[%s187 + $0x898] sm:$0xff]
        %v533 = vld [vmem:[%s187 + $0x8a0] sm:$0xff]
        %v534 = vld [vmem:[%s187 + $0x8a8] sm:$0xff]
        %v535 = vld [vmem:[%s187 + $0x8b0] sm:$0xff]
        %v536 = vld [vmem:[%s187 + $0x8b8] sm:$0xff]
        %v537 = vld [vmem:[%s187 + $0x8c0] sm:$0xff]
        %v538 = vld [vmem:[%s187 + $0x8c8] sm:$0xff]
        %v539 = vld [vmem:[%s187 + $0x8d0] sm:$0xff]
        %v540 = vld [vmem:[%s187 + $0x8d8] sm:$0xff]
        %v541 = vld [vmem:[%s187 + $0x8e0] sm:$0xff]
        %v542 = vld [vmem:[%s187 + $0x8e8] sm:$0xff]
        %v543 = vld [vmem:[%s187 + $0x8f0] sm:$0xff]
        %v544 = vld [vmem:[%s187 + $0x8f8] sm:$0xff]
        %v545 = vld [vmem:[%s187 + $0x900] sm:$0xff]
        %v546 = vld [vmem:[%s187 + $0x908] sm:$0xff]
        %v547 = vld [vmem:[%s187 + $0x910] sm:$0xff]
        %v548 = vld [vmem:[%s187 + $0x918] sm:$0xff]
        %v549 = vld [vmem:[%s187 + $0x920] sm:$0xff]
        %v550 = vld [vmem:[%s187 + $0x928] sm:$0xff]
        %v551 = vld [vmem:[%s187 + $0x930] sm:$0xff]
        %v552 = vld [vmem:[%s187 + $0x938] sm:$0xff]
        %v553 = vld [vmem:[%s187 + $0x940] sm:$0xff]
        %v554 = vld [vmem:[%s187 + $0x948] sm:$0xff]
        %v555 = vld [vmem:[%s187 + $0x950] sm:$0xff]
        %v556 = vld [vmem:[%s187 + $0x958] sm:$0xff]
        %v557 = vld [vmem:[%s187 + $0x960] sm:$0xff]
        %v558 = vld [vmem:[%s187 + $0x968] sm:$0xff]
        %v559 = vld [vmem:[%s187 + $0x970] sm:$0xff]
        %v560 = vld [vmem:[%s187 + $0x978] sm:$0xff]
        %v561 = vld [vmem:[%s187 + $0x980] sm:$0xff]
        %v562 = vld [vmem:[%s187 + $0x988] sm:$0xff]
        %v563 = vld [vmem:[%s187 + $0x990] sm:$0xff]
        %v564 = vld [vmem:[%s187 + $0x998] sm:$0xff]
        %v565 = vld [vmem:[%s187 + $0x9a0] sm:$0xff]
        %v566 = vld [vmem:[%s187 + $0x9a8] sm:$0xff]
        %v567 = vld [vmem:[%s187 + $0x9b0] sm:$0xff]
        %v568 = vld [vmem:[%s187 + $0x9b8] sm:$0xff]
        %v569 = vld [vmem:[%s187 + $0x9c0] sm:$0xff]
        %v570 = vld [vmem:[%s187 + $0x9c8] sm:$0xff]
        %v571 = vld [vmem:[%s187 + $0x9d0] sm:$0xff]
        %v572 = vld [vmem:[%s187 + $0x9d8] sm:$0xff]
        %v573 = vld [vmem:[%s187 + $0x9e0] sm:$0xff]
        %v574 = vld [vmem:[%s187 + $0x9e8] sm:$0xff]
        %v575 = vld [vmem:[%s187 + $0x9f0] sm:$0xff]
        %v576 = vld [vmem:[%s187 + $0x9f8] sm:$0xff]
        %v577 = vld [vmem:[%s187 + $0xa00] sm:$0xff]
        %v578 = vld [vmem:[%s187 + $0xa08] sm:$0xff]
        %v579 = vld [vmem:[%s187 + $0xa10] sm:$0xff]
        %v580 = vld [vmem:[%s187 + $0xa18] sm:$0xff]
        %v581 = vld [vmem:[%s187 + $0xa20] sm:$0xff]
        %v582 = vld [vmem:[%s187 + $0xa28] sm:$0xff]
        %v583 = vld [vmem:[%s187 + $0xa30] sm:$0xff]
        %v584 = vld [vmem:[%s187 + $0xa38] sm:$0xff]
        %v585 = vld [vmem:[%s187 + $0xa40] sm:$0xff]
        %v586 = vld [vmem:[%s187 + $0xa48] sm:$0xff]
        %v587 = vld [vmem:[%s187 + $0xa50] sm:$0xff]
        %v588 = vld [vmem:[%s187 + $0xa58] sm:$0xff]
        %v589 = vld [vmem:[%s187 + $0xa60] sm:$0xff]
        %v590 = vld [vmem:[%s187 + $0xa68] sm:$0xff]
        %v591 = vld [vmem:[%s187 + $0xa70] sm:$0xff]
        %v592 = vld [vmem:[%s187 + $0xa78] sm:$0xff]
        %v593 = vld [vmem:[%s187 + $0xa80] sm:$0xff]
        %v594 = vld [vmem:[%s187 + $0xa88] sm:$0xff]
        %v595 = vld [vmem:[%s187 + $0xa90] sm:$0xff]
        %v596 = vld [vmem:[%s187 + $0xa98] sm:$0xff]
        %v597 = vld [vmem:[%s187 + $0xaa0] sm:$0xff]
        %v598 = vld [vmem:[%s187 + $0xaa8] sm:$0xff]
        %v599 = vld [vmem:[%s187 + $0xab0] sm:$0xff]
        %v600 = vld [vmem:[%s187 + $0xab8] sm:$0xff]
        %v601 = vld [vmem:[%s187 + $0xac0] sm:$0xff]
        %v602 = vld [vmem:[%s187 + $0xac8] sm:$0xff]
        %v603 = vld [vmem:[%s187 + $0xad0] sm:$0xff]
        %v604 = vld [vmem:[%s187 + $0xad8] sm:$0xff]
        %v605 = vld [vmem:[%s187 + $0xae0] sm:$0xff]
        %v606 = vld [vmem:[%s187 + $0xae8] sm:$0xff]
        %v607 = vld [vmem:[%s187 + $0xaf0] sm:$0xff]
        %v608 = vld [vmem:[%s187 + $0xaf8] sm:$0xff]
        %v609 = vld [vmem:[%s187 + $0xb00] sm:$0xff]
        %v610 = vld [vmem:[%s187 + $0xb08] sm:$0xff]
        %v611 = vld [vmem:[%s187 + $0xb10] sm:$0xff]
        %v612 = vld [vmem:[%s187 + $0xb18] sm:$0xff]
        %v613 = vld [vmem:[%s187 + $0xb20] sm:$0xff]
        %v614 = vld [vmem:[%s187 + $0xb28] sm:$0xff]
        %v615 = vld [vmem:[%s187 + $0xb30] sm:$0xff]
        %v616 = vld [vmem:[%s187 + $0xb38] sm:$0xff]
        %v617 = vld [vmem:[%s187 + $0xb40] sm:$0xff]
        %v618 = vld [vmem:[%s187 + $0xb48] sm:$0xff]
        %v619 = vld [vmem:[%s187 + $0xb50] sm:$0xff]
        %v620 = vld [vmem:[%s187 + $0xb58] sm:$0xff]
        %v621 = vld [vmem:[%s187 + $0xb60] sm:$0xff]
        %v622 = vld [vmem:[%s187 + $0xb68] sm:$0xff]
        %v623 = vld [vmem:[%s187 + $0xb70] sm:$0xff]
        %v624 = vld [vmem:[%s187 + $0xb78] sm:$0xff]
        %v625 = vld [vmem:[%s187 + $0xb80] sm:$0xff]
        %v626 = vld [vmem:[%s187 + $0xb88] sm:$0xff]
        %v627 = vld [vmem:[%s187 + $0xb90] sm:$0xff]
        %v628 = vld [vmem:[%s187 + $0xb98] sm:$0xff]
        %v629 = vld [vmem:[%s187 + $0xba0] sm:$0xff]
        %v630 = vld [vmem:[%s187 + $0xba8] sm:$0xff]
        %v631 = vld [vmem:[%s187 + $0xbb0] sm:$0xff]
        %v632 = vld [vmem:[%s187 + $0xbb8] sm:$0xff]
        %v633 = vld [vmem:[%s187 + $0xbc0] sm:$0xff]
        %v634 = vld [vmem:[%s187 + $0xbc8] sm:$0xff]
        %v635 = vld [vmem:[%s187 + $0xbd0] sm:$0xff]
        %v636 = vld [vmem:[%s187 + $0xbd8] sm:$0xff]
        %v637 = vld [vmem:[%s187 + $0xbe0] sm:$0xff]
        %v638 = vld [vmem:[%s187 + $0xbe8] sm:$0xff]
        %v639 = vld [vmem:[%s187 + $0xbf0] sm:$0xff]
        %v640 = vld [vmem:[%s187 + $0xbf8] sm:$0xff]
        %v641 = vld [vmem:[%s196] sm:$0x3f]
        %v643 = vlaneseq
        %v644 = vshrl.u32 %v643, 7
        %v645 = vsub.s32 0, %v644
        %v646 = vrot.slane %v641, %v645
        %v647 = vlaneseq
        %v648 = vshrl.u32 %v647, 7
        %v649 = vsub.s32 1, %v648
        %v650 = vrot.slane %v641, %v649
        %v651 = vlaneseq
        %v652 = vshrl.u32 %v651, 7
        %v653 = vsub.s32 2, %v652
        %v654 = vrot.slane %v641, %v653
        %v655 = vlaneseq
        %v656 = vshrl.u32 %v655, 7
        %v657 = vsub.s32 3, %v656
        %v658 = vrot.slane %v641, %v657
        %v659 = vlaneseq
        %v660 = vshrl.u32 %v659, 7
        %v661 = vsub.s32 4, %v660
        %v662 = vrot.slane %v641, %v661
        %v663 = vlaneseq
        %v664 = vshrl.u32 %v663, 7
        %v665 = vsub.s32 5, %v664
        %v666 = vrot.slane %v641, %v665
        %v705 = vunpack.c.l.b16 %v225
        %v706 = vunpack.c.h.b16 %v225
        %v707 = vunpack.c.l.b16 %v226
        %v708 = vunpack.c.h.b16 %v226
        %v709 = vunpack.c.l.b16 %v227
        %v710 = vunpack.c.h.b16 %v227
        %v711 = vunpack.c.l.b16 %v228
        %v712 = vunpack.c.h.b16 %v228
        %v713 = vunpack.c.l.b16 %v229
        %v714 = vunpack.c.h.b16 %v229
        %v715 = vunpack.c.l.b16 %v230
        %v716 = vunpack.c.h.b16 %v230
        %v717 = vunpack.c.l.b16 %v231
        %v718 = vunpack.c.h.b16 %v231
        %v719 = vunpack.c.l.b16 %v232
        %v720 = vunpack.c.h.b16 %v232
        %v721 = vunpack.c.l.b16 %v233
        %v722 = vunpack.c.h.b16 %v233
        %v723 = vunpack.c.l.b16 %v234
        %v724 = vunpack.c.h.b16 %v234
        %v725 = vunpack.c.l.b16 %v235
        %v726 = vunpack.c.h.b16 %v235
        %v727 = vunpack.c.l.b16 %v236
        %v728 = vunpack.c.h.b16 %v236
        %v729 = vunpack.c.l.b16 %v237
        %v730 = vunpack.c.h.b16 %v237
        %v731 = vunpack.c.l.b16 %v238
        %v732 = vunpack.c.h.b16 %v238
        %v733 = vunpack.c.l.b16 %v239
        %v734 = vunpack.c.h.b16 %v239
        %v735 = vunpack.c.l.b16 %v240
        %v736 = vunpack.c.h.b16 %v240
        %v737 = vunpack.c.l.b16 %v241
        %v738 = vunpack.c.h.b16 %v241
        %v739 = vunpack.c.l.b16 %v242
        %v740 = vunpack.c.h.b16 %v242
        %v741 = vunpack.c.l.b16 %v243
        %v742 = vunpack.c.h.b16 %v243
        %v743 = vunpack.c.l.b16 %v244
        %v744 = vunpack.c.h.b16 %v244
        %v745 = vunpack.c.l.b16 %v245
        %v746 = vunpack.c.h.b16 %v245
        %v747 = vunpack.c.l.b16 %v246
        %v748 = vunpack.c.h.b16 %v246
        %v749 = vunpack.c.l.b16 %v247
        %v750 = vunpack.c.h.b16 %v247
        %v751 = vunpack.c.l.b16 %v248
        %v752 = vunpack.c.h.b16 %v248
        %v753 = vunpack.c.l.b16 %v249
        %v754 = vunpack.c.h.b16 %v249
        %v755 = vunpack.c.l.b16 %v250
        %v756 = vunpack.c.h.b16 %v250
        %v757 = vunpack.c.l.b16 %v251
        %v758 = vunpack.c.h.b16 %v251
        %v759 = vunpack.c.l.b16 %v252
        %v760 = vunpack.c.h.b16 %v252
        %v761 = vunpack.c.l.b16 %v253
        %v762 = vunpack.c.h.b16 %v253
        %v763 = vunpack.c.l.b16 %v254
        %v764 = vunpack.c.h.b16 %v254
        %v765 = vunpack.c.l.b16 %v255
        %v766 = vunpack.c.h.b16 %v255
        %v767 = vunpack.c.l.b16 %v256
        %v768 = vunpack.c.h.b16 %v256
        %v769 = vpack.c.b16 %v713, %v705
        %v770 = vpack.c.b16 %v714, %v706
        %v771 = vpack.c.b16 %v715, %v707
        %v772 = vpack.c.b16 %v716, %v708
        %v773 = vpack.c.b16 %v717, %v709
        %v774 = vpack.c.b16 %v718, %v710
        %v775 = vpack.c.b16 %v719, %v711
        %v776 = vpack.c.b16 %v720, %v712
        %v777 = vpack.c.b16 %v729, %v721
        %v778 = vpack.c.b16 %v730, %v722
        %v779 = vpack.c.b16 %v731, %v723
        %v780 = vpack.c.b16 %v732, %v724
        %v781 = vpack.c.b16 %v733, %v725
        %v782 = vpack.c.b16 %v734, %v726
        %v783 = vpack.c.b16 %v735, %v727
        %v784 = vpack.c.b16 %v736, %v728
        %v785 = vpack.c.b16 %v745, %v737
        %v786 = vpack.c.b16 %v746, %v738
        %v787 = vpack.c.b16 %v747, %v739
        %v788 = vpack.c.b16 %v748, %v740
        %v789 = vpack.c.b16 %v749, %v741
        %v790 = vpack.c.b16 %v750, %v742
        %v791 = vpack.c.b16 %v751, %v743
        %v792 = vpack.c.b16 %v752, %v744
        %v793 = vpack.c.b16 %v761, %v753
        %v794 = vpack.c.b16 %v762, %v754
        %v795 = vpack.c.b16 %v763, %v755
        %v796 = vpack.c.b16 %v764, %v756
        %v797 = vpack.c.b16 %v765, %v757
        %v798 = vpack.c.b16 %v766, %v758
        %v799 = vpack.c.b16 %v767, %v759
        %v800 = vpack.c.b16 %v768, %v760
        %v1217 = vunpack.c.l.b16 %v257
        %v1218 = vunpack.c.h.b16 %v257
        %v1219 = vunpack.c.l.b16 %v258
        %v1220 = vunpack.c.h.b16 %v258
        %v1221 = vunpack.c.l.b16 %v259
        %v1222 = vunpack.c.h.b16 %v259
        %v1223 = vunpack.c.l.b16 %v260
        %v1224 = vunpack.c.h.b16 %v260
        %v1225 = vunpack.c.l.b16 %v261
        %v1226 = vunpack.c.h.b16 %v261
        %v1227 = vunpack.c.l.b16 %v262
        %v1228 = vunpack.c.h.b16 %v262
        %v1229 = vunpack.c.l.b16 %v263
        %v1230 = vunpack.c.h.b16 %v263
        %v1231 = vunpack.c.l.b16 %v264
        %v1232 = vunpack.c.h.b16 %v264
        %v1233 = vunpack.c.l.b16 %v265
        %v1234 = vunpack.c.h.b16 %v265
        %v1235 = vunpack.c.l.b16 %v266
        %v1236 = vunpack.c.h.b16 %v266
        %v1237 = vunpack.c.l.b16 %v267
        %v1238 = vunpack.c.h.b16 %v267
        %v1239 = vunpack.c.l.b16 %v268
        %v1240 = vunpack.c.h.b16 %v268
        %v1241 = vunpack.c.l.b16 %v269
        %v1242 = vunpack.c.h.b16 %v269
        %v1243 = vunpack.c.l.b16 %v270
        %v1244 = vunpack.c.h.b16 %v270
        %v1245 = vunpack.c.l.b16 %v271
        %v1246 = vunpack.c.h.b16 %v271
        %v1247 = vunpack.c.l.b16 %v272
        %v1248 = vunpack.c.h.b16 %v272
        %v1249 = vunpack.c.l.b16 %v273
        %v1250 = vunpack.c.h.b16 %v273
        %v1251 = vunpack.c.l.b16 %v274
        %v1252 = vunpack.c.h.b16 %v274
        %v1253 = vunpack.c.l.b16 %v275
        %v1254 = vunpack.c.h.b16 %v275
        %v1255 = vunpack.c.l.b16 %v276
        %v1256 = vunpack.c.h.b16 %v276
        %v1257 = vunpack.c.l.b16 %v277
        %v1258 = vunpack.c.h.b16 %v277
        %v1259 = vunpack.c.l.b16 %v278
        %v1260 = vunpack.c.h.b16 %v278
        %v1261 = vunpack.c.l.b16 %v279
        %v1262 = vunpack.c.h.b16 %v279
        %v1263 = vunpack.c.l.b16 %v280
        %v1264 = vunpack.c.h.b16 %v280
        %v1265 = vunpack.c.l.b16 %v281
        %v1266 = vunpack.c.h.b16 %v281
        %v1267 = vunpack.c.l.b16 %v282
        %v1268 = vunpack.c.h.b16 %v282
        %v1269 = vunpack.c.l.b16 %v283
        %v1270 = vunpack.c.h.b16 %v283
        %v1271 = vunpack.c.l.b16 %v284
        %v1272 = vunpack.c.h.b16 %v284
        %v1273 = vunpack.c.l.b16 %v285
        %v1274 = vunpack.c.h.b16 %v285
        %v1275 = vunpack.c.l.b16 %v286
        %v1276 = vunpack.c.h.b16 %v286
        %v1277 = vunpack.c.l.b16 %v287
        %v1278 = vunpack.c.h.b16 %v287
        %v1279 = vunpack.c.l.b16 %v288
        %v1280 = vunpack.c.h.b16 %v288
        %v1281 = vunpack.c.l.b16 %v289
        %v1282 = vunpack.c.h.b16 %v289
        %v1283 = vunpack.c.l.b16 %v290
        %v1284 = vunpack.c.h.b16 %v290
        %v1285 = vunpack.c.l.b16 %v291
        %v1286 = vunpack.c.h.b16 %v291
        %v1287 = vunpack.c.l.b16 %v292
        %v1288 = vunpack.c.h.b16 %v292
        %v1289 = vunpack.c.l.b16 %v293
        %v1290 = vunpack.c.h.b16 %v293
        %v1291 = vunpack.c.l.b16 %v294
        %v1292 = vunpack.c.h.b16 %v294
        %v1293 = vunpack.c.l.b16 %v295
        %v1294 = vunpack.c.h.b16 %v295
        %v1295 = vunpack.c.l.b16 %v296
        %v1296 = vunpack.c.h.b16 %v296
        %v1297 = vunpack.c.l.b16 %v297
        %v1298 = vunpack.c.h.b16 %v297
        %v1299 = vunpack.c.l.b16 %v298
        %v1300 = vunpack.c.h.b16 %v298
        %v1301 = vunpack.c.l.b16 %v299
        %v1302 = vunpack.c.h.b16 %v299
        %v1303 = vunpack.c.l.b16 %v300
        %v1304 = vunpack.c.h.b16 %v300
        %v1305 = vunpack.c.l.b16 %v301
        %v1306 = vunpack.c.h.b16 %v301
        %v1307 = vunpack.c.l.b16 %v302
        %v1308 = vunpack.c.h.b16 %v302
        %v1309 = vunpack.c.l.b16 %v303
        %v1310 = vunpack.c.h.b16 %v303
        %v1311 = vunpack.c.l.b16 %v304
        %v1312 = vunpack.c.h.b16 %v304
        %v1313 = vunpack.c.l.b16 %v305
        %v1314 = vunpack.c.h.b16 %v305
        %v1315 = vunpack.c.l.b16 %v306
        %v1316 = vunpack.c.h.b16 %v306
        %v1317 = vunpack.c.l.b16 %v307
        %v1318 = vunpack.c.h.b16 %v307
        %v1319 = vunpack.c.l.b16 %v308
        %v1320 = vunpack.c.h.b16 %v308
        %v1321 = vunpack.c.l.b16 %v309
        %v1322 = vunpack.c.h.b16 %v309
        %v1323 = vunpack.c.l.b16 %v310
        %v1324 = vunpack.c.h.b16 %v310
        %v1325 = vunpack.c.l.b16 %v311
        %v1326 = vunpack.c.h.b16 %v311
        %v1327 = vunpack.c.l.b16 %v312
        %v1328 = vunpack.c.h.b16 %v312
        %v1329 = vunpack.c.l.b16 %v313
        %v1330 = vunpack.c.h.b16 %v313
        %v1331 = vunpack.c.l.b16 %v314
        %v1332 = vunpack.c.h.b16 %v314
        %v1333 = vunpack.c.l.b16 %v315
        %v1334 = vunpack.c.h.b16 %v315
        %v1335 = vunpack.c.l.b16 %v316
        %v1336 = vunpack.c.h.b16 %v316
        %v1337 = vunpack.c.l.b16 %v317
        %v1338 = vunpack.c.h.b16 %v317
        %v1339 = vunpack.c.l.b16 %v318
        %v1340 = vunpack.c.h.b16 %v318
        %v1341 = vunpack.c.l.b16 %v319
        %v1342 = vunpack.c.h.b16 %v319
        %v1343 = vunpack.c.l.b16 %v320
        %v1344 = vunpack.c.h.b16 %v320
        %v1345 = vunpack.c.l.b16 %v321
        %v1346 = vunpack.c.h.b16 %v321
        %v1347 = vunpack.c.l.b16 %v322
        %v1348 = vunpack.c.h.b16 %v322
        %v1349 = vunpack.c.l.b16 %v323
        %v1350 = vunpack.c.h.b16 %v323
        %v1351 = vunpack.c.l.b16 %v324
        %v1352 = vunpack.c.h.b16 %v324
        %v1353 = vunpack.c.l.b16 %v325
        %v1354 = vunpack.c.h.b16 %v325
        %v1355 = vunpack.c.l.b16 %v326
        %v1356 = vunpack.c.h.b16 %v326
        %v1357 = vunpack.c.l.b16 %v327
        %v1358 = vunpack.c.h.b16 %v327
        %v1359 = vunpack.c.l.b16 %v328
        %v1360 = vunpack.c.h.b16 %v328
        %v1361 = vunpack.c.l.b16 %v329
        %v1362 = vunpack.c.h.b16 %v329
        %v1363 = vunpack.c.l.b16 %v330
        %v1364 = vunpack.c.h.b16 %v330
        %v1365 = vunpack.c.l.b16 %v331
        %v1366 = vunpack.c.h.b16 %v331
        %v1367 = vunpack.c.l.b16 %v332
        %v1368 = vunpack.c.h.b16 %v332
        %v1369 = vunpack.c.l.b16 %v333
        %v1370 = vunpack.c.h.b16 %v333
        %v1371 = vunpack.c.l.b16 %v334
        %v1372 = vunpack.c.h.b16 %v334
        %v1373 = vunpack.c.l.b16 %v335
        %v1374 = vunpack.c.h.b16 %v335
        %v1375 = vunpack.c.l.b16 %v336
        %v1376 = vunpack.c.h.b16 %v336
        %v1377 = vunpack.c.l.b16 %v337
        %v1378 = vunpack.c.h.b16 %v337
        %v1379 = vunpack.c.l.b16 %v338
        %v1380 = vunpack.c.h.b16 %v338
        %v1381 = vunpack.c.l.b16 %v339
        %v1382 = vunpack.c.h.b16 %v339
        %v1383 = vunpack.c.l.b16 %v340
        %v1384 = vunpack.c.h.b16 %v340
        %v1385 = vunpack.c.l.b16 %v341
        %v1386 = vunpack.c.h.b16 %v341
        %v1387 = vunpack.c.l.b16 %v342
        %v1388 = vunpack.c.h.b16 %v342
        %v1389 = vunpack.c.l.b16 %v343
        %v1390 = vunpack.c.h.b16 %v343
        %v1391 = vunpack.c.l.b16 %v344
        %v1392 = vunpack.c.h.b16 %v344
        %v1393 = vunpack.c.l.b16 %v345
        %v1394 = vunpack.c.h.b16 %v345
        %v1395 = vunpack.c.l.b16 %v346
        %v1396 = vunpack.c.h.b16 %v346
        %v1397 = vunpack.c.l.b16 %v347
        %v1398 = vunpack.c.h.b16 %v347
        %v1399 = vunpack.c.l.b16 %v348
        %v1400 = vunpack.c.h.b16 %v348
        %v1401 = vunpack.c.l.b16 %v349
        %v1402 = vunpack.c.h.b16 %v349
        %v1403 = vunpack.c.l.b16 %v350
        %v1404 = vunpack.c.h.b16 %v350
        %v1405 = vunpack.c.l.b16 %v351
        %v1406 = vunpack.c.h.b16 %v351
        %v1407 = vunpack.c.l.b16 %v352
        %v1408 = vunpack.c.h.b16 %v352
        %v1409 = vunpack.c.l.b16 %v353
        %v1410 = vunpack.c.h.b16 %v353
        %v1411 = vunpack.c.l.b16 %v354
        %v1412 = vunpack.c.h.b16 %v354
        %v1413 = vunpack.c.l.b16 %v355
        %v1414 = vunpack.c.h.b16 %v355
        %v1415 = vunpack.c.l.b16 %v356
        %v1416 = vunpack.c.h.b16 %v356
        %v1417 = vunpack.c.l.b16 %v357
        %v1418 = vunpack.c.h.b16 %v357
        %v1419 = vunpack.c.l.b16 %v358
        %v1420 = vunpack.c.h.b16 %v358
        %v1421 = vunpack.c.l.b16 %v359
        %v1422 = vunpack.c.h.b16 %v359
        %v1423 = vunpack.c.l.b16 %v360
        %v1424 = vunpack.c.h.b16 %v360
        %v1425 = vunpack.c.l.b16 %v361
        %v1426 = vunpack.c.h.b16 %v361
        %v1427 = vunpack.c.l.b16 %v362
        %v1428 = vunpack.c.h.b16 %v362
        %v1429 = vunpack.c.l.b16 %v363
        %v1430 = vunpack.c.h.b16 %v363
        %v1431 = vunpack.c.l.b16 %v364
        %v1432 = vunpack.c.h.b16 %v364
        %v1433 = vunpack.c.l.b16 %v365
        %v1434 = vunpack.c.h.b16 %v365
        %v1435 = vunpack.c.l.b16 %v366
        %v1436 = vunpack.c.h.b16 %v366
        %v1437 = vunpack.c.l.b16 %v367
        %v1438 = vunpack.c.h.b16 %v367
        %v1439 = vunpack.c.l.b16 %v368
        %v1440 = vunpack.c.h.b16 %v368
        %v1441 = vunpack.c.l.b16 %v369
        %v1442 = vunpack.c.h.b16 %v369
        %v1443 = vunpack.c.l.b16 %v370
        %v1444 = vunpack.c.h.b16 %v370
        %v1445 = vunpack.c.l.b16 %v371
        %v1446 = vunpack.c.h.b16 %v371
        %v1447 = vunpack.c.l.b16 %v372
        %v1448 = vunpack.c.h.b16 %v372
        %v1449 = vunpack.c.l.b16 %v373
        %v1450 = vunpack.c.h.b16 %v373
        %v1451 = vunpack.c.l.b16 %v374
        %v1452 = vunpack.c.h.b16 %v374
        %v1453 = vunpack.c.l.b16 %v375
        %v1454 = vunpack.c.h.b16 %v375
        %v1455 = vunpack.c.l.b16 %v376
        %v1456 = vunpack.c.h.b16 %v376
        %v1457 = vunpack.c.l.b16 %v377
        %v1458 = vunpack.c.h.b16 %v377
        %v1459 = vunpack.c.l.b16 %v378
        %v1460 = vunpack.c.h.b16 %v378
        %v1461 = vunpack.c.l.b16 %v379
        %v1462 = vunpack.c.h.b16 %v379
        %v1463 = vunpack.c.l.b16 %v380
        %v1464 = vunpack.c.h.b16 %v380
        %v1465 = vunpack.c.l.b16 %v381
        %v1466 = vunpack.c.h.b16 %v381
        %v1467 = vunpack.c.l.b16 %v382
        %v1468 = vunpack.c.h.b16 %v382
        %v1469 = vunpack.c.l.b16 %v383
        %v1470 = vunpack.c.h.b16 %v383
        %v1471 = vunpack.c.l.b16 %v384
        %v1472 = vunpack.c.h.b16 %v384
        %v1473 = vunpack.c.l.b16 %v385
        %v1474 = vunpack.c.h.b16 %v385
        %v1475 = vunpack.c.l.b16 %v386
        %v1476 = vunpack.c.h.b16 %v386
        %v1477 = vunpack.c.l.b16 %v387
        %v1478 = vunpack.c.h.b16 %v387
        %v1479 = vunpack.c.l.b16 %v388
        %v1480 = vunpack.c.h.b16 %v388
        %v1481 = vunpack.c.l.b16 %v389
        %v1482 = vunpack.c.h.b16 %v389
        %v1483 = vunpack.c.l.b16 %v390
        %v1484 = vunpack.c.h.b16 %v390
        %v1485 = vunpack.c.l.b16 %v391
        %v1486 = vunpack.c.h.b16 %v391
        %v1487 = vunpack.c.l.b16 %v392
        %v1488 = vunpack.c.h.b16 %v392
        %v1489 = vunpack.c.l.b16 %v393
        %v1490 = vunpack.c.h.b16 %v393
        %v1491 = vunpack.c.l.b16 %v394
        %v1492 = vunpack.c.h.b16 %v394
        %v1493 = vunpack.c.l.b16 %v395
        %v1494 = vunpack.c.h.b16 %v395
        %v1495 = vunpack.c.l.b16 %v396
        %v1496 = vunpack.c.h.b16 %v396
        %v1497 = vunpack.c.l.b16 %v397
        %v1498 = vunpack.c.h.b16 %v397
        %v1499 = vunpack.c.l.b16 %v398
        %v1500 = vunpack.c.h.b16 %v398
        %v1501 = vunpack.c.l.b16 %v399
        %v1502 = vunpack.c.h.b16 %v399
        %v1503 = vunpack.c.l.b16 %v400
        %v1504 = vunpack.c.h.b16 %v400
        %v1505 = vunpack.c.l.b16 %v401
        %v1506 = vunpack.c.h.b16 %v401
        %v1507 = vunpack.c.l.b16 %v402
        %v1508 = vunpack.c.h.b16 %v402
        %v1509 = vunpack.c.l.b16 %v403
        %v1510 = vunpack.c.h.b16 %v403
        %v1511 = vunpack.c.l.b16 %v404
        %v1512 = vunpack.c.h.b16 %v404
        %v1513 = vunpack.c.l.b16 %v405
        %v1514 = vunpack.c.h.b16 %v405
        %v1515 = vunpack.c.l.b16 %v406
        %v1516 = vunpack.c.h.b16 %v406
        %v1517 = vunpack.c.l.b16 %v407
        %v1518 = vunpack.c.h.b16 %v407
        %v1519 = vunpack.c.l.b16 %v408
        %v1520 = vunpack.c.h.b16 %v408
        %v1521 = vunpack.c.l.b16 %v409
        %v1522 = vunpack.c.h.b16 %v409
        %v1523 = vunpack.c.l.b16 %v410
        %v1524 = vunpack.c.h.b16 %v410
        %v1525 = vunpack.c.l.b16 %v411
        %v1526 = vunpack.c.h.b16 %v411
        %v1527 = vunpack.c.l.b16 %v412
        %v1528 = vunpack.c.h.b16 %v412
        %v1529 = vunpack.c.l.b16 %v413
        %v1530 = vunpack.c.h.b16 %v413
        %v1531 = vunpack.c.l.b16 %v414
        %v1532 = vunpack.c.h.b16 %v414
        %v1533 = vunpack.c.l.b16 %v415
        %v1534 = vunpack.c.h.b16 %v415
        %v1535 = vunpack.c.l.b16 %v416
        %v1536 = vunpack.c.h.b16 %v416
        %v1537 = vunpack.c.l.b16 %v417
        %v1538 = vunpack.c.h.b16 %v417
        %v1539 = vunpack.c.l.b16 %v418
        %v1540 = vunpack.c.h.b16 %v418
        %v1541 = vunpack.c.l.b16 %v419
        %v1542 = vunpack.c.h.b16 %v419
        %v1543 = vunpack.c.l.b16 %v420
        %v1544 = vunpack.c.h.b16 %v420
        %v1545 = vunpack.c.l.b16 %v421
        %v1546 = vunpack.c.h.b16 %v421
        %v1547 = vunpack.c.l.b16 %v422
        %v1548 = vunpack.c.h.b16 %v422
        %v1549 = vunpack.c.l.b16 %v423
        %v1550 = vunpack.c.h.b16 %v423
        %v1551 = vunpack.c.l.b16 %v424
        %v1552 = vunpack.c.h.b16 %v424
        %v1553 = vunpack.c.l.b16 %v425
        %v1554 = vunpack.c.h.b16 %v425
        %v1555 = vunpack.c.l.b16 %v426
        %v1556 = vunpack.c.h.b16 %v426
        %v1557 = vunpack.c.l.b16 %v427
        %v1558 = vunpack.c.h.b16 %v427
        %v1559 = vunpack.c.l.b16 %v428
        %v1560 = vunpack.c.h.b16 %v428
        %v1561 = vunpack.c.l.b16 %v429
        %v1562 = vunpack.c.h.b16 %v429
        %v1563 = vunpack.c.l.b16 %v430
        %v1564 = vunpack.c.h.b16 %v430
        %v1565 = vunpack.c.l.b16 %v431
        %v1566 = vunpack.c.h.b16 %v431
        %v1567 = vunpack.c.l.b16 %v432
        %v1568 = vunpack.c.h.b16 %v432
        %v1569 = vunpack.c.l.b16 %v433
        %v1570 = vunpack.c.h.b16 %v433
        %v1571 = vunpack.c.l.b16 %v434
        %v1572 = vunpack.c.h.b16 %v434
        %v1573 = vunpack.c.l.b16 %v435
        %v1574 = vunpack.c.h.b16 %v435
        %v1575 = vunpack.c.l.b16 %v436
        %v1576 = vunpack.c.h.b16 %v436
        %v1577 = vunpack.c.l.b16 %v437
        %v1578 = vunpack.c.h.b16 %v437
        %v1579 = vunpack.c.l.b16 %v438
        %v1580 = vunpack.c.h.b16 %v438
        %v1581 = vunpack.c.l.b16 %v439
        %v1582 = vunpack.c.h.b16 %v439
        %v1583 = vunpack.c.l.b16 %v440
        %v1584 = vunpack.c.h.b16 %v440
        %v1585 = vunpack.c.l.b16 %v441
        %v1586 = vunpack.c.h.b16 %v441
        %v1587 = vunpack.c.l.b16 %v442
        %v1588 = vunpack.c.h.b16 %v442
        %v1589 = vunpack.c.l.b16 %v443
        %v1590 = vunpack.c.h.b16 %v443
        %v1591 = vunpack.c.l.b16 %v444
        %v1592 = vunpack.c.h.b16 %v444
        %v1593 = vunpack.c.l.b16 %v445
        %v1594 = vunpack.c.h.b16 %v445
        %v1595 = vunpack.c.l.b16 %v446
        %v1596 = vunpack.c.h.b16 %v446
        %v1597 = vunpack.c.l.b16 %v447
        %v1598 = vunpack.c.h.b16 %v447
        %v1599 = vunpack.c.l.b16 %v448
        %v1600 = vunpack.c.h.b16 %v448
        %v1601 = vunpack.c.l.b16 %v449
        %v1602 = vunpack.c.h.b16 %v449
        %v1603 = vunpack.c.l.b16 %v450
        %v1604 = vunpack.c.h.b16 %v450
        %v1605 = vunpack.c.l.b16 %v451
        %v1606 = vunpack.c.h.b16 %v451
        %v1607 = vunpack.c.l.b16 %v452
        %v1608 = vunpack.c.h.b16 %v452
        %v1609 = vunpack.c.l.b16 %v453
        %v1610 = vunpack.c.h.b16 %v453
        %v1611 = vunpack.c.l.b16 %v454
        %v1612 = vunpack.c.h.b16 %v454
        %v1613 = vunpack.c.l.b16 %v455
        %v1614 = vunpack.c.h.b16 %v455
        %v1615 = vunpack.c.l.b16 %v456
        %v1616 = vunpack.c.h.b16 %v456
        %v1617 = vunpack.c.l.b16 %v457
        %v1618 = vunpack.c.h.b16 %v457
        %v1619 = vunpack.c.l.b16 %v458
        %v1620 = vunpack.c.h.b16 %v458
        %v1621 = vunpack.c.l.b16 %v459
        %v1622 = vunpack.c.h.b16 %v459
        %v1623 = vunpack.c.l.b16 %v460
        %v1624 = vunpack.c.h.b16 %v460
        %v1625 = vunpack.c.l.b16 %v461
        %v1626 = vunpack.c.h.b16 %v461
        %v1627 = vunpack.c.l.b16 %v462
        %v1628 = vunpack.c.h.b16 %v462
        %v1629 = vunpack.c.l.b16 %v463
        %v1630 = vunpack.c.h.b16 %v463
        %v1631 = vunpack.c.l.b16 %v464
        %v1632 = vunpack.c.h.b16 %v464
        %v1633 = vunpack.c.l.b16 %v465
        %v1634 = vunpack.c.h.b16 %v465
        %v1635 = vunpack.c.l.b16 %v466
        %v1636 = vunpack.c.h.b16 %v466
        %v1637 = vunpack.c.l.b16 %v467
        %v1638 = vunpack.c.h.b16 %v467
        %v1639 = vunpack.c.l.b16 %v468
        %v1640 = vunpack.c.h.b16 %v468
        %v1641 = vunpack.c.l.b16 %v469
        %v1642 = vunpack.c.h.b16 %v469
        %v1643 = vunpack.c.l.b16 %v470
        %v1644 = vunpack.c.h.b16 %v470
        %v1645 = vunpack.c.l.b16 %v471
        %v1646 = vunpack.c.h.b16 %v471
        %v1647 = vunpack.c.l.b16 %v472
        %v1648 = vunpack.c.h.b16 %v472
        %v1649 = vunpack.c.l.b16 %v473
        %v1650 = vunpack.c.h.b16 %v473
        %v1651 = vunpack.c.l.b16 %v474
        %v1652 = vunpack.c.h.b16 %v474
        %v1653 = vunpack.c.l.b16 %v475
        %v1654 = vunpack.c.h.b16 %v475
        %v1655 = vunpack.c.l.b16 %v476
        %v1656 = vunpack.c.h.b16 %v476
        %v1657 = vunpack.c.l.b16 %v477
        %v1658 = vunpack.c.h.b16 %v477
        %v1659 = vunpack.c.l.b16 %v478
        %v1660 = vunpack.c.h.b16 %v478
        %v1661 = vunpack.c.l.b16 %v479
        %v1662 = vunpack.c.h.b16 %v479
        %v1663 = vunpack.c.l.b16 %v480
        %v1664 = vunpack.c.h.b16 %v480
        %v1665 = vunpack.c.l.b16 %v481
        %v1666 = vunpack.c.h.b16 %v481
        %v1667 = vunpack.c.l.b16 %v482
        %v1668 = vunpack.c.h.b16 %v482
        %v1669 = vunpack.c.l.b16 %v483
        %v1670 = vunpack.c.h.b16 %v483
        %v1671 = vunpack.c.l.b16 %v484
        %v1672 = vunpack.c.h.b16 %v484
        %v1673 = vunpack.c.l.b16 %v485
        %v1674 = vunpack.c.h.b16 %v485
        %v1675 = vunpack.c.l.b16 %v486
        %v1676 = vunpack.c.h.b16 %v486
        %v1677 = vunpack.c.l.b16 %v487
        %v1678 = vunpack.c.h.b16 %v487
        %v1679 = vunpack.c.l.b16 %v488
        %v1680 = vunpack.c.h.b16 %v488
        %v1681 = vunpack.c.l.b16 %v489
        %v1682 = vunpack.c.h.b16 %v489
        %v1683 = vunpack.c.l.b16 %v490
        %v1684 = vunpack.c.h.b16 %v490
        %v1685 = vunpack.c.l.b16 %v491
        %v1686 = vunpack.c.h.b16 %v491
        %v1687 = vunpack.c.l.b16 %v492
        %v1688 = vunpack.c.h.b16 %v492
        %v1689 = vunpack.c.l.b16 %v493
        %v1690 = vunpack.c.h.b16 %v493
        %v1691 = vunpack.c.l.b16 %v494
        %v1692 = vunpack.c.h.b16 %v494
        %v1693 = vunpack.c.l.b16 %v495
        %v1694 = vunpack.c.h.b16 %v495
        %v1695 = vunpack.c.l.b16 %v496
        %v1696 = vunpack.c.h.b16 %v496
        %v1697 = vunpack.c.l.b16 %v497
        %v1698 = vunpack.c.h.b16 %v497
        %v1699 = vunpack.c.l.b16 %v498
        %v1700 = vunpack.c.h.b16 %v498
        %v1701 = vunpack.c.l.b16 %v499
        %v1702 = vunpack.c.h.b16 %v499
        %v1703 = vunpack.c.l.b16 %v500
        %v1704 = vunpack.c.h.b16 %v500
        %v1705 = vunpack.c.l.b16 %v501
        %v1706 = vunpack.c.h.b16 %v501
        %v1707 = vunpack.c.l.b16 %v502
        %v1708 = vunpack.c.h.b16 %v502
        %v1709 = vunpack.c.l.b16 %v503
        %v1710 = vunpack.c.h.b16 %v503
        %v1711 = vunpack.c.l.b16 %v504
        %v1712 = vunpack.c.h.b16 %v504
        %v1713 = vunpack.c.l.b16 %v505
        %v1714 = vunpack.c.h.b16 %v505
        %v1715 = vunpack.c.l.b16 %v506
        %v1716 = vunpack.c.h.b16 %v506
        %v1717 = vunpack.c.l.b16 %v507
        %v1718 = vunpack.c.h.b16 %v507
        %v1719 = vunpack.c.l.b16 %v508
        %v1720 = vunpack.c.h.b16 %v508
        %v1721 = vunpack.c.l.b16 %v509
        %v1722 = vunpack.c.h.b16 %v509
        %v1723 = vunpack.c.l.b16 %v510
        %v1724 = vunpack.c.h.b16 %v510
        %v1725 = vunpack.c.l.b16 %v511
        %v1726 = vunpack.c.h.b16 %v511
        %v1727 = vunpack.c.l.b16 %v512
        %v1728 = vunpack.c.h.b16 %v512
        %v1729 = vunpack.c.l.b16 %v513
        %v1730 = vunpack.c.h.b16 %v513
        %v1731 = vunpack.c.l.b16 %v514
        %v1732 = vunpack.c.h.b16 %v514
        %v1733 = vunpack.c.l.b16 %v515
        %v1734 = vunpack.c.h.b16 %v515
        %v1735 = vunpack.c.l.b16 %v516
        %v1736 = vunpack.c.h.b16 %v516
        %v1737 = vunpack.c.l.b16 %v517
        %v1738 = vunpack.c.h.b16 %v517
        %v1739 = vunpack.c.l.b16 %v518
        %v1740 = vunpack.c.h.b16 %v518
        %v1741 = vunpack.c.l.b16 %v519
        %v1742 = vunpack.c.h.b16 %v519
        %v1743 = vunpack.c.l.b16 %v520
        %v1744 = vunpack.c.h.b16 %v520
        %v1745 = vunpack.c.l.b16 %v521
        %v1746 = vunpack.c.h.b16 %v521
        %v1747 = vunpack.c.l.b16 %v522
        %v1748 = vunpack.c.h.b16 %v522
        %v1749 = vunpack.c.l.b16 %v523
        %v1750 = vunpack.c.h.b16 %v523
        %v1751 = vunpack.c.l.b16 %v524
        %v1752 = vunpack.c.h.b16 %v524
        %v1753 = vunpack.c.l.b16 %v525
        %v1754 = vunpack.c.h.b16 %v525
        %v1755 = vunpack.c.l.b16 %v526
        %v1756 = vunpack.c.h.b16 %v526
        %v1757 = vunpack.c.l.b16 %v527
        %v1758 = vunpack.c.h.b16 %v527
        %v1759 = vunpack.c.l.b16 %v528
        %v1760 = vunpack.c.h.b16 %v528
        %v1761 = vunpack.c.l.b16 %v529
        %v1762 = vunpack.c.h.b16 %v529
        %v1763 = vunpack.c.l.b16 %v530
        %v1764 = vunpack.c.h.b16 %v530
        %v1765 = vunpack.c.l.b16 %v531
        %v1766 = vunpack.c.h.b16 %v531
        %v1767 = vunpack.c.l.b16 %v532
        %v1768 = vunpack.c.h.b16 %v532
        %v1769 = vunpack.c.l.b16 %v533
        %v1770 = vunpack.c.h.b16 %v533
        %v1771 = vunpack.c.l.b16 %v534
        %v1772 = vunpack.c.h.b16 %v534
        %v1773 = vunpack.c.l.b16 %v535
        %v1774 = vunpack.c.h.b16 %v535
        %v1775 = vunpack.c.l.b16 %v536
        %v1776 = vunpack.c.h.b16 %v536
        %v1777 = vunpack.c.l.b16 %v537
        %v1778 = vunpack.c.h.b16 %v537
        %v1779 = vunpack.c.l.b16 %v538
        %v1780 = vunpack.c.h.b16 %v538
        %v1781 = vunpack.c.l.b16 %v539
        %v1782 = vunpack.c.h.b16 %v539
        %v1783 = vunpack.c.l.b16 %v540
        %v1784 = vunpack.c.h.b16 %v540
        %v1785 = vunpack.c.l.b16 %v541
        %v1786 = vunpack.c.h.b16 %v541
        %v1787 = vunpack.c.l.b16 %v542
        %v1788 = vunpack.c.h.b16 %v542
        %v1789 = vunpack.c.l.b16 %v543
        %v1790 = vunpack.c.h.b16 %v543
        %v1791 = vunpack.c.l.b16 %v544
        %v1792 = vunpack.c.h.b16 %v544
        %v1793 = vunpack.c.l.b16 %v545
        %v1794 = vunpack.c.h.b16 %v545
        %v1795 = vunpack.c.l.b16 %v546
        %v1796 = vunpack.c.h.b16 %v546
        %v1797 = vunpack.c.l.b16 %v547
        %v1798 = vunpack.c.h.b16 %v547
        %v1799 = vunpack.c.l.b16 %v548
        %v1800 = vunpack.c.h.b16 %v548
        %v1801 = vunpack.c.l.b16 %v549
        %v1802 = vunpack.c.h.b16 %v549
        %v1803 = vunpack.c.l.b16 %v550
        %v1804 = vunpack.c.h.b16 %v550
        %v1805 = vunpack.c.l.b16 %v551
        %v1806 = vunpack.c.h.b16 %v551
        %v1807 = vunpack.c.l.b16 %v552
        %v1808 = vunpack.c.h.b16 %v552
        %v1809 = vunpack.c.l.b16 %v553
        %v1810 = vunpack.c.h.b16 %v553
        %v1811 = vunpack.c.l.b16 %v554
        %v1812 = vunpack.c.h.b16 %v554
        %v1813 = vunpack.c.l.b16 %v555
        %v1814 = vunpack.c.h.b16 %v555
        %v1815 = vunpack.c.l.b16 %v556
        %v1816 = vunpack.c.h.b16 %v556
        %v1817 = vunpack.c.l.b16 %v557
        %v1818 = vunpack.c.h.b16 %v557
        %v1819 = vunpack.c.l.b16 %v558
        %v1820 = vunpack.c.h.b16 %v558
        %v1821 = vunpack.c.l.b16 %v559
        %v1822 = vunpack.c.h.b16 %v559
        %v1823 = vunpack.c.l.b16 %v560
        %v1824 = vunpack.c.h.b16 %v560
        %v1825 = vunpack.c.l.b16 %v561
        %v1826 = vunpack.c.h.b16 %v561
        %v1827 = vunpack.c.l.b16 %v562
        %v1828 = vunpack.c.h.b16 %v562
        %v1829 = vunpack.c.l.b16 %v563
        %v1830 = vunpack.c.h.b16 %v563
        %v1831 = vunpack.c.l.b16 %v564
        %v1832 = vunpack.c.h.b16 %v564
        %v1833 = vunpack.c.l.b16 %v565
        %v1834 = vunpack.c.h.b16 %v565
        %v1835 = vunpack.c.l.b16 %v566
        %v1836 = vunpack.c.h.b16 %v566
        %v1837 = vunpack.c.l.b16 %v567
        %v1838 = vunpack.c.h.b16 %v567
        %v1839 = vunpack.c.l.b16 %v568
        %v1840 = vunpack.c.h.b16 %v568
        %v1841 = vunpack.c.l.b16 %v569
        %v1842 = vunpack.c.h.b16 %v569
        %v1843 = vunpack.c.l.b16 %v570
        %v1844 = vunpack.c.h.b16 %v570
        %v1845 = vunpack.c.l.b16 %v571
        %v1846 = vunpack.c.h.b16 %v571
        %v1847 = vunpack.c.l.b16 %v572
        %v1848 = vunpack.c.h.b16 %v572
        %v1849 = vunpack.c.l.b16 %v573
        %v1850 = vunpack.c.h.b16 %v573
        %v1851 = vunpack.c.l.b16 %v574
        %v1852 = vunpack.c.h.b16 %v574
        %v1853 = vunpack.c.l.b16 %v575
        %v1854 = vunpack.c.h.b16 %v575
        %v1855 = vunpack.c.l.b16 %v576
        %v1856 = vunpack.c.h.b16 %v576
        %v1857 = vunpack.c.l.b16 %v577
        %v1858 = vunpack.c.h.b16 %v577
        %v1859 = vunpack.c.l.b16 %v578
        %v1860 = vunpack.c.h.b16 %v578
        %v1861 = vunpack.c.l.b16 %v579
        %v1862 = vunpack.c.h.b16 %v579
        %v1863 = vunpack.c.l.b16 %v580
        %v1864 = vunpack.c.h.b16 %v580
        %v1865 = vunpack.c.l.b16 %v581
        %v1866 = vunpack.c.h.b16 %v581
        %v1867 = vunpack.c.l.b16 %v582
        %v1868 = vunpack.c.h.b16 %v582
        %v1869 = vunpack.c.l.b16 %v583
        %v1870 = vunpack.c.h.b16 %v583
        %v1871 = vunpack.c.l.b16 %v584
        %v1872 = vunpack.c.h.b16 %v584
        %v1873 = vunpack.c.l.b16 %v585
        %v1874 = vunpack.c.h.b16 %v585
        %v1875 = vunpack.c.l.b16 %v586
        %v1876 = vunpack.c.h.b16 %v586
        %v1877 = vunpack.c.l.b16 %v587
        %v1878 = vunpack.c.h.b16 %v587
        %v1879 = vunpack.c.l.b16 %v588
        %v1880 = vunpack.c.h.b16 %v588
        %v1881 = vunpack.c.l.b16 %v589
        %v1882 = vunpack.c.h.b16 %v589
        %v1883 = vunpack.c.l.b16 %v590
        %v1884 = vunpack.c.h.b16 %v590
        %v1885 = vunpack.c.l.b16 %v591
        %v1886 = vunpack.c.h.b16 %v591
        %v1887 = vunpack.c.l.b16 %v592
        %v1888 = vunpack.c.h.b16 %v592
        %v1889 = vunpack.c.l.b16 %v593
        %v1890 = vunpack.c.h.b16 %v593
        %v1891 = vunpack.c.l.b16 %v594
        %v1892 = vunpack.c.h.b16 %v594
        %v1893 = vunpack.c.l.b16 %v595
        %v1894 = vunpack.c.h.b16 %v595
        %v1895 = vunpack.c.l.b16 %v596
        %v1896 = vunpack.c.h.b16 %v596
        %v1897 = vunpack.c.l.b16 %v597
        %v1898 = vunpack.c.h.b16 %v597
        %v1899 = vunpack.c.l.b16 %v598
        %v1900 = vunpack.c.h.b16 %v598
        %v1901 = vunpack.c.l.b16 %v599
        %v1902 = vunpack.c.h.b16 %v599
        %v1903 = vunpack.c.l.b16 %v600
        %v1904 = vunpack.c.h.b16 %v600
        %v1905 = vunpack.c.l.b16 %v601
        %v1906 = vunpack.c.h.b16 %v601
        %v1907 = vunpack.c.l.b16 %v602
        %v1908 = vunpack.c.h.b16 %v602
        %v1909 = vunpack.c.l.b16 %v603
        %v1910 = vunpack.c.h.b16 %v603
        %v1911 = vunpack.c.l.b16 %v604
        %v1912 = vunpack.c.h.b16 %v604
        %v1913 = vunpack.c.l.b16 %v605
        %v1914 = vunpack.c.h.b16 %v605
        %v1915 = vunpack.c.l.b16 %v606
        %v1916 = vunpack.c.h.b16 %v606
        %v1917 = vunpack.c.l.b16 %v607
        %v1918 = vunpack.c.h.b16 %v607
        %v1919 = vunpack.c.l.b16 %v608
        %v1920 = vunpack.c.h.b16 %v608
        %v1921 = vunpack.c.l.b16 %v609
        %v1922 = vunpack.c.h.b16 %v609
        %v1923 = vunpack.c.l.b16 %v610
        %v1924 = vunpack.c.h.b16 %v610
        %v1925 = vunpack.c.l.b16 %v611
        %v1926 = vunpack.c.h.b16 %v611
        %v1927 = vunpack.c.l.b16 %v612
        %v1928 = vunpack.c.h.b16 %v612
        %v1929 = vunpack.c.l.b16 %v613
        %v1930 = vunpack.c.h.b16 %v613
        %v1931 = vunpack.c.l.b16 %v614
        %v1932 = vunpack.c.h.b16 %v614
        %v1933 = vunpack.c.l.b16 %v615
        %v1934 = vunpack.c.h.b16 %v615
        %v1935 = vunpack.c.l.b16 %v616
        %v1936 = vunpack.c.h.b16 %v616
        %v1937 = vunpack.c.l.b16 %v617
        %v1938 = vunpack.c.h.b16 %v617
        %v1939 = vunpack.c.l.b16 %v618
        %v1940 = vunpack.c.h.b16 %v618
        %v1941 = vunpack.c.l.b16 %v619
        %v1942 = vunpack.c.h.b16 %v619
        %v1943 = vunpack.c.l.b16 %v620
        %v1944 = vunpack.c.h.b16 %v620
        %v1945 = vunpack.c.l.b16 %v621
        %v1946 = vunpack.c.h.b16 %v621
        %v1947 = vunpack.c.l.b16 %v622
        %v1948 = vunpack.c.h.b16 %v622
        %v1949 = vunpack.c.l.b16 %v623
        %v1950 = vunpack.c.h.b16 %v623
        %v1951 = vunpack.c.l.b16 %v624
        %v1952 = vunpack.c.h.b16 %v624
        %v1953 = vunpack.c.l.b16 %v625
        %v1954 = vunpack.c.h.b16 %v625
        %v1955 = vunpack.c.l.b16 %v626
        %v1956 = vunpack.c.h.b16 %v626
        %v1957 = vunpack.c.l.b16 %v627
        %v1958 = vunpack.c.h.b16 %v627
        %v1959 = vunpack.c.l.b16 %v628
        %v1960 = vunpack.c.h.b16 %v628
        %v1961 = vunpack.c.l.b16 %v629
        %v1962 = vunpack.c.h.b16 %v629
        %v1963 = vunpack.c.l.b16 %v630
        %v1964 = vunpack.c.h.b16 %v630
        %v1965 = vunpack.c.l.b16 %v631
        %v1966 = vunpack.c.h.b16 %v631
        %v1967 = vunpack.c.l.b16 %v632
        %v1968 = vunpack.c.h.b16 %v632
        %v1969 = vunpack.c.l.b16 %v633
        %v1970 = vunpack.c.h.b16 %v633
        %v1971 = vunpack.c.l.b16 %v634
        %v1972 = vunpack.c.h.b16 %v634
        %v1973 = vunpack.c.l.b16 %v635
        %v1974 = vunpack.c.h.b16 %v635
        %v1975 = vunpack.c.l.b16 %v636
        %v1976 = vunpack.c.h.b16 %v636
        %v1977 = vunpack.c.l.b16 %v637
        %v1978 = vunpack.c.h.b16 %v637
        %v1979 = vunpack.c.l.b16 %v638
        %v1980 = vunpack.c.h.b16 %v638
        %v1981 = vunpack.c.l.b16 %v639
        %v1982 = vunpack.c.h.b16 %v639
        %v1983 = vunpack.c.l.b16 %v640
        %v1984 = vunpack.c.h.b16 %v640
        %v1985 = vpack.c.b16 %v1223, %v1217
        %v1986 = vpack.c.b16 %v1224, %v1218
        %v1987 = vpack.c.b16 %v1225, %v1219
        %v1988 = vpack.c.b16 %v1226, %v1220
        %v1989 = vpack.c.b16 %v1227, %v1221
        %v1990 = vpack.c.b16 %v1228, %v1222
        %v1991 = vpack.c.b16 %v1235, %v1229
        %v1992 = vpack.c.b16 %v1236, %v1230
        %v1993 = vpack.c.b16 %v1237, %v1231
        %v1994 = vpack.c.b16 %v1238, %v1232
        %v1995 = vpack.c.b16 %v1239, %v1233
        %v1996 = vpack.c.b16 %v1240, %v1234
        %v1997 = vpack.c.b16 %v1247, %v1241
        %v1998 = vpack.c.b16 %v1248, %v1242
        %v1999 = vpack.c.b16 %v1249, %v1243
        %v2000 = vpack.c.b16 %v1250, %v1244
        %v2001 = vpack.c.b16 %v1251, %v1245
        %v2002 = vpack.c.b16 %v1252, %v1246
        %v2003 = vpack.c.b16 %v1259, %v1253
        %v2004 = vpack.c.b16 %v1260, %v1254
        %v2005 = vpack.c.b16 %v1261, %v1255
        %v2006 = vpack.c.b16 %v1262, %v1256
        %v2007 = vpack.c.b16 %v1263, %v1257
        %v2008 = vpack.c.b16 %v1264, %v1258
        %v2009 = vpack.c.b16 %v1271, %v1265
        %v2010 = vpack.c.b16 %v1272, %v1266
        %v2011 = vpack.c.b16 %v1273, %v1267
        %v2012 = vpack.c.b16 %v1274, %v1268
        %v2013 = vpack.c.b16 %v1275, %v1269
        %v2014 = vpack.c.b16 %v1276, %v1270
        %v2015 = vpack.c.b16 %v1283, %v1277
        %v2016 = vpack.c.b16 %v1284, %v1278
        %v2017 = vpack.c.b16 %v1285, %v1279
        %v2018 = vpack.c.b16 %v1286, %v1280
        %v2019 = vpack.c.b16 %v1287, %v1281
        %v2020 = vpack.c.b16 %v1288, %v1282
        %v2021 = vpack.c.b16 %v1295, %v1289
        %v2022 = vpack.c.b16 %v1296, %v1290
        %v2023 = vpack.c.b16 %v1297, %v1291
        %v2024 = vpack.c.b16 %v1298, %v1292
        %v2025 = vpack.c.b16 %v1299, %v1293
        %v2026 = vpack.c.b16 %v1300, %v1294
        %v2027 = vpack.c.b16 %v1307, %v1301
        %v2028 = vpack.c.b16 %v1308, %v1302
        %v2029 = vpack.c.b16 %v1309, %v1303
        %v2030 = vpack.c.b16 %v1310, %v1304
        %v2031 = vpack.c.b16 %v1311, %v1305
        %v2032 = vpack.c.b16 %v1312, %v1306
        %v2033 = vpack.c.b16 %v1319, %v1313
        %v2034 = vpack.c.b16 %v1320, %v1314
        %v2035 = vpack.c.b16 %v1321, %v1315
        %v2036 = vpack.c.b16 %v1322, %v1316
        %v2037 = vpack.c.b16 %v1323, %v1317
        %v2038 = vpack.c.b16 %v1324, %v1318
        %v2039 = vpack.c.b16 %v1331, %v1325
        %v2040 = vpack.c.b16 %v1332, %v1326
        %v2041 = vpack.c.b16 %v1333, %v1327
        %v2042 = vpack.c.b16 %v1334, %v1328
        %v2043 = vpack.c.b16 %v1335, %v1329
        %v2044 = vpack.c.b16 %v1336, %v1330
        %v2045 = vpack.c.b16 %v1343, %v1337
        %v2046 = vpack.c.b16 %v1344, %v1338
        %v2047 = vpack.c.b16 %v1345, %v1339
        %v2048 = vpack.c.b16 %v1346, %v1340
        %v2049 = vpack.c.b16 %v1347, %v1341
        %v2050 = vpack.c.b16 %v1348, %v1342
        %v2051 = vpack.c.b16 %v1355, %v1349
        %v2052 = vpack.c.b16 %v1356, %v1350
        %v2053 = vpack.c.b16 %v1357, %v1351
        %v2054 = vpack.c.b16 %v1358, %v1352
        %v2055 = vpack.c.b16 %v1359, %v1353
        %v2056 = vpack.c.b16 %v1360, %v1354
        %v2057 = vpack.c.b16 %v1367, %v1361
        %v2058 = vpack.c.b16 %v1368, %v1362
        %v2059 = vpack.c.b16 %v1369, %v1363
        %v2060 = vpack.c.b16 %v1370, %v1364
        %v2061 = vpack.c.b16 %v1371, %v1365
        %v2062 = vpack.c.b16 %v1372, %v1366
        %v2063 = vpack.c.b16 %v1379, %v1373
        %v2064 = vpack.c.b16 %v1380, %v1374
        %v2065 = vpack.c.b16 %v1381, %v1375
        %v2066 = vpack.c.b16 %v1382, %v1376
        %v2067 = vpack.c.b16 %v1383, %v1377
        %v2068 = vpack.c.b16 %v1384, %v1378
        %v2069 = vpack.c.b16 %v1391, %v1385
        %v2070 = vpack.c.b16 %v1392, %v1386
        %v2071 = vpack.c.b16 %v1393, %v1387
        %v2072 = vpack.c.b16 %v1394, %v1388
        %v2073 = vpack.c.b16 %v1395, %v1389
        %v2074 = vpack.c.b16 %v1396, %v1390
        %v2075 = vpack.c.b16 %v1403, %v1397
        %v2076 = vpack.c.b16 %v1404, %v1398
        %v2077 = vpack.c.b16 %v1405, %v1399
        %v2078 = vpack.c.b16 %v1406, %v1400
        %v2079 = vpack.c.b16 %v1407, %v1401
        %v2080 = vpack.c.b16 %v1408, %v1402
        %v2081 = vpack.c.b16 %v1415, %v1409
        %v2082 = vpack.c.b16 %v1416, %v1410
        %v2083 = vpack.c.b16 %v1417, %v1411
        %v2084 = vpack.c.b16 %v1418, %v1412
        %v2085 = vpack.c.b16 %v1419, %v1413
        %v2086 = vpack.c.b16 %v1420, %v1414
        %v2087 = vpack.c.b16 %v1427, %v1421
        %v2088 = vpack.c.b16 %v1428, %v1422
        %v2089 = vpack.c.b16 %v1429, %v1423
        %v2090 = vpack.c.b16 %v1430, %v1424
        %v2091 = vpack.c.b16 %v1431, %v1425
        %v2092 = vpack.c.b16 %v1432, %v1426
        %v2093 = vpack.c.b16 %v1439, %v1433
        %v2094 = vpack.c.b16 %v1440, %v1434
        %v2095 = vpack.c.b16 %v1441, %v1435
        %v2096 = vpack.c.b16 %v1442, %v1436
        %v2097 = vpack.c.b16 %v1443, %v1437
        %v2098 = vpack.c.b16 %v1444, %v1438
        %v2099 = vpack.c.b16 %v1451, %v1445
        %v2100 = vpack.c.b16 %v1452, %v1446
        %v2101 = vpack.c.b16 %v1453, %v1447
        %v2102 = vpack.c.b16 %v1454, %v1448
        %v2103 = vpack.c.b16 %v1455, %v1449
        %v2104 = vpack.c.b16 %v1456, %v1450
        %v2105 = vpack.c.b16 %v1463, %v1457
        %v2106 = vpack.c.b16 %v1464, %v1458
        %v2107 = vpack.c.b16 %v1465, %v1459
        %v2108 = vpack.c.b16 %v1466, %v1460
        %v2109 = vpack.c.b16 %v1467, %v1461
        %v2110 = vpack.c.b16 %v1468, %v1462
        %v2111 = vpack.c.b16 %v1475, %v1469
        %v2112 = vpack.c.b16 %v1476, %v1470
        %v2113 = vpack.c.b16 %v1477, %v1471
        %v2114 = vpack.c.b16 %v1478, %v1472
        %v2115 = vpack.c.b16 %v1479, %v1473
        %v2116 = vpack.c.b16 %v1480, %v1474
        %v2117 = vpack.c.b16 %v1487, %v1481
        %v2118 = vpack.c.b16 %v1488, %v1482
        %v2119 = vpack.c.b16 %v1489, %v1483
        %v2120 = vpack.c.b16 %v1490, %v1484
        %v2121 = vpack.c.b16 %v1491, %v1485
        %v2122 = vpack.c.b16 %v1492, %v1486
        %v2123 = vpack.c.b16 %v1499, %v1493
        %v2124 = vpack.c.b16 %v1500, %v1494
        %v2125 = vpack.c.b16 %v1501, %v1495
        %v2126 = vpack.c.b16 %v1502, %v1496
        %v2127 = vpack.c.b16 %v1503, %v1497
        %v2128 = vpack.c.b16 %v1504, %v1498
        %v2129 = vpack.c.b16 %v1511, %v1505
        %v2130 = vpack.c.b16 %v1512, %v1506
        %v2131 = vpack.c.b16 %v1513, %v1507
        %v2132 = vpack.c.b16 %v1514, %v1508
        %v2133 = vpack.c.b16 %v1515, %v1509
        %v2134 = vpack.c.b16 %v1516, %v1510
        %v2135 = vpack.c.b16 %v1523, %v1517
        %v2136 = vpack.c.b16 %v1524, %v1518
        %v2137 = vpack.c.b16 %v1525, %v1519
        %v2138 = vpack.c.b16 %v1526, %v1520
        %v2139 = vpack.c.b16 %v1527, %v1521
        %v2140 = vpack.c.b16 %v1528, %v1522
        %v2141 = vpack.c.b16 %v1535, %v1529
        %v2142 = vpack.c.b16 %v1536, %v1530
        %v2143 = vpack.c.b16 %v1537, %v1531
        %v2144 = vpack.c.b16 %v1538, %v1532
        %v2145 = vpack.c.b16 %v1539, %v1533
        %v2146 = vpack.c.b16 %v1540, %v1534
        %v2147 = vpack.c.b16 %v1547, %v1541
        %v2148 = vpack.c.b16 %v1548, %v1542
        %v2149 = vpack.c.b16 %v1549, %v1543
        %v2150 = vpack.c.b16 %v1550, %v1544
        %v2151 = vpack.c.b16 %v1551, %v1545
        %v2152 = vpack.c.b16 %v1552, %v1546
        %v2153 = vpack.c.b16 %v1559, %v1553
        %v2154 = vpack.c.b16 %v1560, %v1554
        %v2155 = vpack.c.b16 %v1561, %v1555
        %v2156 = vpack.c.b16 %v1562, %v1556
        %v2157 = vpack.c.b16 %v1563, %v1557
        %v2158 = vpack.c.b16 %v1564, %v1558
        %v2159 = vpack.c.b16 %v1571, %v1565
        %v2160 = vpack.c.b16 %v1572, %v1566
        %v2161 = vpack.c.b16 %v1573, %v1567
        %v2162 = vpack.c.b16 %v1574, %v1568
        %v2163 = vpack.c.b16 %v1575, %v1569
        %v2164 = vpack.c.b16 %v1576, %v1570
        %v2165 = vpack.c.b16 %v1583, %v1577
        %v2166 = vpack.c.b16 %v1584, %v1578
        %v2167 = vpack.c.b16 %v1585, %v1579
        %v2168 = vpack.c.b16 %v1586, %v1580
        %v2169 = vpack.c.b16 %v1587, %v1581
        %v2170 = vpack.c.b16 %v1588, %v1582
        %v2171 = vpack.c.b16 %v1595, %v1589
        %v2172 = vpack.c.b16 %v1596, %v1590
        %v2173 = vpack.c.b16 %v1597, %v1591
        %v2174 = vpack.c.b16 %v1598, %v1592
        %v2175 = vpack.c.b16 %v1599, %v1593
        %v2176 = vpack.c.b16 %v1600, %v1594
        %v2177 = vpack.c.b16 %v1607, %v1601
        %v2178 = vpack.c.b16 %v1608, %v1602
        %v2179 = vpack.c.b16 %v1609, %v1603
        %v2180 = vpack.c.b16 %v1610, %v1604
        %v2181 = vpack.c.b16 %v1611, %v1605
        %v2182 = vpack.c.b16 %v1612, %v1606
        %v2183 = vpack.c.b16 %v1619, %v1613
        %v2184 = vpack.c.b16 %v1620, %v1614
        %v2185 = vpack.c.b16 %v1621, %v1615
        %v2186 = vpack.c.b16 %v1622, %v1616
        %v2187 = vpack.c.b16 %v1623, %v1617
        %v2188 = vpack.c.b16 %v1624, %v1618
        %v2189 = vpack.c.b16 %v1631, %v1625
        %v2190 = vpack.c.b16 %v1632, %v1626
        %v2191 = vpack.c.b16 %v1633, %v1627
        %v2192 = vpack.c.b16 %v1634, %v1628
        %v2193 = vpack.c.b16 %v1635, %v1629
        %v2194 = vpack.c.b16 %v1636, %v1630
        %v2195 = vpack.c.b16 %v1643, %v1637
        %v2196 = vpack.c.b16 %v1644, %v1638
        %v2197 = vpack.c.b16 %v1645, %v1639
        %v2198 = vpack.c.b16 %v1646, %v1640
        %v2199 = vpack.c.b16 %v1647, %v1641
        %v2200 = vpack.c.b16 %v1648, %v1642
        %v2201 = vpack.c.b16 %v1655, %v1649
        %v2202 = vpack.c.b16 %v1656, %v1650
        %v2203 = vpack.c.b16 %v1657, %v1651
        %v2204 = vpack.c.b16 %v1658, %v1652
        %v2205 = vpack.c.b16 %v1659, %v1653
        %v2206 = vpack.c.b16 %v1660, %v1654
        %v2207 = vpack.c.b16 %v1667, %v1661
        %v2208 = vpack.c.b16 %v1668, %v1662
        %v2209 = vpack.c.b16 %v1669, %v1663
        %v2210 = vpack.c.b16 %v1670, %v1664
        %v2211 = vpack.c.b16 %v1671, %v1665
        %v2212 = vpack.c.b16 %v1672, %v1666
        %v2213 = vpack.c.b16 %v1679, %v1673
        %v2214 = vpack.c.b16 %v1680, %v1674
        %v2215 = vpack.c.b16 %v1681, %v1675
        %v2216 = vpack.c.b16 %v1682, %v1676
        %v2217 = vpack.c.b16 %v1683, %v1677
        %v2218 = vpack.c.b16 %v1684, %v1678
        %v2219 = vpack.c.b16 %v1691, %v1685
        %v2220 = vpack.c.b16 %v1692, %v1686
        %v2221 = vpack.c.b16 %v1693, %v1687
        %v2222 = vpack.c.b16 %v1694, %v1688
        %v2223 = vpack.c.b16 %v1695, %v1689
        %v2224 = vpack.c.b16 %v1696, %v1690
        %v2225 = vpack.c.b16 %v1703, %v1697
        %v2226 = vpack.c.b16 %v1704, %v1698
        %v2227 = vpack.c.b16 %v1705, %v1699
        %v2228 = vpack.c.b16 %v1706, %v1700
        %v2229 = vpack.c.b16 %v1707, %v1701
        %v2230 = vpack.c.b16 %v1708, %v1702
        %v2231 = vpack.c.b16 %v1715, %v1709
        %v2232 = vpack.c.b16 %v1716, %v1710
        %v2233 = vpack.c.b16 %v1717, %v1711
        %v2234 = vpack.c.b16 %v1718, %v1712
        %v2235 = vpack.c.b16 %v1719, %v1713
        %v2236 = vpack.c.b16 %v1720, %v1714
        %v2237 = vpack.c.b16 %v1727, %v1721
        %v2238 = vpack.c.b16 %v1728, %v1722
        %v2239 = vpack.c.b16 %v1729, %v1723
        %v2240 = vpack.c.b16 %v1730, %v1724
        %v2241 = vpack.c.b16 %v1731, %v1725
        %v2242 = vpack.c.b16 %v1732, %v1726
        %v2243 = vpack.c.b16 %v1739, %v1733
        %v2244 = vpack.c.b16 %v1740, %v1734
        %v2245 = vpack.c.b16 %v1741, %v1735
        %v2246 = vpack.c.b16 %v1742, %v1736
        %v2247 = vpack.c.b16 %v1743, %v1737
        %v2248 = vpack.c.b16 %v1744, %v1738
        %v2249 = vpack.c.b16 %v1751, %v1745
        %v2250 = vpack.c.b16 %v1752, %v1746
        %v2251 = vpack.c.b16 %v1753, %v1747
        %v2252 = vpack.c.b16 %v1754, %v1748
        %v2253 = vpack.c.b16 %v1755, %v1749
        %v2254 = vpack.c.b16 %v1756, %v1750
        %v2255 = vpack.c.b16 %v1763, %v1757
        %v2256 = vpack.c.b16 %v1764, %v1758
        %v2257 = vpack.c.b16 %v1765, %v1759
        %v2258 = vpack.c.b16 %v1766, %v1760
        %v2259 = vpack.c.b16 %v1767, %v1761
        %v2260 = vpack.c.b16 %v1768, %v1762
        %v2261 = vpack.c.b16 %v1775, %v1769
        %v2262 = vpack.c.b16 %v1776, %v1770
        %v2263 = vpack.c.b16 %v1777, %v1771
        %v2264 = vpack.c.b16 %v1778, %v1772
        %v2265 = vpack.c.b16 %v1779, %v1773
        %v2266 = vpack.c.b16 %v1780, %v1774
        %v2267 = vpack.c.b16 %v1787, %v1781
        %v2268 = vpack.c.b16 %v1788, %v1782
        %v2269 = vpack.c.b16 %v1789, %v1783
        %v2270 = vpack.c.b16 %v1790, %v1784
        %v2271 = vpack.c.b16 %v1791, %v1785
        %v2272 = vpack.c.b16 %v1792, %v1786
        %v2273 = vpack.c.b16 %v1799, %v1793
        %v2274 = vpack.c.b16 %v1800, %v1794
        %v2275 = vpack.c.b16 %v1801, %v1795
        %v2276 = vpack.c.b16 %v1802, %v1796
        %v2277 = vpack.c.b16 %v1803, %v1797
        %v2278 = vpack.c.b16 %v1804, %v1798
        %v2279 = vpack.c.b16 %v1811, %v1805
        %v2280 = vpack.c.b16 %v1812, %v1806
        %v2281 = vpack.c.b16 %v1813, %v1807
        %v2282 = vpack.c.b16 %v1814, %v1808
        %v2283 = vpack.c.b16 %v1815, %v1809
        %v2284 = vpack.c.b16 %v1816, %v1810
        %v2285 = vpack.c.b16 %v1823, %v1817
        %v2286 = vpack.c.b16 %v1824, %v1818
        %v2287 = vpack.c.b16 %v1825, %v1819
        %v2288 = vpack.c.b16 %v1826, %v1820
        %v2289 = vpack.c.b16 %v1827, %v1821
        %v2290 = vpack.c.b16 %v1828, %v1822
        %v2291 = vpack.c.b16 %v1835, %v1829
        %v2292 = vpack.c.b16 %v1836, %v1830
        %v2293 = vpack.c.b16 %v1837, %v1831
        %v2294 = vpack.c.b16 %v1838, %v1832
        %v2295 = vpack.c.b16 %v1839, %v1833
        %v2296 = vpack.c.b16 %v1840, %v1834
        %v2297 = vpack.c.b16 %v1847, %v1841
        %v2298 = vpack.c.b16 %v1848, %v1842
        %v2299 = vpack.c.b16 %v1849, %v1843
        %v2300 = vpack.c.b16 %v1850, %v1844
        %v2301 = vpack.c.b16 %v1851, %v1845
        %v2302 = vpack.c.b16 %v1852, %v1846
        %v2303 = vpack.c.b16 %v1859, %v1853
        %v2304 = vpack.c.b16 %v1860, %v1854
        %v2305 = vpack.c.b16 %v1861, %v1855
        %v2306 = vpack.c.b16 %v1862, %v1856
        %v2307 = vpack.c.b16 %v1863, %v1857
        %v2308 = vpack.c.b16 %v1864, %v1858
        %v2309 = vpack.c.b16 %v1871, %v1865
        %v2310 = vpack.c.b16 %v1872, %v1866
        %v2311 = vpack.c.b16 %v1873, %v1867
        %v2312 = vpack.c.b16 %v1874, %v1868
        %v2313 = vpack.c.b16 %v1875, %v1869
        %v2314 = vpack.c.b16 %v1876, %v1870
        %v2315 = vpack.c.b16 %v1883, %v1877
        %v2316 = vpack.c.b16 %v1884, %v1878
        %v2317 = vpack.c.b16 %v1885, %v1879
        %v2318 = vpack.c.b16 %v1886, %v1880
        %v2319 = vpack.c.b16 %v1887, %v1881
        %v2320 = vpack.c.b16 %v1888, %v1882
        %v2321 = vpack.c.b16 %v1895, %v1889
        %v2322 = vpack.c.b16 %v1896, %v1890
        %v2323 = vpack.c.b16 %v1897, %v1891
        %v2324 = vpack.c.b16 %v1898, %v1892
        %v2325 = vpack.c.b16 %v1899, %v1893
        %v2326 = vpack.c.b16 %v1900, %v1894
        %v2327 = vpack.c.b16 %v1907, %v1901
        %v2328 = vpack.c.b16 %v1908, %v1902
        %v2329 = vpack.c.b16 %v1909, %v1903
        %v2330 = vpack.c.b16 %v1910, %v1904
        %v2331 = vpack.c.b16 %v1911, %v1905
        %v2332 = vpack.c.b16 %v1912, %v1906
        %v2333 = vpack.c.b16 %v1919, %v1913
        %v2334 = vpack.c.b16 %v1920, %v1914
        %v2335 = vpack.c.b16 %v1921, %v1915
        %v2336 = vpack.c.b16 %v1922, %v1916
        %v2337 = vpack.c.b16 %v1923, %v1917
        %v2338 = vpack.c.b16 %v1924, %v1918
        %v2339 = vpack.c.b16 %v1931, %v1925
        %v2340 = vpack.c.b16 %v1932, %v1926
        %v2341 = vpack.c.b16 %v1933, %v1927
        %v2342 = vpack.c.b16 %v1934, %v1928
        %v2343 = vpack.c.b16 %v1935, %v1929
        %v2344 = vpack.c.b16 %v1936, %v1930
        %v2345 = vpack.c.b16 %v1943, %v1937
        %v2346 = vpack.c.b16 %v1944, %v1938
        %v2347 = vpack.c.b16 %v1945, %v1939
        %v2348 = vpack.c.b16 %v1946, %v1940
        %v2349 = vpack.c.b16 %v1947, %v1941
        %v2350 = vpack.c.b16 %v1948, %v1942
        %v2351 = vpack.c.b16 %v1955, %v1949
        %v2352 = vpack.c.b16 %v1956, %v1950
        %v2353 = vpack.c.b16 %v1957, %v1951
        %v2354 = vpack.c.b16 %v1958, %v1952
        %v2355 = vpack.c.b16 %v1959, %v1953
        %v2356 = vpack.c.b16 %v1960, %v1954
        %v2357 = vpack.c.b16 %v1967, %v1961
        %v2358 = vpack.c.b16 %v1968, %v1962
        %v2359 = vpack.c.b16 %v1969, %v1963
        %v2360 = vpack.c.b16 %v1970, %v1964
        %v2361 = vpack.c.b16 %v1971, %v1965
        %v2362 = vpack.c.b16 %v1972, %v1966
        %v2363 = vpack.c.b16 %v1979, %v1973
        %v2364 = vpack.c.b16 %v1980, %v1974
        %v2365 = vpack.c.b16 %v1981, %v1975
        %v2366 = vpack.c.b16 %v1982, %v1976
        %v2367 = vpack.c.b16 %v1983, %v1977
        %v2368 = vpack.c.b16 %v1984, %v1978
        %2753 = vmatprep.subr.bf16.mxu0 %v1986
        %2754 = vmatpush1.bf16.msra.mxu0 %v1985
        %2755 = vmatprep.subr.bf16.mxu0 %v1992
        %2756 = vmatpush1.bf16.msra.mxu0 %v1991
        %2757 = vmatprep.subr.bf16.mxu0 %v1998
        %2758 = vmatpush1.bf16.msra.mxu0 %v1997
        %2759 = vmatprep.subr.bf16.mxu0 %v2004
        %2760 = vmatpush1.bf16.msra.mxu0 %v2003
        %2761 = vmatprep.subr.bf16.mxu0 %v2010
        %2762 = vmatpush1.bf16.msra.mxu0 %v2009
        %2763 = vmatprep.subr.bf16.mxu0 %v2016
        %2764 = vmatpush1.bf16.msra.mxu0 %v2015
        %2765 = vmatprep.subr.bf16.mxu0 %v2022
        %2766 = vmatpush1.bf16.msra.mxu0 %v2021
        %2767 = vmatprep.subr.bf16.mxu0 %v2028
        %2768 = vmatpush1.bf16.msra.mxu0 %v2027
        %2769 = vmatprep.subr.bf16.mxu0 %v2034
        %2770 = vmatpush1.bf16.msra.mxu0 %v2033
        %2771 = vmatprep.subr.bf16.mxu0 %v2040
        %2772 = vmatpush1.bf16.msra.mxu0 %v2039
        %2773 = vmatprep.subr.bf16.mxu0 %v2046
        %2774 = vmatpush1.bf16.msra.mxu0 %v2045
        %2775 = vmatprep.subr.bf16.mxu0 %v2052
        %2776 = vmatpush1.bf16.msra.mxu0 %v2051
        %2777 = vmatprep.subr.bf16.mxu0 %v2058
        %2778 = vmatpush1.bf16.msra.mxu0 %v2057
        %2779 = vmatprep.subr.bf16.mxu0 %v2064
        %2780 = vmatpush1.bf16.msra.mxu0 %v2063
        %2781 = vmatprep.subr.bf16.mxu0 %v2070
        %2782 = vmatpush1.bf16.msra.mxu0 %v2069
        %2783 = vmatprep.subr.bf16.mxu0 %v2076
        %2784 = vmatpush1.bf16.msra.mxu0 %v2075
        %2785 = vmatprep.mubr.bf16.mxu0 %v770
        %2786 = vmatmul.mubr.bf16.gmra.mrb[0].mxu0 %v769
        %v2787 = vpop.f32.mrb[0].mxu0
        %v2788 = vadd.f32 %v646, %v2787
        %v2789 = vpop.f32.mrb[0].mxu0
        %v2790 = vadd.f32 %v650, %v2789
        %v2791 = vpop.f32.mrb[0].mxu0
        %v2792 = vadd.f32 %v646, %v2791
        %v2793 = vpop.f32.mrb[0].mxu0
        %v2794 = vadd.f32 %v650, %v2793
        %2795 = vmatprep.mubr.bf16.mxu0 %v778
        %2796 = vmatmul.mubr.bf16.gmra.mrb[0].mxu0 %v777
        %v2797 = vpop.f32.mrb[0].mxu0
        %v2798 = vadd.f32 %v646, %v2797
        %v2799 = vpop.f32.mrb[0].mxu0
        %v2800 = vadd.f32 %v650, %v2799
        %v2801 = vpop.f32.mrb[0].mxu0
        %v2802 = vadd.f32 %v646, %v2801
        %v2803 = vpop.f32.mrb[0].mxu0
        %v2804 = vadd.f32 %v650, %v2803
        %2805 = vmatprep.mubr.bf16.mxu0 %v786
        %2806 = vmatmul.mubr.bf16.gmra.mrb[0].mxu0 %v785
        %v2807 = vpop.f32.mrb[0].mxu0
        %v2808 = vadd.f32 %v646, %v2807
        %v2809 = vpop.f32.mrb[0].mxu0
        %v2810 = vadd.f32 %v650, %v2809
        %v2811 = vpop.f32.mrb[0].mxu0
        %v2812 = vadd.f32 %v646, %v2811
        %v2813 = vpop.f32.mrb[0].mxu0
        %v2814 = vadd.f32 %v650, %v2813
        %2815 = vmatprep.mubr.bf16.mxu0 %v794
        %2816 = vmatmul.mubr.bf16.gmra.mrb[0].mxu0 %v793
        %v2817 = vpop.f32.mrb[0].mxu0
        %v2818 = vadd.f32 %v646, %v2817
        %v2819 = vpop.f32.mrb[0].mxu0
        %v2820 = vadd.f32 %v650, %v2819
        %v2821 = vpop.f32.mrb[0].mxu0
        %v2822 = vadd.f32 %v646, %v2821
        %v2823 = vpop.f32.mrb[0].mxu0
        %v2824 = vadd.f32 %v650, %v2823
        %2825 = vdwg.mxu0
        %2826 = vmatprep.subr.bf16.mxu0 %v2082
        %2827 = vmatpush1.bf16.msra.mxu0 %v2081
        %2828 = vmatprep.subr.bf16.mxu0 %v2088
        %2829 = vmatpush1.bf16.msra.mxu0 %v2087
        %2830 = vmatprep.subr.bf16.mxu0 %v2094
        %2831 = vmatpush1.bf16.msra.mxu0 %v2093
        %2832 = vmatprep.subr.bf16.mxu0 %v2100
        %2833 = vmatpush1.bf16.msra.mxu0 %v2099
        %2834 = vmatprep.subr.bf16.mxu0 %v2106
        %2835 = vmatpush1.bf16.msra.mxu0 %v2105
        %2836 = vmatprep.subr.bf16.mxu0 %v2112
        %2837 = vmatpush1.bf16.msra.mxu0 %v2111
        %2838 = vmatprep.subr.bf16.mxu0 %v2118
        %2839 = vmatpush1.bf16.msra.mxu0 %v2117
        %2840 = vmatprep.subr.bf16.mxu0 %v2124
        %2841 = vmatpush1.bf16.msra.mxu0 %v2123
        %2842 = vmatprep.subr.bf16.mxu0 %v2130
        %2843 = vmatpush1.bf16.msra.mxu0 %v2129
        %2844 = vmatprep.subr.bf16.mxu0 %v2136
        %2845 = vmatpush1.bf16.msra.mxu0 %v2135
        %2846 = vmatprep.subr.bf16.mxu0 %v2142
        %2847 = vmatpush1.bf16.msra.mxu0 %v2141
        %2848 = vmatprep.subr.bf16.mxu0 %v2148
        %2849 = vmatpush1.bf16.msra.mxu0 %v2147
        %2850 = vmatprep.subr.bf16.mxu0 %v2154
        %2851 = vmatpush1.bf16.msra.mxu0 %v2153
        %2852 = vmatprep.subr.bf16.mxu0 %v2160
        %2853 = vmatpush1.bf16.msra.mxu0 %v2159
        %2854 = vmatprep.subr.bf16.mxu0 %v2166
        %2855 = vmatpush1.bf16.msra.mxu0 %v2165
        %2856 = vmatprep.subr.bf16.mxu0 %v2172
        %2857 = vmatpush1.bf16.msra.mxu0 %v2171
        %2858 = vmatprep.mubr.bf16.mxu0 %v772
        %2859 = vmatmul.mubr.bf16.gmra.mrb[0].mxu0 %v771
        %v2860 = vpop.f32.mrb[0].mxu0
        %v2861 = vadd.f32 %v2788, %v2860
        %v2862 = vpop.f32.mrb[0].mxu0
        %v2863 = vadd.f32 %v2790, %v2862
        %v2864 = vpop.f32.mrb[0].mxu0
        %v2865 = vadd.f32 %v2792, %v2864
        %v2866 = vpop.f32.mrb[0].mxu0
        %v2867 = vadd.f32 %v2794, %v2866
        %2868 = vmatprep.mubr.bf16.mxu0 %v780
        %2869 = vmatmul.mubr.bf16.gmra.mrb[0].mxu0 %v779
        %v2870 = vpop.f32.mrb[0].mxu0
        %v2871 = vadd.f32 %v2798, %v2870
        %v2872 = vpop.f32.mrb[0].mxu0
        %v2873 = vadd.f32 %v2800, %v2872
        %v2874 = vpop.f32.mrb[0].mxu0
        %v2875 = vadd.f32 %v2802, %v2874
        %v2876 = vpop.f32.mrb[0].mxu0
        %v2877 = vadd.f32 %v2804, %v2876
        %2878 = vmatprep.mubr.bf16.mxu0 %v788
        %2879 = vmatmul.mubr.bf16.gmra.mrb[0].mxu0 %v787
        %v2880 = vpop.f32.mrb[0].mxu0
        %v2881 = vadd.f32 %v2808, %v2880
        %v2882 = vpop.f32.mrb[0].mxu0
        %v2883 = vadd.f32 %v2810, %v2882
        %v2884 = vpop.f32.mrb[0].mxu0
        %v2885 = vadd.f32 %v2812, %v2884
        %v2886 = vpop.f32.mrb[0].mxu0
        %v2887 = vadd.f32 %v2814, %v2886
        %2888 = vmatprep.mubr.bf16.mxu0 %v796
        %2889 = vmatmul.mubr.bf16.gmra.mrb[0].mxu0 %v795
        %v2890 = vpop.f32.mrb[0].mxu0
        %v2891 = vadd.f32 %v2818, %v2890
        %v2892 = vpop.f32.mrb[0].mxu0
        %v2893 = vadd.f32 %v2820, %v2892
        %v2894 = vpop.f32.mrb[0].mxu0
        %v2895 = vadd.f32 %v2822, %v2894
        %v2896 = vpop.f32.mrb[0].mxu0
        %v2897 = vadd.f32 %v2824, %v2896
        %2898 = vdwg.mxu0
        %2899 = vmatprep.subr.bf16.mxu0 %v2178
        %2900 = vmatpush1.bf16.msra.mxu0 %v2177
        %2901 = vmatprep.subr.bf16.mxu0 %v2184
        %2902 = vmatpush1.bf16.msra.mxu0 %v2183
        %2903 = vmatprep.subr.bf16.mxu0 %v2190
        %2904 = vmatpush1.bf16.msra.mxu0 %v2189
        %2905 = vmatprep.subr.bf16.mxu0 %v2196
        %2906 = vmatpush1.bf16.msra.mxu0 %v2195
        %2907 = vmatprep.subr.bf16.mxu0 %v2202
        %2908 = vmatpush1.bf16.msra.mxu0 %v2201
        %2909 = vmatprep.subr.bf16.mxu0 %v2208
        %2910 = vmatpush1.bf16.msra.mxu0 %v2207
        %2911 = vmatprep.subr.bf16.mxu0 %v2214
        %2912 = vmatpush1.bf16.msra.mxu0 %v2213
        %2913 = vmatprep.subr.bf16.mxu0 %v2220
        %2914 = vmatpush1.bf16.msra.mxu0 %v2219
        %2915 = vmatprep.subr.bf16.mxu0 %v2226
        %2916 = vmatpush1.bf16.msra.mxu0 %v2225
        %2917 = vmatprep.subr.bf16.mxu0 %v2232
        %2918 = vmatpush1.bf16.msra.mxu0 %v2231
        %2919 = vmatprep.subr.bf16.mxu0 %v2238
        %2920 = vmatpush1.bf16.msra.mxu0 %v2237
        %2921 = vmatprep.subr.bf16.mxu0 %v2244
        %2922 = vmatpush1.bf16.msra.mxu0 %v2243
        %2923 = vmatprep.subr.bf16.mxu0 %v2250
        %2924 = vmatpush1.bf16.msra.mxu0 %v2249
        %2925 = vmatprep.subr.bf16.mxu0 %v2256
        %2926 = vmatpush1.bf16.msra.mxu0 %v2255
        %2927 = vmatprep.subr.bf16.mxu0 %v2262
        %2928 = vmatpush1.bf16.msra.mxu0 %v2261
        %2929 = vmatprep.subr.bf16.mxu0 %v2268
        %2930 = vmatpush1.bf16.msra.mxu0 %v2267
        %2931 = vmatprep.mubr.bf16.mxu0 %v774
        %2932 = vmatmul.mubr.bf16.gmra.mrb[0].mxu0 %v773
        %v2933 = vpop.f32.mrb[0].mxu0
        %v2934 = vadd.f32 %v2861, %v2933
        %v2935 = vpop.f32.mrb[0].mxu0
        %v2936 = vadd.f32 %v2863, %v2935
        %v2937 = vpop.f32.mrb[0].mxu0
        %v2938 = vadd.f32 %v2865, %v2937
        %v2939 = vpop.f32.mrb[0].mxu0
        %v2940 = vadd.f32 %v2867, %v2939
        %2941 = vmatprep.mubr.bf16.mxu0 %v782
        %2942 = vmatmul.mubr.bf16.gmra.mrb[0].mxu0 %v781
        %v2943 = vpop.f32.mrb[0].mxu0
        %v2944 = vadd.f32 %v2871, %v2943
        %v2945 = vpop.f32.mrb[0].mxu0
        %v2946 = vadd.f32 %v2873, %v2945
        %v2947 = vpop.f32.mrb[0].mxu0
        %v2948 = vadd.f32 %v2875, %v2947
        %v2949 = vpop.f32.mrb[0].mxu0
        %v2950 = vadd.f32 %v2877, %v2949
        %2951 = vmatprep.mubr.bf16.mxu0 %v790
        %2952 = vmatmul.mubr.bf16.gmra.mrb[0].mxu0 %v789
        %v2953 = vpop.f32.mrb[0].mxu0
        %v2954 = vadd.f32 %v2881, %v2953
        %v2955 = vpop.f32.mrb[0].mxu0
        %v2956 = vadd.f32 %v2883, %v2955
        %v2957 = vpop.f32.mrb[0].mxu0
        %v2958 = vadd.f32 %v2885, %v2957
        %v2959 = vpop.f32.mrb[0].mxu0
        %v2960 = vadd.f32 %v2887, %v2959
        %2961 = vmatprep.mubr.bf16.mxu0 %v798
        %2962 = vmatmul.mubr.bf16.gmra.mrb[0].mxu0 %v797
        %v2963 = vpop.f32.mrb[0].mxu0
        %v2964 = vadd.f32 %v2891, %v2963
        %v2965 = vpop.f32.mrb[0].mxu0
        %v2966 = vadd.f32 %v2893, %v2965
        %v2967 = vpop.f32.mrb[0].mxu0
        %v2968 = vadd.f32 %v2895, %v2967
        %v2969 = vpop.f32.mrb[0].mxu0
        %v2970 = vadd.f32 %v2897, %v2969
        %2971 = vdwg.mxu0
        %2972 = vmatprep.subr.bf16.mxu0 %v2274
        %2973 = vmatpush1.bf16.msra.mxu0 %v2273
        %2974 = vmatprep.subr.bf16.mxu0 %v2280
        %2975 = vmatpush1.bf16.msra.mxu0 %v2279
        %2976 = vmatprep.subr.bf16.mxu0 %v2286
        %2977 = vmatpush1.bf16.msra.mxu0 %v2285
        %2978 = vmatprep.subr.bf16.mxu0 %v2292
        %2979 = vmatpush1.bf16.msra.mxu0 %v2291
        %2980 = vmatprep.subr.bf16.mxu0 %v2298
        %2981 = vmatpush1.bf16.msra.mxu0 %v2297
        %2982 = vmatprep.subr.bf16.mxu0 %v2304
        %2983 = vmatpush1.bf16.msra.mxu0 %v2303
        %2984 = vmatprep.subr.bf16.mxu0 %v2310
        %2985 = vmatpush1.bf16.msra.mxu0 %v2309
        %2986 = vmatprep.subr.bf16.mxu0 %v2316
        %2987 = vmatpush1.bf16.msra.mxu0 %v2315
        %2988 = vmatprep.subr.bf16.mxu0 %v2322
        %2989 = vmatpush1.bf16.msra.mxu0 %v2321
        %2990 = vmatprep.subr.bf16.mxu0 %v2328
        %2991 = vmatpush1.bf16.msra.mxu0 %v2327
        %2992 = vmatprep.subr.bf16.mxu0 %v2334
        %2993 = vmatpush1.bf16.msra.mxu0 %v2333
        %2994 = vmatprep.subr.bf16.mxu0 %v2340
        %2995 = vmatpush1.bf16.msra.mxu0 %v2339
        %2996 = vmatprep.subr.bf16.mxu0 %v2346
        %2997 = vmatpush1.bf16.msra.mxu0 %v2345
        %2998 = vmatprep.subr.bf16.mxu0 %v2352
        %2999 = vmatpush1.bf16.msra.mxu0 %v2351
        %3000 = vmatprep.subr.bf16.mxu0 %v2358
        %3001 = vmatpush1.bf16.msra.mxu0 %v2357
        %3002 = vmatprep.subr.bf16.mxu0 %v2364
        %3003 = vmatpush1.bf16.msra.mxu0 %v2363
        %3004 = vmatprep.mubr.bf16.mxu0 %v776
        %3005 = vmatmul.mubr.bf16.gmra.mrb[0].mxu0 %v775
        %v3006 = vpop.f32.mrb[0].mxu0
        %v3007 = vadd.f32 %v2934, %v3006
        %v3008 = vpop.f32.mrb[0].mxu0
        %v3009 = vadd.f32 %v2936, %v3008
        %v3010 = vpop.f32.mrb[0].mxu0
        %v3011 = vadd.f32 %v2938, %v3010
        %v3012 = vpop.f32.mrb[0].mxu0
        %v3013 = vadd.f32 %v2940, %v3012
        %3014 = vmatprep.mubr.bf16.mxu0 %v784
        %3015 = vmatmul.mubr.bf16.gmra.mrb[0].mxu0 %v783
        %v3016 = vpop.f32.mrb[0].mxu0
        %v3017 = vadd.f32 %v2944, %v3016
        %v3018 = vpop.f32.mrb[0].mxu0
        %v3019 = vadd.f32 %v2946, %v3018
        %v3020 = vpop.f32.mrb[0].mxu0
        %v3021 = vadd.f32 %v2948, %v3020
        %v3022 = vpop.f32.mrb[0].mxu0
        %v3023 = vadd.f32 %v2950, %v3022
        %3024 = vmatprep.mubr.bf16.mxu0 %v792
        %3025 = vmatmul.mubr.bf16.gmra.mrb[0].mxu0 %v791
        %v3026 = vpop.f32.mrb[0].mxu0
        %v3027 = vadd.f32 %v2954, %v3026
        %v3028 = vpop.f32.mrb[0].mxu0
        %v3029 = vadd.f32 %v2956, %v3028
        %v3030 = vpop.f32.mrb[0].mxu0
        %v3031 = vadd.f32 %v2958, %v3030
        %v3032 = vpop.f32.mrb[0].mxu0
        %v3033 = vadd.f32 %v2960, %v3032
        %3034 = vmatprep.mubr.bf16.mxu0 %v800
        %3035 = vmatmul.mubr.bf16.gmra.mrb[0].mxu0 %v799
        %v3036 = vpop.f32.mrb[0].mxu0
        %v3037 = vadd.f32 %v2964, %v3036
        %v3038 = vpop.f32.mrb[0].mxu0
        %v3039 = vadd.f32 %v2966, %v3038
        %v3040 = vpop.f32.mrb[0].mxu0
        %v3041 = vadd.f32 %v2968, %v3040
        %v3042 = vpop.f32.mrb[0].mxu0
        %v3043 = vadd.f32 %v2970, %v3042
        %3044 = vdwg.mxu0
        %3045 = vmatprep.subr.bf16.mxu0 %v1988
        %3046 = vmatpush1.bf16.msra.mxu0 %v1987
        %3047 = vmatprep.subr.bf16.mxu0 %v1994
        %3048 = vmatpush1.bf16.msra.mxu0 %v1993
        %3049 = vmatprep.subr.bf16.mxu0 %v2000
        %3050 = vmatpush1.bf16.msra.mxu0 %v1999
        %3051 = vmatprep.subr.bf16.mxu0 %v2006
        %3052 = vmatpush1.bf16.msra.mxu0 %v2005
        %3053 = vmatprep.subr.bf16.mxu0 %v2012
        %3054 = vmatpush1.bf16.msra.mxu0 %v2011
        %3055 = vmatprep.subr.bf16.mxu0 %v2018
        %3056 = vmatpush1.bf16.msra.mxu0 %v2017
        %3057 = vmatprep.subr.bf16.mxu0 %v2024
        %3058 = vmatpush1.bf16.msra.mxu0 %v2023
        %3059 = vmatprep.subr.bf16.mxu0 %v2030
        %3060 = vmatpush1.bf16.msra.mxu0 %v2029
        %3061 = vmatprep.subr.bf16.mxu0 %v2036
        %3062 = vmatpush1.bf16.msra.mxu0 %v2035
        %3063 = vmatprep.subr.bf16.mxu0 %v2042
        %3064 = vmatpush1.bf16.msra.mxu0 %v2041
        %3065 = vmatprep.subr.bf16.mxu0 %v2048
        %3066 = vmatpush1.bf16.msra.mxu0 %v2047
        %3067 = vmatprep.subr.bf16.mxu0 %v2054
        %3068 = vmatpush1.bf16.msra.mxu0 %v2053
        %3069 = vmatprep.subr.bf16.mxu0 %v2060
        %3070 = vmatpush1.bf16.msra.mxu0 %v2059
        %3071 = vmatprep.subr.bf16.mxu0 %v2066
        %3072 = vmatpush1.bf16.msra.mxu0 %v2065
        %3073 = vmatprep.subr.bf16.mxu0 %v2072
        %3074 = vmatpush1.bf16.msra.mxu0 %v2071
        %3075 = vmatprep.subr.bf16.mxu0 %v2078
        %3076 = vmatpush1.bf16.msra.mxu0 %v2077
        %3077 = vmatprep.mubr.bf16.mxu0 %v770
        %3078 = vmatmul.mubr.bf16.gmra.mrb[0].mxu0 %v769
        %v3079 = vpop.f32.mrb[0].mxu0
        %v3080 = vadd.f32 %v654, %v3079
        %v3081 = vpop.f32.mrb[0].mxu0
        %v3082 = vadd.f32 %v658, %v3081
        %v3083 = vpop.f32.mrb[0].mxu0
        %v3084 = vadd.f32 %v654, %v3083
        %v3085 = vpop.f32.mrb[0].mxu0
        %v3086 = vadd.f32 %v658, %v3085
        %3087 = vmatprep.mubr.bf16.mxu0 %v778
        %3088 = vmatmul.mubr.bf16.gmra.mrb[0].mxu0 %v777
        %v3089 = vpop.f32.mrb[0].mxu0
        %v3090 = vadd.f32 %v654, %v3089
        %v3091 = vpop.f32.mrb[0].mxu0
        %v3092 = vadd.f32 %v658, %v3091
        %v3093 = vpop.f32.mrb[0].mxu0
        %v3094 = vadd.f32 %v654, %v3093
        %v3095 = vpop.f32.mrb[0].mxu0
        %v3096 = vadd.f32 %v658, %v3095
        %3097 = vmatprep.mubr.bf16.mxu0 %v786
        %3098 = vmatmul.mubr.bf16.gmra.mrb[0].mxu0 %v785
        %v3099 = vpop.f32.mrb[0].mxu0
        %v3100 = vadd.f32 %v654, %v3099
        %v3101 = vpop.f32.mrb[0].mxu0
        %v3102 = vadd.f32 %v658, %v3101
        %v3103 = vpop.f32.mrb[0].mxu0
        %v3104 = vadd.f32 %v654, %v3103
        %v3105 = vpop.f32.mrb[0].mxu0
        %v3106 = vadd.f32 %v658, %v3105
        %3107 = vmatprep.mubr.bf16.mxu0 %v794
        %3108 = vmatmul.mubr.bf16.gmra.mrb[0].mxu0 %v793
        %v3109 = vpop.f32.mrb[0].mxu0
        %v3110 = vadd.f32 %v654, %v3109
        %v3111 = vpop.f32.mrb[0].mxu0
        %v3112 = vadd.f32 %v658, %v3111
        %v3113 = vpop.f32.mrb[0].mxu0
        %v3114 = vadd.f32 %v654, %v3113
        %v3115 = vpop.f32.mrb[0].mxu0
        %v3116 = vadd.f32 %v658, %v3115
        %3117 = vdwg.mxu0
        %3118 = vmatprep.subr.bf16.mxu0 %v2084
        %3119 = vmatpush1.bf16.msra.mxu0 %v2083
        %3120 = vmatprep.subr.bf16.mxu0 %v2090
        %3121 = vmatpush1.bf16.msra.mxu0 %v2089
        %3122 = vmatprep.subr.bf16.mxu0 %v2096
        %3123 = vmatpush1.bf16.msra.mxu0 %v2095
        %3124 = vmatprep.subr.bf16.mxu0 %v2102
        %3125 = vmatpush1.bf16.msra.mxu0 %v2101
        %3126 = vmatprep.subr.bf16.mxu0 %v2108
        %3127 = vmatpush1.bf16.msra.mxu0 %v2107
        %3128 = vmatprep.subr.bf16.mxu0 %v2114
        %3129 = vmatpush1.bf16.msra.mxu0 %v2113
        %3130 = vmatprep.subr.bf16.mxu0 %v2120
        %3131 = vmatpush1.bf16.msra.mxu0 %v2119
        %3132 = vmatprep.subr.bf16.mxu0 %v2126
        %3133 = vmatpush1.bf16.msra.mxu0 %v2125
        %3134 = vmatprep.subr.bf16.mxu0 %v2132
        %3135 = vmatpush1.bf16.msra.mxu0 %v2131
        %3136 = vmatprep.subr.bf16.mxu0 %v2138
        %3137 = vmatpush1.bf16.msra.mxu0 %v2137
        %3138 = vmatprep.subr.bf16.mxu0 %v2144
        %3139 = vmatpush1.bf16.msra.mxu0 %v2143
        %3140 = vmatprep.subr.bf16.mxu0 %v2150
        %3141 = vmatpush1.bf16.msra.mxu0 %v2149
        %3142 = vmatprep.subr.bf16.mxu0 %v2156
        %3143 = vmatpush1.bf16.msra.mxu0 %v2155
        %3144 = vmatprep.subr.bf16.mxu0 %v2162
        %3145 = vmatpush1.bf16.msra.mxu0 %v2161
        %3146 = vmatprep.subr.bf16.mxu0 %v2168
        %3147 = vmatpush1.bf16.msra.mxu0 %v2167
        %3148 = vmatprep.subr.bf16.mxu0 %v2174
        %3149 = vmatpush1.bf16.msra.mxu0 %v2173
        %3150 = vmatprep.mubr.bf16.mxu0 %v772
        %3151 = vmatmul.mubr.bf16.gmra.mrb[0].mxu0 %v771
        %v3152 = vpop.f32.mrb[0].mxu0
        %v3153 = vadd.f32 %v3080, %v3152
        %v3154 = vpop.f32.mrb[0].mxu0
        %v3155 = vadd.f32 %v3082, %v3154
        %v3156 = vpop.f32.mrb[0].mxu0
        %v3157 = vadd.f32 %v3084, %v3156
        %v3158 = vpop.f32.mrb[0].mxu0
        %v3159 = vadd.f32 %v3086, %v3158
        %3160 = vmatprep.mubr.bf16.mxu0 %v780
        %3161 = vmatmul.mubr.bf16.gmra.mrb[0].mxu0 %v779
        %v3162 = vpop.f32.mrb[0].mxu0
        %v3163 = vadd.f32 %v3090, %v3162
        %v3164 = vpop.f32.mrb[0].mxu0
        %v3165 = vadd.f32 %v3092, %v3164
        %v3166 = vpop.f32.mrb[0].mxu0
        %v3167 = vadd.f32 %v3094, %v3166
        %v3168 = vpop.f32.mrb[0].mxu0
        %v3169 = vadd.f32 %v3096, %v3168
        %3170 = vmatprep.mubr.bf16.mxu0 %v788
        %3171 = vmatmul.mubr.bf16.gmra.mrb[0].mxu0 %v787
        %v3172 = vpop.f32.mrb[0].mxu0
        %v3173 = vadd.f32 %v3100, %v3172
        %v3174 = vpop.f32.mrb[0].mxu0
        %v3175 = vadd.f32 %v3102, %v3174
        %v3176 = vpop.f32.mrb[0].mxu0
        %v3177 = vadd.f32 %v3104, %v3176
        %v3178 = vpop.f32.mrb[0].mxu0
        %v3179 = vadd.f32 %v3106, %v3178
        %3180 = vmatprep.mubr.bf16.mxu0 %v796
        %3181 = vmatmul.mubr.bf16.gmra.mrb[0].mxu0 %v795
        %v3182 = vpop.f32.mrb[0].mxu0
        %v3183 = vadd.f32 %v3110, %v3182
        %v3184 = vpop.f32.mrb[0].mxu0
        %v3185 = vadd.f32 %v3112, %v3184
        %v3186 = vpop.f32.mrb[0].mxu0
        %v3187 = vadd.f32 %v3114, %v3186
        %v3188 = vpop.f32.mrb[0].mxu0
        %v3189 = vadd.f32 %v3116, %v3188
        %3190 = vdwg.mxu0
        %3191 = vmatprep.subr.bf16.mxu0 %v2180
        %3192 = vmatpush1.bf16.msra.mxu0 %v2179
        %3193 = vmatprep.subr.bf16.mxu0 %v2186
        %3194 = vmatpush1.bf16.msra.mxu0 %v2185
        %3195 = vmatprep.subr.bf16.mxu0 %v2192
        %3196 = vmatpush1.bf16.msra.mxu0 %v2191
        %3197 = vmatprep.subr.bf16.mxu0 %v2198
        %3198 = vmatpush1.bf16.msra.mxu0 %v2197
        %3199 = vmatprep.subr.bf16.mxu0 %v2204
        %3200 = vmatpush1.bf16.msra.mxu0 %v2203
        %3201 = vmatprep.subr.bf16.mxu0 %v2210
        %3202 = vmatpush1.bf16.msra.mxu0 %v2209
        %3203 = vmatprep.subr.bf16.mxu0 %v2216
        %3204 = vmatpush1.bf16.msra.mxu0 %v2215
        %3205 = vmatprep.subr.bf16.mxu0 %v2222
        %3206 = vmatpush1.bf16.msra.mxu0 %v2221
        %3207 = vmatprep.subr.bf16.mxu0 %v2228
        %3208 = vmatpush1.bf16.msra.mxu0 %v2227
        %3209 = vmatprep.subr.bf16.mxu0 %v2234
        %3210 = vmatpush1.bf16.msra.mxu0 %v2233
        %3211 = vmatprep.subr.bf16.mxu0 %v2240
        %3212 = vmatpush1.bf16.msra.mxu0 %v2239
        %3213 = vmatprep.subr.bf16.mxu0 %v2246
        %3214 = vmatpush1.bf16.msra.mxu0 %v2245
        %3215 = vmatprep.subr.bf16.mxu0 %v2252
        %3216 = vmatpush1.bf16.msra.mxu0 %v2251
        %3217 = vmatprep.subr.bf16.mxu0 %v2258
        %3218 = vmatpush1.bf16.msra.mxu0 %v2257
        %3219 = vmatprep.subr.bf16.mxu0 %v2264
        %3220 = vmatpush1.bf16.msra.mxu0 %v2263
        %3221 = vmatprep.subr.bf16.mxu0 %v2270
        %3222 = vmatpush1.bf16.msra.mxu0 %v2269
        %3223 = vmatprep.mubr.bf16.mxu0 %v774
        %3224 = vmatmul.mubr.bf16.gmra.mrb[0].mxu0 %v773
        %v3225 = vpop.f32.mrb[0].mxu0
        %v3226 = vadd.f32 %v3153, %v3225
        %v3227 = vpop.f32.mrb[0].mxu0
        %v3228 = vadd.f32 %v3155, %v3227
        %v3229 = vpop.f32.mrb[0].mxu0
        %v3230 = vadd.f32 %v3157, %v3229
        %v3231 = vpop.f32.mrb[0].mxu0
        %v3232 = vadd.f32 %v3159, %v3231
        %3233 = vmatprep.mubr.bf16.mxu0 %v782
        %3234 = vmatmul.mubr.bf16.gmra.mrb[0].mxu0 %v781
        %v3235 = vpop.f32.mrb[0].mxu0
        %v3236 = vadd.f32 %v3163, %v3235
        %v3237 = vpop.f32.mrb[0].mxu0
        %v3238 = vadd.f32 %v3165, %v3237
        %v3239 = vpop.f32.mrb[0].mxu0
        %v3240 = vadd.f32 %v3167, %v3239
        %v3241 = vpop.f32.mrb[0].mxu0
        %v3242 = vadd.f32 %v3169, %v3241
        %3243 = vmatprep.mubr.bf16.mxu0 %v790
        %3244 = vmatmul.mubr.bf16.gmra.mrb[0].mxu0 %v789
        %v3245 = vpop.f32.mrb[0].mxu0
        %v3246 = vadd.f32 %v3173, %v3245
        %v3247 = vpop.f32.mrb[0].mxu0
        %v3248 = vadd.f32 %v3175, %v3247
        %v3249 = vpop.f32.mrb[0].mxu0
        %v3250 = vadd.f32 %v3177, %v3249
        %v3251 = vpop.f32.mrb[0].mxu0
        %v3252 = vadd.f32 %v3179, %v3251
        %3253 = vmatprep.mubr.bf16.mxu0 %v798
        %3254 = vmatmul.mubr.bf16.gmra.mrb[0].mxu0 %v797
        %v3255 = vpop.f32.mrb[0].mxu0
        %v3256 = vadd.f32 %v3183, %v3255
        %v3257 = vpop.f32.mrb[0].mxu0
        %v3258 = vadd.f32 %v3185, %v3257
        %v3259 = vpop.f32.mrb[0].mxu0
        %v3260 = vadd.f32 %v3187, %v3259
        %v3261 = vpop.f32.mrb[0].mxu0
        %v3262 = vadd.f32 %v3189, %v3261
        %3263 = vdwg.mxu0
        %3264 = vmatprep.subr.bf16.mxu0 %v2276
        %3265 = vmatpush1.bf16.msra.mxu0 %v2275
        %3266 = vmatprep.subr.bf16.mxu0 %v2282
        %3267 = vmatpush1.bf16.msra.mxu0 %v2281
        %3268 = vmatprep.subr.bf16.mxu0 %v2288
        %3269 = vmatpush1.bf16.msra.mxu0 %v2287
        %3270 = vmatprep.subr.bf16.mxu0 %v2294
        %3271 = vmatpush1.bf16.msra.mxu0 %v2293
        %3272 = vmatprep.subr.bf16.mxu0 %v2300
        %3273 = vmatpush1.bf16.msra.mxu0 %v2299
        %3274 = vmatprep.subr.bf16.mxu0 %v2306
        %3275 = vmatpush1.bf16.msra.mxu0 %v2305
        %3276 = vmatprep.subr.bf16.mxu0 %v2312
        %3277 = vmatpush1.bf16.msra.mxu0 %v2311
        %3278 = vmatprep.subr.bf16.mxu0 %v2318
        %3279 = vmatpush1.bf16.msra.mxu0 %v2317
        %3280 = vmatprep.subr.bf16.mxu0 %v2324
        %3281 = vmatpush1.bf16.msra.mxu0 %v2323
        %3282 = vmatprep.subr.bf16.mxu0 %v2330
        %3283 = vmatpush1.bf16.msra.mxu0 %v2329
        %3284 = vmatprep.subr.bf16.mxu0 %v2336
        %3285 = vmatpush1.bf16.msra.mxu0 %v2335
        %3286 = vmatprep.subr.bf16.mxu0 %v2342
        %3287 = vmatpush1.bf16.msra.mxu0 %v2341
        %3288 = vmatprep.subr.bf16.mxu0 %v2348
        %3289 = vmatpush1.bf16.msra.mxu0 %v2347
        %3290 = vmatprep.subr.bf16.mxu0 %v2354
        %3291 = vmatpush1.bf16.msra.mxu0 %v2353
        %3292 = vmatprep.subr.bf16.mxu0 %v2360
        %3293 = vmatpush1.bf16.msra.mxu0 %v2359
        %3294 = vmatprep.subr.bf16.mxu0 %v2366
        %3295 = vmatpush1.bf16.msra.mxu0 %v2365
        %3296 = vmatprep.mubr.bf16.mxu0 %v776
        %3297 = vmatmul.mubr.bf16.gmra.mrb[0].mxu0 %v775
        %v3298 = vpop.f32.mrb[0].mxu0
        %v3299 = vadd.f32 %v3226, %v3298
        %v3300 = vpop.f32.mrb[0].mxu0
        %v3301 = vadd.f32 %v3228, %v3300
        %v3302 = vpop.f32.mrb[0].mxu0
        %v3303 = vadd.f32 %v3230, %v3302
        %v3304 = vpop.f32.mrb[0].mxu0
        %v3305 = vadd.f32 %v3232, %v3304
        %3306 = vmatprep.mubr.bf16.mxu0 %v784
        %3307 = vmatmul.mubr.bf16.gmra.mrb[0].mxu0 %v783
        %v3308 = vpop.f32.mrb[0].mxu0
        %v3309 = vadd.f32 %v3236, %v3308
        %v3310 = vpop.f32.mrb[0].mxu0
        %v3311 = vadd.f32 %v3238, %v3310
        %v3312 = vpop.f32.mrb[0].mxu0
        %v3313 = vadd.f32 %v3240, %v3312
        %v3314 = vpop.f32.mrb[0].mxu0
        %v3315 = vadd.f32 %v3242, %v3314
        %3316 = vmatprep.mubr.bf16.mxu0 %v792
        %3317 = vmatmul.mubr.bf16.gmra.mrb[0].mxu0 %v791
        %v3318 = vpop.f32.mrb[0].mxu0
        %v3319 = vadd.f32 %v3246, %v3318
        %v3320 = vpop.f32.mrb[0].mxu0
        %v3321 = vadd.f32 %v3248, %v3320
        %v3322 = vpop.f32.mrb[0].mxu0
        %v3323 = vadd.f32 %v3250, %v3322
        %v3324 = vpop.f32.mrb[0].mxu0
        %v3325 = vadd.f32 %v3252, %v3324
        %3326 = vmatprep.mubr.bf16.mxu0 %v800
        %3327 = vmatmul.mubr.bf16.gmra.mrb[0].mxu0 %v799
        %v3328 = vpop.f32.mrb[0].mxu0
        %v3329 = vadd.f32 %v3256, %v3328
        %v3330 = vpop.f32.mrb[0].mxu0
        %v3331 = vadd.f32 %v3258, %v3330
        %v3332 = vpop.f32.mrb[0].mxu0
        %v3333 = vadd.f32 %v3260, %v3332
        %v3334 = vpop.f32.mrb[0].mxu0
        %v3335 = vadd.f32 %v3262, %v3334
        %3336 = vdwg.mxu0
        %3337 = vmatprep.subr.bf16.mxu0 %v1990
        %3338 = vmatpush1.bf16.msra.mxu0 %v1989
        %3339 = vmatprep.subr.bf16.mxu0 %v1996
        %3340 = vmatpush1.bf16.msra.mxu0 %v1995
        %3341 = vmatprep.subr.bf16.mxu0 %v2002
        %3342 = vmatpush1.bf16.msra.mxu0 %v2001
        %3343 = vmatprep.subr.bf16.mxu0 %v2008
        %3344 = vmatpush1.bf16.msra.mxu0 %v2007
        %3345 = vmatprep.subr.bf16.mxu0 %v2014
        %3346 = vmatpush1.bf16.msra.mxu0 %v2013
        %3347 = vmatprep.subr.bf16.mxu0 %v2020
        %3348 = vmatpush1.bf16.msra.mxu0 %v2019
        %3349 = vmatprep.subr.bf16.mxu0 %v2026
        %3350 = vmatpush1.bf16.msra.mxu0 %v2025
        %3351 = vmatprep.subr.bf16.mxu0 %v2032
        %3352 = vmatpush1.bf16.msra.mxu0 %v2031
        %3353 = vmatprep.subr.bf16.mxu0 %v2038
        %3354 = vmatpush1.bf16.msra.mxu0 %v2037
        %3355 = vmatprep.subr.bf16.mxu0 %v2044
        %3356 = vmatpush1.bf16.msra.mxu0 %v2043
        %3357 = vmatprep.subr.bf16.mxu0 %v2050
        %3358 = vmatpush1.bf16.msra.mxu0 %v2049
        %3359 = vmatprep.subr.bf16.mxu0 %v2056
        %3360 = vmatpush1.bf16.msra.mxu0 %v2055
        %3361 = vmatprep.subr.bf16.mxu0 %v2062
        %3362 = vmatpush1.bf16.msra.mxu0 %v2061
        %3363 = vmatprep.subr.bf16.mxu0 %v2068
        %3364 = vmatpush1.bf16.msra.mxu0 %v2067
        %3365 = vmatprep.subr.bf16.mxu0 %v2074
        %3366 = vmatpush1.bf16.msra.mxu0 %v2073
        %3367 = vmatprep.subr.bf16.mxu0 %v2080
        %3368 = vmatpush1.bf16.msra.mxu0 %v2079
        %3369 = vmatprep.mubr.bf16.mxu0 %v770
        %3370 = vmatmul.mubr.bf16.gmra.mrb[0].mxu0 %v769
        %v3371 = vpop.f32.mrb[0].mxu0
        %v3372 = vadd.f32 %v662, %v3371
        %v3373 = vpop.f32.mrb[0].mxu0
        %v3374 = vadd.f32 %v666, %v3373
        %v3375 = vpop.f32.mrb[0].mxu0
        %v3376 = vadd.f32 %v662, %v3375
        %v3377 = vpop.f32.mrb[0].mxu0
        %v3378 = vadd.f32 %v666, %v3377
        %3379 = vmatprep.mubr.bf16.mxu0 %v778
        %3380 = vmatmul.mubr.bf16.gmra.mrb[0].mxu0 %v777
        %v3381 = vpop.f32.mrb[0].mxu0
        %v3382 = vadd.f32 %v662, %v3381
        %v3383 = vpop.f32.mrb[0].mxu0
        %v3384 = vadd.f32 %v666, %v3383
        %v3385 = vpop.f32.mrb[0].mxu0
        %v3386 = vadd.f32 %v662, %v3385
        %v3387 = vpop.f32.mrb[0].mxu0
        %v3388 = vadd.f32 %v666, %v3387
        %3389 = vmatprep.mubr.bf16.mxu0 %v786
        %3390 = vmatmul.mubr.bf16.gmra.mrb[0].mxu0 %v785
        %v3391 = vpop.f32.mrb[0].mxu0
        %v3392 = vadd.f32 %v662, %v3391
        %v3393 = vpop.f32.mrb[0].mxu0
        %v3394 = vadd.f32 %v666, %v3393
        %v3395 = vpop.f32.mrb[0].mxu0
        %v3396 = vadd.f32 %v662, %v3395
        %v3397 = vpop.f32.mrb[0].mxu0
        %v3398 = vadd.f32 %v666, %v3397
        %3399 = vmatprep.mubr.bf16.mxu0 %v794
        %3400 = vmatmul.mubr.bf16.gmra.mrb[0].mxu0 %v793
        %v3401 = vpop.f32.mrb[0].mxu0
        %v3402 = vadd.f32 %v662, %v3401
        %v3403 = vpop.f32.mrb[0].mxu0
        %v3404 = vadd.f32 %v666, %v3403
        %v3405 = vpop.f32.mrb[0].mxu0
        %v3406 = vadd.f32 %v662, %v3405
        %v3407 = vpop.f32.mrb[0].mxu0
        %v3408 = vadd.f32 %v666, %v3407
        %3409 = vdwg.mxu0
        %3410 = vmatprep.subr.bf16.mxu0 %v2086
        %3411 = vmatpush1.bf16.msra.mxu0 %v2085
        %3412 = vmatprep.subr.bf16.mxu0 %v2092
        %3413 = vmatpush1.bf16.msra.mxu0 %v2091
        %3414 = vmatprep.subr.bf16.mxu0 %v2098
        %3415 = vmatpush1.bf16.msra.mxu0 %v2097
        %3416 = vmatprep.subr.bf16.mxu0 %v2104
        %3417 = vmatpush1.bf16.msra.mxu0 %v2103
        %3418 = vmatprep.subr.bf16.mxu0 %v2110
        %3419 = vmatpush1.bf16.msra.mxu0 %v2109
        %3420 = vmatprep.subr.bf16.mxu0 %v2116
        %3421 = vmatpush1.bf16.msra.mxu0 %v2115
        %3422 = vmatprep.subr.bf16.mxu0 %v2122
        %3423 = vmatpush1.bf16.msra.mxu0 %v2121
        %3424 = vmatprep.subr.bf16.mxu0 %v2128
        %3425 = vmatpush1.bf16.msra.mxu0 %v2127
        %3426 = vmatprep.subr.bf16.mxu0 %v2134
        %3427 = vmatpush1.bf16.msra.mxu0 %v2133
        %3428 = vmatprep.subr.bf16.mxu0 %v2140
        %3429 = vmatpush1.bf16.msra.mxu0 %v2139
        %3430 = vmatprep.subr.bf16.mxu0 %v2146
        %3431 = vmatpush1.bf16.msra.mxu0 %v2145
        %3432 = vmatprep.subr.bf16.mxu0 %v2152
        %3433 = vmatpush1.bf16.msra.mxu0 %v2151
        %3434 = vmatprep.subr.bf16.mxu0 %v2158
        %3435 = vmatpush1.bf16.msra.mxu0 %v2157
        %3436 = vmatprep.subr.bf16.mxu0 %v2164
        %3437 = vmatpush1.bf16.msra.mxu0 %v2163
        %3438 = vmatprep.subr.bf16.mxu0 %v2170
        %3439 = vmatpush1.bf16.msra.mxu0 %v2169
        %3440 = vmatprep.subr.bf16.mxu0 %v2176
        %3441 = vmatpush1.bf16.msra.mxu0 %v2175
        %3442 = vmatprep.mubr.bf16.mxu0 %v772
        %3443 = vmatmul.mubr.bf16.gmra.mrb[0].mxu0 %v771
        %v3444 = vpop.f32.mrb[0].mxu0
        %v3445 = vadd.f32 %v3372, %v3444
        %v3446 = vpop.f32.mrb[0].mxu0
        %v3447 = vadd.f32 %v3374, %v3446
        %v3448 = vpop.f32.mrb[0].mxu0
        %v3449 = vadd.f32 %v3376, %v3448
        %v3450 = vpop.f32.mrb[0].mxu0
        %v3451 = vadd.f32 %v3378, %v3450
        %3452 = vmatprep.mubr.bf16.mxu0 %v780
        %3453 = vmatmul.mubr.bf16.gmra.mrb[0].mxu0 %v779
        %v3454 = vpop.f32.mrb[0].mxu0
        %v3455 = vadd.f32 %v3382, %v3454
        %v3456 = vpop.f32.mrb[0].mxu0
        %v3457 = vadd.f32 %v3384, %v3456
        %v3458 = vpop.f32.mrb[0].mxu0
        %v3459 = vadd.f32 %v3386, %v3458
        %v3460 = vpop.f32.mrb[0].mxu0
        %v3461 = vadd.f32 %v3388, %v3460
        %3462 = vmatprep.mubr.bf16.mxu0 %v788
        %3463 = vmatmul.mubr.bf16.gmra.mrb[0].mxu0 %v787
        %v3464 = vpop.f32.mrb[0].mxu0
        %v3465 = vadd.f32 %v3392, %v3464
        %v3466 = vpop.f32.mrb[0].mxu0
        %v3467 = vadd.f32 %v3394, %v3466
        %v3468 = vpop.f32.mrb[0].mxu0
        %v3469 = vadd.f32 %v3396, %v3468
        %v3470 = vpop.f32.mrb[0].mxu0
        %v3471 = vadd.f32 %v3398, %v3470
        %3472 = vmatprep.mubr.bf16.mxu0 %v796
        %3473 = vmatmul.mubr.bf16.gmra.mrb[0].mxu0 %v795
        %v3474 = vpop.f32.mrb[0].mxu0
        %v3475 = vadd.f32 %v3402, %v3474
        %v3476 = vpop.f32.mrb[0].mxu0
        %v3477 = vadd.f32 %v3404, %v3476
        %v3478 = vpop.f32.mrb[0].mxu0
        %v3479 = vadd.f32 %v3406, %v3478
        %v3480 = vpop.f32.mrb[0].mxu0
        %v3481 = vadd.f32 %v3408, %v3480
        %3482 = vdwg.mxu0
        %3483 = vmatprep.subr.bf16.mxu0 %v2182
        %3484 = vmatpush1.bf16.msra.mxu0 %v2181
        %3485 = vmatprep.subr.bf16.mxu0 %v2188
        %3486 = vmatpush1.bf16.msra.mxu0 %v2187
        %3487 = vmatprep.subr.bf16.mxu0 %v2194
        %3488 = vmatpush1.bf16.msra.mxu0 %v2193
        %3489 = vmatprep.subr.bf16.mxu0 %v2200
        %3490 = vmatpush1.bf16.msra.mxu0 %v2199
        %3491 = vmatprep.subr.bf16.mxu0 %v2206
        %3492 = vmatpush1.bf16.msra.mxu0 %v2205
        %3493 = vmatprep.subr.bf16.mxu0 %v2212
        %3494 = vmatpush1.bf16.msra.mxu0 %v2211
        %3495 = vmatprep.subr.bf16.mxu0 %v2218
        %3496 = vmatpush1.bf16.msra.mxu0 %v2217
        %3497 = vmatprep.subr.bf16.mxu0 %v2224
        %3498 = vmatpush1.bf16.msra.mxu0 %v2223
        %3499 = vmatprep.subr.bf16.mxu0 %v2230
        %3500 = vmatpush1.bf16.msra.mxu0 %v2229
        %3501 = vmatprep.subr.bf16.mxu0 %v2236
        %3502 = vmatpush1.bf16.msra.mxu0 %v2235
        %3503 = vmatprep.subr.bf16.mxu0 %v2242
        %3504 = vmatpush1.bf16.msra.mxu0 %v2241
        %3505 = vmatprep.subr.bf16.mxu0 %v2248
        %3506 = vmatpush1.bf16.msra.mxu0 %v2247
        %3507 = vmatprep.subr.bf16.mxu0 %v2254
        %3508 = vmatpush1.bf16.msra.mxu0 %v2253
        %3509 = vmatprep.subr.bf16.mxu0 %v2260
        %3510 = vmatpush1.bf16.msra.mxu0 %v2259
        %3511 = vmatprep.subr.bf16.mxu0 %v2266
        %3512 = vmatpush1.bf16.msra.mxu0 %v2265
        %3513 = vmatprep.subr.bf16.mxu0 %v2272
        %3514 = vmatpush1.bf16.msra.mxu0 %v2271
        %3515 = vmatprep.mubr.bf16.mxu0 %v774
        %3516 = vmatmul.mubr.bf16.gmra.mrb[0].mxu0 %v773
        %v3517 = vpop.f32.mrb[0].mxu0
        %v3518 = vadd.f32 %v3445, %v3517
        %v3519 = vpop.f32.mrb[0].mxu0
        %v3520 = vadd.f32 %v3447, %v3519
        %v3521 = vpop.f32.mrb[0].mxu0
        %v3522 = vadd.f32 %v3449, %v3521
        %v3523 = vpop.f32.mrb[0].mxu0
        %v3524 = vadd.f32 %v3451, %v3523
        %3525 = vmatprep.mubr.bf16.mxu0 %v782
        %3526 = vmatmul.mubr.bf16.gmra.mrb[0].mxu0 %v781
        %v3527 = vpop.f32.mrb[0].mxu0
        %v3528 = vadd.f32 %v3455, %v3527
        %v3529 = vpop.f32.mrb[0].mxu0
        %v3530 = vadd.f32 %v3457, %v3529
        %v3531 = vpop.f32.mrb[0].mxu0
        %v3532 = vadd.f32 %v3459, %v3531
        %v3533 = vpop.f32.mrb[0].mxu0
        %v3534 = vadd.f32 %v3461, %v3533
        %3535 = vmatprep.mubr.bf16.mxu0 %v790
        %3536 = vmatmul.mubr.bf16.gmra.mrb[0].mxu0 %v789
        %v3537 = vpop.f32.mrb[0].mxu0
        %v3538 = vadd.f32 %v3465, %v3537
        %v3539 = vpop.f32.mrb[0].mxu0
        %v3540 = vadd.f32 %v3467, %v3539
        %v3541 = vpop.f32.mrb[0].mxu0
        %v3542 = vadd.f32 %v3469, %v3541
        %v3543 = vpop.f32.mrb[0].mxu0
        %v3544 = vadd.f32 %v3471, %v3543
        %3545 = vmatprep.mubr.bf16.mxu0 %v798
        %3546 = vmatmul.mubr.bf16.gmra.mrb[0].mxu0 %v797
        %v3547 = vpop.f32.mrb[0].mxu0
        %v3548 = vadd.f32 %v3475, %v3547
        %v3549 = vpop.f32.mrb[0].mxu0
        %v3550 = vadd.f32 %v3477, %v3549
        %v3551 = vpop.f32.mrb[0].mxu0
        %v3552 = vadd.f32 %v3479, %v3551
        %v3553 = vpop.f32.mrb[0].mxu0
        %v3554 = vadd.f32 %v3481, %v3553
        %3555 = vdwg.mxu0
        %3556 = vmatprep.subr.bf16.mxu0 %v2278
        %3557 = vmatpush1.bf16.msra.mxu0 %v2277
        %3558 = vmatprep.subr.bf16.mxu0 %v2284
        %3559 = vmatpush1.bf16.msra.mxu0 %v2283
        %3560 = vmatprep.subr.bf16.mxu0 %v2290
        %3561 = vmatpush1.bf16.msra.mxu0 %v2289
        %3562 = vmatprep.subr.bf16.mxu0 %v2296
        %3563 = vmatpush1.bf16.msra.mxu0 %v2295
        %3564 = vmatprep.subr.bf16.mxu0 %v2302
        %3565 = vmatpush1.bf16.msra.mxu0 %v2301
        %3566 = vmatprep.subr.bf16.mxu0 %v2308
        %3567 = vmatpush1.bf16.msra.mxu0 %v2307
        %3568 = vmatprep.subr.bf16.mxu0 %v2314
        %3569 = vmatpush1.bf16.msra.mxu0 %v2313
        %3570 = vmatprep.subr.bf16.mxu0 %v2320
        %3571 = vmatpush1.bf16.msra.mxu0 %v2319
        %3572 = vmatprep.subr.bf16.mxu0 %v2326
        %3573 = vmatpush1.bf16.msra.mxu0 %v2325
        %3574 = vmatprep.subr.bf16.mxu0 %v2332
        %3575 = vmatpush1.bf16.msra.mxu0 %v2331
        %3576 = vmatprep.subr.bf16.mxu0 %v2338
        %3577 = vmatpush1.bf16.msra.mxu0 %v2337
        %3578 = vmatprep.subr.bf16.mxu0 %v2344
        %3579 = vmatpush1.bf16.msra.mxu0 %v2343
        %3580 = vmatprep.subr.bf16.mxu0 %v2350
        %3581 = vmatpush1.bf16.msra.mxu0 %v2349
        %3582 = vmatprep.subr.bf16.mxu0 %v2356
        %3583 = vmatpush1.bf16.msra.mxu0 %v2355
        %3584 = vmatprep.subr.bf16.mxu0 %v2362
        %3585 = vmatpush1.bf16.msra.mxu0 %v2361
        %3586 = vmatprep.subr.bf16.mxu0 %v2368
        %3587 = vmatpush1.bf16.msra.mxu0 %v2367
        %3588 = vmatprep.mubr.bf16.mxu0 %v776
        %3589 = vmatmul.mubr.bf16.gmra.mrb[0].mxu0 %v775
        %v3590 = vpop.f32.mrb[0].mxu0
        %v3591 = vadd.f32 %v3518, %v3590
        %v3592 = vpop.f32.mrb[0].mxu0
        %v3593 = vadd.f32 %v3520, %v3592
        %v3594 = vpop.f32.mrb[0].mxu0
        %v3595 = vadd.f32 %v3522, %v3594
        %v3596 = vpop.f32.mrb[0].mxu0
        %v3597 = vadd.f32 %v3524, %v3596
        %3598 = vmatprep.mubr.bf16.mxu0 %v784
        %3599 = vmatmul.mubr.bf16.gmra.mrb[0].mxu0 %v783
        %v3600 = vpop.f32.mrb[0].mxu0
        %v3601 = vadd.f32 %v3528, %v3600
        %v3602 = vpop.f32.mrb[0].mxu0
        %v3603 = vadd.f32 %v3530, %v3602
        %v3604 = vpop.f32.mrb[0].mxu0
        %v3605 = vadd.f32 %v3532, %v3604
        %v3606 = vpop.f32.mrb[0].mxu0
        %v3607 = vadd.f32 %v3534, %v3606
        %3608 = vmatprep.mubr.bf16.mxu0 %v792
        %3609 = vmatmul.mubr.bf16.gmra.mrb[0].mxu0 %v791
        %v3610 = vpop.f32.mrb[0].mxu0
        %v3611 = vadd.f32 %v3538, %v3610
        %v3612 = vpop.f32.mrb[0].mxu0
        %v3613 = vadd.f32 %v3540, %v3612
        %v3614 = vpop.f32.mrb[0].mxu0
        %v3615 = vadd.f32 %v3542, %v3614
        %v3616 = vpop.f32.mrb[0].mxu0
        %v3617 = vadd.f32 %v3544, %v3616
        %3618 = vmatprep.mubr.bf16.mxu0 %v800
        %3619 = vmatmul.mubr.bf16.gmra.mrb[0].mxu0 %v799
        %v3620 = vpop.f32.mrb[0].mxu0
        %v3621 = vadd.f32 %v3548, %v3620
        %v3622 = vpop.f32.mrb[0].mxu0
        %v3623 = vadd.f32 %v3550, %v3622
        %v3624 = vpop.f32.mrb[0].mxu0
        %v3625 = vadd.f32 %v3552, %v3624
        %v3626 = vpop.f32.mrb[0].mxu0
        %v3627 = vadd.f32 %v3554, %v3626
        %3628 = vdwg.mxu0
        %v3629 = vtanh.pop %v3007
        %v3630 = vtanh.pop %v3009
        %v3631 = vtanh.pop %v3299
        %v3632 = vtanh.pop %v3301
        %v3633 = vtanh.pop %v3591
        %v3634 = vtanh.pop %v3593
        %v3635 = vtanh.pop %v3011
        %v3636 = vtanh.pop %v3013
        %v3637 = vtanh.pop %v3303
        %v3638 = vtanh.pop %v3305
        %v3639 = vtanh.pop %v3595
        %v3640 = vtanh.pop %v3597
        %v3641 = vtanh.pop %v3017
        %v3642 = vtanh.pop %v3019
        %v3643 = vtanh.pop %v3309
        %v3644 = vtanh.pop %v3311
        %v3645 = vtanh.pop %v3601
        %v3646 = vtanh.pop %v3603
        %v3647 = vtanh.pop %v3021
        %v3648 = vtanh.pop %v3023
        %v3649 = vtanh.pop %v3313
        %v3650 = vtanh.pop %v3315
        %v3651 = vtanh.pop %v3605
        %v3652 = vtanh.pop %v3607
        %v3653 = vtanh.pop %v3027
        %v3654 = vtanh.pop %v3029
        %v3655 = vtanh.pop %v3319
        %v3656 = vtanh.pop %v3321
        %v3657 = vtanh.pop %v3611
        %v3658 = vtanh.pop %v3613
        %v3659 = vtanh.pop %v3031
        %v3660 = vtanh.pop %v3033
        %v3661 = vtanh.pop %v3323
        %v3662 = vtanh.pop %v3325
        %v3663 = vtanh.pop %v3615
        %v3664 = vtanh.pop %v3617
        %v3665 = vtanh.pop %v3037
        %v3666 = vtanh.pop %v3039
        %v3667 = vtanh.pop %v3329
        %v3668 = vtanh.pop %v3331
        %v3669 = vtanh.pop %v3621
        %v3670 = vtanh.pop %v3623
        %v3671 = vtanh.pop %v3041
        %v3672 = vtanh.pop %v3043
        %v3673 = vtanh.pop %v3333
        %v3674 = vtanh.pop %v3335
        %v3675 = vtanh.pop %v3625
        %v3676 = vtanh.pop %v3627
        %3677 = vst [vmem:[%s222] sm:$0xff] %v3629
        %3678 = vst [vmem:[%s222 + $0x8] sm:$0xff] %v3630
        %3679 = vst [vmem:[%s222 + $0x10] sm:$0xff] %v3631
        %3680 = vst [vmem:[%s222 + $0x18] sm:$0xff] %v3632
        %3681 = vst [vmem:[%s222 + $0x20] sm:$0xff] %v3633
        %3682 = vst [vmem:[%s222 + $0x28] sm:$0xff] %v3634
        %3683 = vst [vmem:[%s222 + $0x30] sm:$0xff] %v3635
        %3684 = vst [vmem:[%s222 + $0x38] sm:$0xff] %v3636
        %3685 = vst [vmem:[%s222 + $0x40] sm:$0xff] %v3637
        %3686 = vst [vmem:[%s222 + $0x48] sm:$0xff] %v3638
        %3687 = vst [vmem:[%s222 + $0x50] sm:$0xff] %v3639
        %3688 = vst [vmem:[%s222 + $0x58] sm:$0xff] %v3640
        %3689 = vst [vmem:[%s222 + $0x60] sm:$0xff] %v3641
        %3690 = vst [vmem:[%s222 + $0x68] sm:$0xff] %v3642
        %3691 = vst [vmem:[%s222 + $0x70] sm:$0xff] %v3643
        %3692 = vst [vmem:[%s222 + $0x78] sm:$0xff] %v3644
        %3693 = vst [vmem:[%s222 + $0x80] sm:$0xff] %v3645
        %3694 = vst [vmem:[%s222 + $0x88] sm:$0xff] %v3646
        %3695 = vst [vmem:[%s222 + $0x90] sm:$0xff] %v3647
        %3696 = vst [vmem:[%s222 + $0x98] sm:$0xff] %v3648
        %3697 = vst [vmem:[%s222 + $0xa0] sm:$0xff] %v3649
        %3698 = vst [vmem:[%s222 + $0xa8] sm:$0xff] %v3650
        %3699 = vst [vmem:[%s222 + $0xb0] sm:$0xff] %v3651
        %3700 = vst [vmem:[%s222 + $0xb8] sm:$0xff] %v3652
        %3701 = vst [vmem:[%s222 + $0xc0] sm:$0xff] %v3653
        %3702 = vst [vmem:[%s222 + $0xc8] sm:$0xff] %v3654
        %3703 = vst [vmem:[%s222 + $0xd0] sm:$0xff] %v3655
        %3704 = vst [vmem:[%s222 + $0xd8] sm:$0xff] %v3656
        %3705 = vst [vmem:[%s222 + $0xe0] sm:$0xff] %v3657
        %3706 = vst [vmem:[%s222 + $0xe8] sm:$0xff] %v3658
        %3707 = vst [vmem:[%s222 + $0xf0] sm:$0xff] %v3659
        %3708 = vst [vmem:[%s222 + $0xf8] sm:$0xff] %v3660
        %3709 = vst [vmem:[%s222 + $0x100] sm:$0xff] %v3661
        %3710 = vst [vmem:[%s222 + $0x108] sm:$0xff] %v3662
        %3711 = vst [vmem:[%s222 + $0x110] sm:$0xff] %v3663
        %3712 = vst [vmem:[%s222 + $0x118] sm:$0xff] %v3664
        %3713 = vst [vmem:[%s222 + $0x120] sm:$0xff] %v3665
        %3714 = vst [vmem:[%s222 + $0x128] sm:$0xff] %v3666
        %3715 = vst [vmem:[%s222 + $0x130] sm:$0xff] %v3667
        %3716 = vst [vmem:[%s222 + $0x138] sm:$0xff] %v3668
        %3717 = vst [vmem:[%s222 + $0x140] sm:$0xff] %v3669
        %3718 = vst [vmem:[%s222 + $0x148] sm:$0xff] %v3670
        %3719 = vst [vmem:[%s222 + $0x150] sm:$0xff] %v3671
        %3720 = vst [vmem:[%s222 + $0x158] sm:$0xff] %v3672
        %3721 = vst [vmem:[%s222 + $0x160] sm:$0xff] %v3673
        %3722 = vst [vmem:[%s222 + $0x168] sm:$0xff] %v3674
        %3723 = vst [vmem:[%s222 + $0x170] sm:$0xff] %v3675
        %3724 = vst [vmem:[%s222 + $0x178] sm:$0xff] %v3676
        %s3725 = sand.u32 %s101, 1
        %s3726 = sand.u32 %s101, 1
        %s3727 = smul.addr %s3726, 384
        %s3728 = scalar_lea.vmem [#allocation6], %s3727
        // Predicated region
        $region41: #{point_cloud_generator.3} parent=31 // pred_check
          %p3729 = pneg %p111
        $region42: #{point_cloud_generator.3} parent=31 // pred_check_branch
          %3731 = sbr.rel (%p3729) target = $region44
        $region43: #{point_cloud_generator.3} parent=31 // pred_region
          %s3732 = smul.u32 6, %s20
          %s3733 = smul.addr %s3732, 8
          %s3734 = scalar_lea.vmem %s3, %s3733
          // Predicated region
          $region45: #{point_cloud_generator.3} parent=43 // pred_check
            _
          $region46: #{point_cloud_generator.3} parent=43 // pred_check_branch
            %3736 = sbr.rel (0) target = $region48
          $region47: #{point_cloud_generator.3} parent=43 // pred_region
            // Predicated region
            $region49: #{point_cloud_generator.3} parent=47 // pred_check
              _
            $region50: #{point_cloud_generator.3} parent=47 // pred_check_branch
              %3738 = sbr.rel (0) target = $region52
            $region51: #{point_cloud_generator.3} parent=47 // pred_region
              loop: start=0, step=1, limit=1
              $region53: #{point_cloud_generator.3} parent=51 // loop_pre_header
                _
              $region54: #{point_cloud_generator.3} parent=51 // loop_header
                %s3740 = sphi 0, %s3744
                %p3741 = scmp.ge.s32.totalorder %s3740, 1
                %s3745 = sphi %s3728, %s3728
                %s3746 = sphi %s3734, %s3734
              $region55: #{point_cloud_generator.3} parent=51 // loop_header_branch
                %3743 = sbr.rel (%p3741) target = $region59
              $region56: #{point_cloud_generator.3} parent=51 // loop_body
                %v3747 = vld [vmem:[%s3745] sm:$0xff]
                %3748 = vst [vmem:[%s3746] sm:$0xff] %v3747
                %v3749 = vld [vmem:[%s3745 + $0x8] sm:$0xff]
                %3750 = vst [vmem:[%s3746 + $0x8] sm:$0xff] %v3749
                %v3751 = vld [vmem:[%s3745 + $0x10] sm:$0xff]
                %3752 = vst [vmem:[%s3746 + $0x10] sm:$0xff] %v3751
                %v3753 = vld [vmem:[%s3745 + $0x18] sm:$0xff]
                %3754 = vst [vmem:[%s3746 + $0x18] sm:$0xff] %v3753
                %v3755 = vld [vmem:[%s3745 + $0x20] sm:$0xff]
                %3756 = vst [vmem:[%s3746 + $0x20] sm:$0xff] %v3755
                %v3757 = vld [vmem:[%s3745 + $0x28] sm:$0xff]
                %3758 = vst [vmem:[%s3746 + $0x28] sm:$0xff] %v3757
                %v3759 = vld [vmem:[%s3745 + $0x30] sm:$0xff]
                %3760 = vst [vmem:[%s3746 + $0xc0] sm:$0xff] %v3759
                %v3761 = vld [vmem:[%s3745 + $0x38] sm:$0xff]
                %3762 = vst [vmem:[%s3746 + $0xc8] sm:$0xff] %v3761
                %v3763 = vld [vmem:[%s3745 + $0x40] sm:$0xff]
                %3764 = vst [vmem:[%s3746 + $0xd0] sm:$0xff] %v3763
                %v3765 = vld [vmem:[%s3745 + $0x48] sm:$0xff]
                %3766 = vst [vmem:[%s3746 + $0xd8] sm:$0xff] %v3765
                %v3767 = vld [vmem:[%s3745 + $0x50] sm:$0xff]
                %3768 = vst [vmem:[%s3746 + $0xe0] sm:$0xff] %v3767
                %v3769 = vld [vmem:[%s3745 + $0x58] sm:$0xff]
                %3770 = vst [vmem:[%s3746 + $0xe8] sm:$0xff] %v3769
                %v3771 = vld [vmem:[%s3745 + $0x60] sm:$0xff]
                %3772 = vst [vmem:[%s3746 + $0x180] sm:$0xff] %v3771
                %v3773 = vld [vmem:[%s3745 + $0x68] sm:$0xff]
                %3774 = vst [vmem:[%s3746 + $0x188] sm:$0xff] %v3773
                %v3775 = vld [vmem:[%s3745 + $0x70] sm:$0xff]
                %3776 = vst [vmem:[%s3746 + $0x190] sm:$0xff] %v3775
                %v3777 = vld [vmem:[%s3745 + $0x78] sm:$0xff]
                %3778 = vst [vmem:[%s3746 + $0x198] sm:$0xff] %v3777
                %v3779 = vld [vmem:[%s3745 + $0x80] sm:$0xff]
                %3780 = vst [vmem:[%s3746 + $0x1a0] sm:$0xff] %v3779
                %v3781 = vld [vmem:[%s3745 + $0x88] sm:$0xff]
                %3782 = vst [vmem:[%s3746 + $0x1a8] sm:$0xff] %v3781
                %v3783 = vld [vmem:[%s3745 + $0x90] sm:$0xff]
                %3784 = vst [vmem:[%s3746 + $0x240] sm:$0xff] %v3783
                %v3785 = vld [vmem:[%s3745 + $0x98] sm:$0xff]
                %3786 = vst [vmem:[%s3746 + $0x248] sm:$0xff] %v3785
                %v3787 = vld [vmem:[%s3745 + $0xa0] sm:$0xff]
                %3788 = vst [vmem:[%s3746 + $0x250] sm:$0xff] %v3787
                %v3789 = vld [vmem:[%s3745 + $0xa8] sm:$0xff]
                %3790 = vst [vmem:[%s3746 + $0x258] sm:$0xff] %v3789
                %v3791 = vld [vmem:[%s3745 + $0xb0] sm:$0xff]
                %3792 = vst [vmem:[%s3746 + $0x260] sm:$0xff] %v3791
                %v3793 = vld [vmem:[%s3745 + $0xb8] sm:$0xff]
                %3794 = vst [vmem:[%s3746 + $0x268] sm:$0xff] %v3793
                %v3795 = vld [vmem:[%s3745 + $0xc0] sm:$0xff]
                %3796 = vst [vmem:[%s3746 + $0x300] sm:$0xff] %v3795
                %v3797 = vld [vmem:[%s3745 + $0xc8] sm:$0xff]
                %3798 = vst [vmem:[%s3746 + $0x308] sm:$0xff] %v3797
                %v3799 = vld [vmem:[%s3745 + $0xd0] sm:$0xff]
                %3800 = vst [vmem:[%s3746 + $0x310] sm:$0xff] %v3799
                %v3801 = vld [vmem:[%s3745 + $0xd8] sm:$0xff]
                %3802 = vst [vmem:[%s3746 + $0x318] sm:$0xff] %v3801
                %v3803 = vld [vmem:[%s3745 + $0xe0] sm:$0xff]
                %3804 = vst [vmem:[%s3746 + $0x320] sm:$0xff] %v3803
                %v3805 = vld [vmem:[%s3745 + $0xe8] sm:$0xff]
                %3806 = vst [vmem:[%s3746 + $0x328] sm:$0xff] %v3805
                %v3807 = vld [vmem:[%s3745 + $0xf0] sm:$0xff]
                %3808 = vst [vmem:[%s3746 + $0x3c0] sm:$0xff] %v3807
                %v3809 = vld [vmem:[%s3745 + $0xf8] sm:$0xff]
                %3810 = vst [vmem:[%s3746 + $0x3c8] sm:$0xff] %v3809
                %v3811 = vld [vmem:[%s3745 + $0x100] sm:$0xff]
                %3812 = vst [vmem:[%s3746 + $0x3d0] sm:$0xff] %v3811
                %v3813 = vld [vmem:[%s3745 + $0x108] sm:$0xff]
                %3814 = vst [vmem:[%s3746 + $0x3d8] sm:$0xff] %v3813
                %v3815 = vld [vmem:[%s3745 + $0x110] sm:$0xff]
                %3816 = vst [vmem:[%s3746 + $0x3e0] sm:$0xff] %v3815
                %v3817 = vld [vmem:[%s3745 + $0x118] sm:$0xff]
                %3818 = vst [vmem:[%s3746 + $0x3e8] sm:$0xff] %v3817
                %v3819 = vld [vmem:[%s3745 + $0x120] sm:$0xff]
                %3820 = vst [vmem:[%s3746 + $0x480] sm:$0xff] %v3819
                %v3821 = vld [vmem:[%s3745 + $0x128] sm:$0xff]
                %3822 = vst [vmem:[%s3746 + $0x488] sm:$0xff] %v3821
                %v3823 = vld [vmem:[%s3745 + $0x130] sm:$0xff]
                %3824 = vst [vmem:[%s3746 + $0x490] sm:$0xff] %v3823
                %v3825 = vld [vmem:[%s3745 + $0x138] sm:$0xff]
                %3826 = vst [vmem:[%s3746 + $0x498] sm:$0xff] %v3825
                %v3827 = vld [vmem:[%s3745 + $0x140] sm:$0xff]
                %3828 = vst [vmem:[%s3746 + $0x4a0] sm:$0xff] %v3827
                %v3829 = vld [vmem:[%s3745 + $0x148] sm:$0xff]
                %3830 = vst [vmem:[%s3746 + $0x4a8] sm:$0xff] %v3829
                %v3831 = vld [vmem:[%s3745 + $0x150] sm:$0xff]
                %3832 = vst [vmem:[%s3746 + $0x540] sm:$0xff] %v3831
                %v3833 = vld [vmem:[%s3745 + $0x158] sm:$0xff]
                %3834 = vst [vmem:[%s3746 + $0x548] sm:$0xff] %v3833
                %v3835 = vld [vmem:[%s3745 + $0x160] sm:$0xff]
                %3836 = vst [vmem:[%s3746 + $0x550] sm:$0xff] %v3835
                %v3837 = vld [vmem:[%s3745 + $0x168] sm:$0xff]
                %3838 = vst [vmem:[%s3746 + $0x558] sm:$0xff] %v3837
                %v3839 = vld [vmem:[%s3745 + $0x170] sm:$0xff]
                %3840 = vst [vmem:[%s3746 + $0x560] sm:$0xff] %v3839
                %v3841 = vld [vmem:[%s3745 + $0x178] sm:$0xff]
                %3842 = vst [vmem:[%s3746 + $0x568] sm:$0xff] %v3841
              $region57: #{point_cloud_generator.3} parent=51 // loop_footer
                %s3744 = sadd.s32 1, %s3740
              $region58: #{point_cloud_generator.3} parent=51 // loop_footer_branch
                %3739 = sbr.rel target = $region54
              $region59: #{point_cloud_generator.3} parent=51 // loop_exit
                _
            $region52: #{point_cloud_generator.3} parent=47 // pred_fallthru
              _
            // Predicated region
            $region60: #{point_cloud_generator.3} parent=47 // pred_check
              _
            $region61: #{point_cloud_generator.3} parent=47 // pred_check_branch
              %3844 = sbr.rel target = $region63
            $region62: #{point_cloud_generator.3} parent=47 // pred_region
              _
            $region63: #{point_cloud_generator.3} parent=47 // pred_fallthru
              _
          $region48: #{point_cloud_generator.3} parent=43 // pred_fallthru
            _
          %3845 = vnop
        $region44: #{point_cloud_generator.3} parent=31 // pred_fallthru
          _
      $region32: #{point_cloud_generator.3} parent=5 // pred_fallthru
        _
      %p3846 = scmp.le.s32.totalorder 2, %s15
      // Predicated region
      $region64: #{point_cloud_generator.3} parent=5 // pred_check
        %p3847 = pneg %p3846
      $region65: #{point_cloud_generator.3} parent=5 // pred_check_branch
        %3849 = sbr.rel (%p3847) target = $region67
      $region66: #{point_cloud_generator.3} parent=5 // pred_region
        %s3850 = ssub.s32 %s15, 2
        // Predicated region
        $region68: #{point_cloud_generator.3} parent=66 // pred_check
          %p3851 = pneg %p117
        $region69: #{point_cloud_generator.3} parent=66 // pred_check_branch
          %3853 = sbr.rel (%p3851) target = $region71
        $region70: #{point_cloud_generator.3} parent=66 // pred_region
          %s3854 = sand.u32 %s102, 1
          %s3855 = sand.u32 %s102, 1
          %s3856 = smul.addr %s3855, 384
          %s3857 = scalar_lea.vmem [#allocation6], %s3856
        $region71: #{point_cloud_generator.3} parent=66 // pred_fallthru
          _
      $region67: #{point_cloud_generator.3} parent=5 // pred_fallthru
        _
    $region6: #{point_cloud_generator.3} parent=1 // loop_footer
      %s19 = sadd.s32 1, %s15
    $region7: #{point_cloud_generator.3} parent=1 // loop_footer_branch
      %14 = sbr.rel target = $region3
    $region8: #{point_cloud_generator.3} parent=1 // loop_exit
      _
    %3858 = vsyncpa [#allocation3], 1
    %s3859 = scalar_lea.sflag [#allocation3], 1
    %3860 = vsyncpa %s3859, 1
    %3861 = vsyncpa [#allocation5], 1
    %s3862 = scalar_lea.sflag [#allocation5], 1
    %3863 = vsyncpa %s3862, 1

</llo_original>
